<compile_context>
chip_gen: v7x
topology: tpu7x:2x2x1
jax: 0.10.0
libtpu: 0.0.40
codegen_flags: <defaults>
</compile_context>

<pallas_src>
import functools

import jax
import jax.numpy as jnp
from jax import lax
from jax.experimental import pallas as pl
from jax.experimental.pallas import tpu as pltpu


# ---------------------------------------------------------------------------
# Pallas kernel: tap-reduction matmul with fused bias (+ optional ReLU)
# ---------------------------------------------------------------------------
def _conv_tap_kernel(x_ref, w_ref, b_ref, o_ref, acc_ref, *, n_taps, relu):
    """Grid = (M_tiles, n_taps).  Per M tile:
         acc  = sum_t  x_tap[t] @ W[t]     (bf16 MXU, f32 accumulate)
         out  = relu(acc + bias)           (f32 epilogue, cast on store)
    """
    t = pl.program_id(1)

    @pl.when(t == 0)
    def _():
        acc_ref[...] = jnp.zeros_like(acc_ref)

    acc_ref[...] += jnp.dot(x_ref[...], w_ref[...],
                            preferred_element_type=jnp.float32)

    @pl.when(t == n_taps - 1)
    def _():
        y = acc_ref[...] + b_ref[...]
        if relu:
            y = jnp.maximum(y, 0.0)
        o_ref[...] = y.astype(o_ref.dtype)


def _pick_row_tile(m, cap=256):
    for tm in (cap, 128, 64, 32, 16, 8):
        if tm <= m and m % tm == 0:
            return tm
    return m


def conv_taps_matmul(taps, w_taps, bias, *, relu, out_dtype):
    """taps: (T, M, Cin) bf16, w_taps: (T, Cin, Cout) bf16, bias: (1, Cout) f32."""
    T, M, Cin = taps.shape
    Cout = w_taps.shape[-1]
    TM = _pick_row_tile(M)

    kernel = functools.partial(_conv_tap_kernel, n_taps=T, relu=relu)
    return pl.pallas_call(
        kernel,
        out_shape=jax.ShapeDtypeStruct((M, Cout), out_dtype),
        grid_spec=pltpu.PrefetchScalarGridSpec(
            num_scalar_prefetch=0,
            grid=(M // TM, T),                      # tap axis = reduction, last
            in_specs=[
                pl.BlockSpec((None, TM, Cin), lambda m, t: (t, m, 0)),
                pl.BlockSpec((None, Cin, Cout), lambda m, t: (t, 0, 0)),
                pl.BlockSpec((1, Cout), lambda m, t: (0, 0)),
            ],
            out_specs=pl.BlockSpec((TM, Cout), lambda m, t: (m, 0)),
            scratch_shapes=[pltpu.VMEM((TM, Cout), jnp.float32)],
        ),
        compiler_params=pltpu.CompilerParams(
            dimension_semantics=("parallel", "arbitrary")),
    )(taps, w_taps, bias)


# ---------------------------------------------------------------------------
# Glue: pad / dilate and per-tap strided-slice extraction (pure XLA slices)
# ---------------------------------------------------------------------------
def _extract_taps(xp, k, stride, hout, wout):
    """xp: prepared (padded / dilated) NHWC input -> (k*k, B*Hout*Wout, C)."""
    B, _, _, C = xp.shape
    slabs = []
    for dh in range(k):
        for dw in range(k):
            sl = lax.slice(
                xp,
                (0, dh, dw, 0),
                (B, dh + (hout - 1) * stride + 1, dw + (wout - 1) * stride + 1, C),
                (1, stride, stride, 1),
            )
            slabs.append(sl.reshape(B * hout * wout, C))
    return jnp.stack(slabs, axis=0)


def conv2d(x, w_taps, bias, *, k, stride, padding, relu, out_dtype=jnp.bfloat16):
    """x: (B,H,W,Cin) bf16 NHWC.  w_taps: (k*k, Cin, Cout) bf16."""
    B, H, W, _ = x.shape
    Cout = w_taps.shape[-1]
    hout = (H + 2 * padding - k) // stride + 1
    wout = (W + 2 * padding - k) // stride + 1
    xp = jnp.pad(x, ((0, 0), (padding, padding), (padding, padding), (0, 0)))
    taps = _extract_taps(xp, k, stride, hout, wout)
    y = conv_taps_matmul(taps, w_taps, bias, relu=relu, out_dtype=out_dtype)
    return y.reshape(B, hout, wout, Cout)


def conv_transpose2d(x, w_taps, bias, *, k, stride, padding, output_padding,
                     relu, out_dtype=jnp.bfloat16):
    """ConvTranspose2d as a stride-1 conv on the dilated / asym-padded input."""
    B, H, W, _ = x.shape
    Cout = w_taps.shape[-1]
    hout = (H - 1) * stride - 2 * padding + k + output_padding
    wout = (W - 1) * stride - 2 * padding + k + output_padding
    lo = k - 1 - padding
    hi = k - 1 - padding + output_padding
    xp = lax.pad(x, jnp.zeros((), x.dtype),
                 ((0, 0, 0), (lo, hi, stride - 1), (lo, hi, stride - 1), (0, 0, 0)))
    taps = _extract_taps(xp, k, 1, hout, wout)
    y = conv_taps_matmul(taps, w_taps, bias, relu=relu, out_dtype=out_dtype)
    return y.reshape(B, hout, wout, Cout)


# ---------------------------------------------------------------------------
# Parameters (PyTorch layouts, deterministic synthetic init) + one-time prep
# ---------------------------------------------------------------------------
def _conv_w_to_taps(w):
    """Conv2d weight (Cout, Cin, k, k) -> (k*k, Cin, Cout) bf16."""
    cout, cin, k, _ = w.shape
    return jnp.transpose(w, (2, 3, 1, 0)).reshape(k * k, cin, cout).astype(jnp.bfloat16)


def _convT_w_to_taps(w):
    """ConvTranspose2d weight (Cin, Cout, k, k) -> flipped (k*k, Cin, Cout) bf16."""
    cin, cout, k, _ = w.shape
    wf = w[:, :, ::-1, ::-1]
    return jnp.transpose(wf, (2, 3, 0, 1)).reshape(k * k, cin, cout).astype(jnp.bfloat16)


def init_params(key, input_channels, output_channels):
    ks = jax.random.split(key, 12)

    def w_conv(k_, cout, cin):
        return jax.random.normal(k_, (cout, cin, 3, 3), jnp.float32) * 0.05

    def w_convT(k_, cin, cout):
        return jax.random.normal(k_, (cin, cout, 3, 3), jnp.float32) * 0.05

    def b(k_, cout):
        return jax.random.normal(k_, (cout,), jnp.float32) * 0.05

    return dict(
        down1_w=w_conv(ks[0], 64, input_channels), down1_b=b(ks[1], 64),
        down2_w=w_conv(ks[2], 128, 64),            down2_b=b(ks[3], 128),
        down3_w=w_conv(ks[4], 256, 128),           down3_b=b(ks[5], 256),
        up1_w=w_convT(ks[6], 256, 128),            up1_b=b(ks[7], 128),
        up2_w=w_convT(ks[8], 128, 64),             up2_b=b(ks[9], 64),
        out_w=w_conv(ks[10], output_channels, 64), out_b=b(ks[11], output_channels),
    )


def prepare_params(raw):
    """One-time conversion to kernel layouts: bf16 tap weights + f32 row biases."""
    def bias(v):
        return v.reshape(1, -1).astype(jnp.float32)

    return dict(
        w1=_conv_w_to_taps(raw["down1_w"]),  b1=bias(raw["down1_b"]),
        w2=_conv_w_to_taps(raw["down2_w"]),  b2=bias(raw["down2_b"]),
        w3=_conv_w_to_taps(raw["down3_w"]),  b3=bias(raw["down3_b"]),
        w4=_convT_w_to_taps(raw["up1_w"]),   b4=bias(raw["up1_b"]),
        w5=_convT_w_to_taps(raw["up2_w"]),   b5=bias(raw["up2_b"]),
        w6=_conv_w_to_taps(raw["out_w"]),    b6=bias(raw["out_b"]),
    )


# ---------------------------------------------------------------------------
# Forward pass (matches FCNGeneratorSimple.forward, mixed bf16/f32 precision)
# ---------------------------------------------------------------------------
def fcn_generator_forward(x_nchw, p):
    x = jnp.transpose(x_nchw, (0, 2, 3, 1)).astype(jnp.bfloat16)   # NCHW -> NHWC

    x = conv2d(x, p["w1"], p["b1"], k=3, stride=1, padding=1, relu=True)
    x = conv2d(x, p["w2"], p["b2"], k=3, stride=2, padding=1, relu=True)
    x = conv2d(x, p["w3"], p["b3"], k=3, stride=2, padding=1, relu=True)
    x = conv_transpose2d(x, p["w4"], p["b4"], k=3, stride=2, padding=1,
                         output_padding=1, relu=True)
    x = conv_transpose2d(x, p["w5"], p["b5"], k=3, stride=2, padding=1,
                         output_padding=1, relu=True)
    x = conv2d(x, p["w6"], p["b6"], k=3, stride=1, padding=1, relu=False,
               out_dtype=jnp.float32)

    return jnp.transpose(x, (0, 3, 1, 2))                          # NHWC -> NCHW


# ---------------------------------------------------------------------------
# Pure-JAX f32 reference (for correctness check only)
# ---------------------------------------------------------------------------
def _ref_conv(x, w, b, stride, padding):
    y = lax.conv_general_dilated(
        x, w, window_strides=(stride, stride),
        padding=((padding, padding), (padding, padding)),
        dimension_numbers=("NCHW", "OIHW", "NCHW"))
    return y + b.reshape(1, -1, 1, 1)


def _ref_conv_transpose(x, w, b, stride, padding, output_padding):
    k = w.shape[-1]
    w_eq = jnp.transpose(w, (1, 0, 2, 3))[:, :, ::-1, ::-1]
    lo = k - 1 - padding
    hi = k - 1 - padding + output_padding
    y = lax.conv_general_dilated(
        x, w_eq, window_strides=(1, 1),
        padding=((lo, hi), (lo, hi)),
        lhs_dilation=(stride, stride),
        dimension_numbers=("NCHW", "OIHW", "NCHW"))
    return y + b.reshape(1, -1, 1, 1)


def reference_forward(x, raw):
    x = jax.nn.relu(_ref_conv(x, raw["down1_w"], raw["down1_b"], 1, 1))
    x = jax.nn.relu(_ref_conv(x, raw["down2_w"], raw["down2_b"], 2, 1))
    x = jax.nn.relu(_ref_conv(x, raw["down3_w"], raw["down3_b"], 2, 1))
    x = jax.nn.relu(_ref_conv_transpose(x, raw["up1_w"], raw["up1_b"], 2, 1, 1))
    x = jax.nn.relu(_ref_conv_transpose(x, raw["up2_w"], raw["up2_b"], 2, 1, 1))
    x = _ref_conv(x, raw["out_w"], raw["out_b"], 1, 1)
    return x


# ---------------------------------------------------------------------------
if __name__ == "__main__":
    key = jax.random.PRNGKey(0)
    k_param, k_data = jax.random.split(key)

    input_channels, output_channels = 4, 3
    x = jax.random.normal(k_data, (2, input_channels, 16, 16), jnp.float32)  # NCHW

    raw = init_params(k_param, input_channels, output_channels)
    params = prepare_params(raw)

    fwd = jax.jit(fcn_generator_forward)
    out = jax.block_until_ready(fwd(x, params))

    assert out.shape == (2, output_channels, 16, 16), out.shape
    assert bool(jnp.all(jnp.isfinite(out)))

    # Correctness vs f32 lax reference (kernel path is bf16 MXU / f32 accumulate).
    ref = jax.block_until_ready(jax.jit(reference_forward)(x, raw))
    max_err = float(jnp.max(jnp.abs(out - ref)))
    assert max_err < 5e-2, f"max |err| vs f32 reference = {max_err}"

    print("KERNEL_OK")
</pallas_src>

<mosaic_0001>
module attributes {stable_mosaic.version = 11 : i64} {
  func.func @_conv_tap_kernel(%arg0: i32, %arg1: i32, %arg2: memref<1x256x4xbf16, #tpu.memory_space<vmem>>, %arg3: memref<1x4x64xbf16, #tpu.memory_space<vmem>>, %arg4: memref<1x64xf32, #tpu.memory_space<vmem>>, %arg5: memref<256x64xbf16, #tpu.memory_space<vmem>>, %arg6: memref<256x64xf32, #tpu.memory_space<vmem>>) attributes {dimension_semantics = [#tpu.dimension_semantics<parallel>, #tpu.dimension_semantics<arbitrary>], iteration_bounds = array<i64: 2, 9>, scalar_prefetch = 0 : i64, scratch_operands = 1 : i64, tpu.core_type = #tpu.core_type<tc>, window_params = [{transform_indices = @transform_0, window_bounds = array<i64: 1, 256, 4>}, {transform_indices = @transform_1, window_bounds = array<i64: 1, 4, 64>}, {pipeline_mode = #tpu.pipeline_mode<synchronous>, transform_indices = @transform_2, window_bounds = array<i64: 1, 64>}, {transform_indices = @transform_3, window_bounds = array<i64: 256, 64>}]} {
    %c0_i32 = arith.constant 0 : i32
    %0 = arith.cmpi eq, %arg1, %c0_i32 : i32
    %1 = arith.extui %0 : i1 to i32
    %c0_i32_0 = arith.constant 0 : i32
    %2 = arith.cmpi ne, %1, %c0_i32_0 : i32
    scf.if %2 {
      %cst_11 = arith.constant 0.000000e+00 : f32
      %14 = vector.broadcast %cst_11 : f32 to vector<256x64xf32>
      %c0_12 = arith.constant 0 : index
      %c0_13 = arith.constant 0 : index
      %15 = vector.load %arg6[%c0_12, %c0_13] : memref<256x64xf32, #tpu.memory_space<vmem>>, vector<256x64xf32>
      tpu.vector_store %arg6[%c0_12, %c0_13], %14 {strides = array<i32>} : memref<256x64xf32, #tpu.memory_space<vmem>>, vector<256x64xf32>,
    } else {
    }
    %c0 = arith.constant 0 : index
    %c0_1 = arith.constant 0 : index
    %3 = vector.load %arg6[%c0, %c0_1] : memref<256x64xf32, #tpu.memory_space<vmem>>, vector<256x64xf32>
    %c0_2 = arith.constant 0 : index
    %c0_3 = arith.constant 0 : index
    %c0_4 = arith.constant 0 : index
    %4 = vector.load %arg2[%c0_2, %c0_3, %c0_4] : memref<1x256x4xbf16, #tpu.memory_space<vmem>>, vector<1x256x4xbf16>
    %5 = vector.shape_cast %4 : vector<1x256x4xbf16> to vector<256x4xbf16>
    %c0_5 = arith.constant 0 : index
    %c0_6 = arith.constant 0 : index
    %c0_7 = arith.constant 0 : index
    %6 = vector.load %arg3[%c0_5, %c0_6, %c0_7] : memref<1x4x64xbf16, #tpu.memory_space<vmem>>, vector<1x4x64xbf16>
    %7 = vector.shape_cast %6 : vector<1x4x64xbf16> to vector<4x64xbf16>
    %cst = arith.constant dense<0.000000e+00> : vector<256x64xf32>
    %8 = tpu.matmul %5, %7, %cst {dimension_numbers = #tpu.dot_dimension_numbers<[1], [0], [0], [1], [0, 0, 1, 1], [], []>} : vector<256x4xbf16>, vector<4x64xbf16>, vector<256x64xf32> -> vector<256x64xf32>
    %9 = arith.addf %3, %8 : vector<256x64xf32>
    %c0_8 = arith.constant 0 : index
    %c0_9 = arith.constant 0 : index
    %10 = vector.load %arg6[%c0_8, %c0_9] : memref<256x64xf32, #tpu.memory_space<vmem>>, vector<256x64xf32>
    tpu.vector_store %arg6[%c0_8, %c0_9], %9 {strides = array<i32>} : memref<256x64xf32, #tpu.memory_space<vmem>>, vector<256x64xf32>,
    %c8_i32 = arith.constant 8 : i32
    %11 = arith.cmpi eq, %arg1, %c8_i32 : i32
    %12 = arith.extui %11 : i1 to i32
    %c0_i32_10 = arith.constant 0 : i32
    %13 = arith.cmpi ne, %12, %c0_i32_10 : i32
    scf.if %13 {
      %c0_11 = arith.constant 0 : index
      %c0_12 = arith.constant 0 : index
      %14 = vector.load %arg6[%c0_11, %c0_12] : memref<256x64xf32, #tpu.memory_space<vmem>>, vector<256x64xf32>
      %c0_13 = arith.constant 0 : index
      %c0_14 = arith.constant 0 : index
      %15 = vector.load %arg4[%c0_13, %c0_14] : memref<1x64xf32, #tpu.memory_space<vmem>>, vector<1x64xf32>
      %16 = vector.broadcast %15 : vector<1x64xf32> to vector<256x64xf32>
      %17 = arith.addf %14, %16 : vector<256x64xf32>
      %cst_15 = arith.constant 0.000000e+00 : f32
      %18 = vector.broadcast %cst_15 : f32 to vector<256x64xf32>
      %19 = arith.maximumf %17, %18 : vector<256x64xf32>
      %20 = arith.truncf %19 : vector<256x64xf32> to vector<256x64xbf16>
      %c0_16 = arith.constant 0 : index
      %c0_17 = arith.constant 0 : index
      %21 = vector.load %arg5[%c0_16, %c0_17] : memref<256x64xbf16, #tpu.memory_space<vmem>>, vector<256x64xbf16>
      tpu.vector_store %arg5[%c0_16, %c0_17], %20 {strides = array<i32>} : memref<256x64xbf16, #tpu.memory_space<vmem>>, vector<256x64xbf16>,
    } else {
    }
    return
  }
  func.func @transform_0(%arg0: i32, %arg1: i32) -> (i32, i32, i32) {
    %c0_i32 = arith.constant 0 : i32
    %c0_i32_0 = arith.constant 0 : i32
    return %arg1, %arg0, %c0_i32 : i32, i32, i32
  }
  func.func @transform_1(%arg0: i32, %arg1: i32) -> (i32, i32, i32) {
    %c0_i32 = arith.constant 0 : i32
    %c0_i32_0 = arith.constant 0 : i32
    %c0_i32_1 = arith.constant 0 : i32
    return %arg1, %c0_i32, %c0_i32_0 : i32, i32, i32
  }
  func.func @transform_2(%arg0: i32, %arg1: i32) -> (i32, i32) {
    %c0_i32 = arith.constant 0 : i32
    %c0_i32_0 = arith.constant 0 : i32
    %c0_i32_1 = arith.constant 0 : i32
    return %c0_i32, %c0_i32_0 : i32, i32
  }
  func.func @transform_3(%arg0: i32, %arg1: i32) -> (i32, i32) {
    %c0_i32 = arith.constant 0 : i32
    %c0_i32_0 = arith.constant 0 : i32
    return %arg0, %c0_i32 : i32, i32
  }
}

module attributes {stable_mosaic.version = 11 : i64} {
  func.func @_conv_tap_kernel(%arg0: i32, %arg1: i32, %arg2: memref<1x128x64xbf16, #tpu.memory_space<vmem>>, %arg3: memref<1x64x128xbf16, #tpu.memory_space<vmem>>, %arg4: memref<1x128xf32, #tpu.memory_space<vmem>>, %arg5: memref<128x128xbf16, #tpu.memory_space<vmem>>, %arg6: memref<128x128xf32, #tpu.memory_space<vmem>>) attributes {dimension_semantics = [#tpu.dimension_semantics<parallel>, #tpu.dimension_semantics<arbitrary>], iteration_bounds = array<i64: 1, 9>, scalar_prefetch = 0 : i64, scratch_operands = 1 : i64, tpu.core_type = #tpu.core_type<tc>, window_params = [{transform_indices = @transform_0, window_bounds = array<i64: 1, 128, 64>}, {transform_indices = @transform_1, window_bounds = array<i64: 1, 64, 128>}, {pipeline_mode = #tpu.pipeline_mode<synchronous>, transform_indices = @transform_2, window_bounds = array<i64: 1, 128>}, {transform_indices = @transform_3, window_bounds = array<i64: 128, 128>}]} {
    %c0_i32 = arith.constant 0 : i32
    %0 = arith.cmpi eq, %arg1, %c0_i32 : i32
    %1 = arith.extui %0 : i1 to i32
    %c0_i32_0 = arith.constant 0 : i32
    %2 = arith.cmpi ne, %1, %c0_i32_0 : i32
    scf.if %2 {
      %cst_11 = arith.constant 0.000000e+00 : f32
      %14 = vector.broadcast %cst_11 : f32 to vector<128x128xf32>
      %c0_12 = arith.constant 0 : index
      %c0_13 = arith.constant 0 : index
      %15 = vector.load %arg6[%c0_12, %c0_13] : memref<128x128xf32, #tpu.memory_space<vmem>>, vector<128x128xf32>
      tpu.vector_store %arg6[%c0_12, %c0_13], %14 {strides = array<i32>} : memref<128x128xf32, #tpu.memory_space<vmem>>, vector<128x128xf32>,
    } else {
    }
    %c0 = arith.constant 0 : index
    %c0_1 = arith.constant 0 : index
    %3 = vector.load %arg6[%c0, %c0_1] : memref<128x128xf32, #tpu.memory_space<vmem>>, vector<128x128xf32>
    %c0_2 = arith.constant 0 : index
    %c0_3 = arith.constant 0 : index
    %c0_4 = arith.constant 0 : index
    %4 = vector.load %arg2[%c0_2, %c0_3, %c0_4] : memref<1x128x64xbf16, #tpu.memory_space<vmem>>, vector<1x128x64xbf16>
    %5 = vector.shape_cast %4 : vector<1x128x64xbf16> to vector<128x64xbf16>
    %c0_5 = arith.constant 0 : index
    %c0_6 = arith.constant 0 : index
    %c0_7 = arith.constant 0 : index
    %6 = vector.load %arg3[%c0_5, %c0_6, %c0_7] : memref<1x64x128xbf16, #tpu.memory_space<vmem>>, vector<1x64x128xbf16>
    %7 = vector.shape_cast %6 : vector<1x64x128xbf16> to vector<64x128xbf16>
    %cst = arith.constant dense<0.000000e+00> : vector<128x128xf32>
    %8 = tpu.matmul %5, %7, %cst {dimension_numbers = #tpu.dot_dimension_numbers<[1], [0], [0], [1], [0, 0, 1, 1], [], []>} : vector<128x64xbf16>, vector<64x128xbf16>, vector<128x128xf32> -> vector<128x128xf32>
    %9 = arith.addf %3, %8 : vector<128x128xf32>
    %c0_8 = arith.constant 0 : index
    %c0_9 = arith.constant 0 : index
    %10 = vector.load %arg6[%c0_8, %c0_9] : memref<128x128xf32, #tpu.memory_space<vmem>>, vector<128x128xf32>
    tpu.vector_store %arg6[%c0_8, %c0_9], %9 {strides = array<i32>} : memref<128x128xf32, #tpu.memory_space<vmem>>, vector<128x128xf32>,
    %c8_i32 = arith.constant 8 : i32
    %11 = arith.cmpi eq, %arg1, %c8_i32 : i32
    %12 = arith.extui %11 : i1 to i32
    %c0_i32_10 = arith.constant 0 : i32
    %13 = arith.cmpi ne, %12, %c0_i32_10 : i32
    scf.if %13 {
      %c0_11 = arith.constant 0 : index
      %c0_12 = arith.constant 0 : index
      %14 = vector.load %arg6[%c0_11, %c0_12] : memref<128x128xf32, #tpu.memory_space<vmem>>, vector<128x128xf32>
      %c0_13 = arith.constant 0 : index
      %c0_14 = arith.constant 0 : index
      %15 = vector.load %arg4[%c0_13, %c0_14] : memref<1x128xf32, #tpu.memory_space<vmem>>, vector<1x128xf32>
      %16 = vector.broadcast %15 : vector<1x128xf32> to vector<128x128xf32>
      %17 = arith.addf %14, %16 : vector<128x128xf32>
      %cst_15 = arith.constant 0.000000e+00 : f32
      %18 = vector.broadcast %cst_15 : f32 to vector<128x128xf32>
      %19 = arith.maximumf %17, %18 : vector<128x128xf32>
      %20 = arith.truncf %19 : vector<128x128xf32> to vector<128x128xbf16>
      %c0_16 = arith.constant 0 : index
      %c0_17 = arith.constant 0 : index
      %21 = vector.load %arg5[%c0_16, %c0_17] : memref<128x128xbf16, #tpu.memory_space<vmem>>, vector<128x128xbf16>
      tpu.vector_store %arg5[%c0_16, %c0_17], %20 {strides = array<i32>} : memref<128x128xbf16, #tpu.memory_space<vmem>>, vector<128x128xbf16>,
    } else {
    }
    return
  }
  func.func @transform_0(%arg0: i32, %arg1: i32) -> (i32, i32, i32) {
    %c0_i32 = arith.constant 0 : i32
    %c0_i32_0 = arith.constant 0 : i32
    return %arg1, %arg0, %c0_i32 : i32, i32, i32
  }
  func.func @transform_1(%arg0: i32, %arg1: i32) -> (i32, i32, i32) {
    %c0_i32 = arith.constant 0 : i32
    %c0_i32_0 = arith.constant 0 : i32
    %c0_i32_1 = arith.constant 0 : i32
    return %arg1, %c0_i32, %c0_i32_0 : i32, i32, i32
  }
  func.func @transform_2(%arg0: i32, %arg1: i32) -> (i32, i32) {
    %c0_i32 = arith.constant 0 : i32
    %c0_i32_0 = arith.constant 0 : i32
    %c0_i32_1 = arith.constant 0 : i32
    return %c0_i32, %c0_i32_0 : i32, i32
  }
  func.func @transform_3(%arg0: i32, %arg1: i32) -> (i32, i32) {
    %c0_i32 = arith.constant 0 : i32
    %c0_i32_0 = arith.constant 0 : i32
    return %arg0, %c0_i32 : i32, i32
  }
}

module attributes {stable_mosaic.version = 11 : i64} {
  func.func @_conv_tap_kernel(%arg0: i32, %arg1: i32, %arg2: memref<1x32x128xbf16, #tpu.memory_space<vmem>>, %arg3: memref<1x128x256xbf16, #tpu.memory_space<vmem>>, %arg4: memref<1x256xf32, #tpu.memory_space<vmem>>, %arg5: memref<32x256xbf16, #tpu.memory_space<vmem>>, %arg6: memref<32x256xf32, #tpu.memory_space<vmem>>) attributes {dimension_semantics = [#tpu.dimension_semantics<parallel>, #tpu.dimension_semantics<arbitrary>], iteration_bounds = array<i64: 1, 9>, scalar_prefetch = 0 : i64, scratch_operands = 1 : i64, tpu.core_type = #tpu.core_type<tc>, window_params = [{transform_indices = @transform_0, window_bounds = array<i64: 1, 32, 128>}, {transform_indices = @transform_1, window_bounds = array<i64: 1, 128, 256>}, {pipeline_mode = #tpu.pipeline_mode<synchronous>, transform_indices = @transform_2, window_bounds = array<i64: 1, 256>}, {transform_indices = @transform_3, window_bounds = array<i64: 32, 256>}]} {
    %c0_i32 = arith.constant 0 : i32
    %0 = arith.cmpi eq, %arg1, %c0_i32 : i32
    %1 = arith.extui %0 : i1 to i32
    %c0_i32_0 = arith.constant 0 : i32
    %2 = arith.cmpi ne, %1, %c0_i32_0 : i32
    scf.if %2 {
      %cst_11 = arith.constant 0.000000e+00 : f32
      %14 = vector.broadcast %cst_11 : f32 to vector<32x256xf32>
      %c0_12 = arith.constant 0 : index
      %c0_13 = arith.constant 0 : index
      %15 = vector.load %arg6[%c0_12, %c0_13] : memref<32x256xf32, #tpu.memory_space<vmem>>, vector<32x256xf32>
      tpu.vector_store %arg6[%c0_12, %c0_13], %14 {strides = array<i32>} : memref<32x256xf32, #tpu.memory_space<vmem>>, vector<32x256xf32>,
    } else {
    }
    %c0 = arith.constant 0 : index
    %c0_1 = arith.constant 0 : index
    %3 = vector.load %arg6[%c0, %c0_1] : memref<32x256xf32, #tpu.memory_space<vmem>>, vector<32x256xf32>
    %c0_2 = arith.constant 0 : index
    %c0_3 = arith.constant 0 : index
    %c0_4 = arith.constant 0 : index
    %4 = vector.load %arg2[%c0_2, %c0_3, %c0_4] : memref<1x32x128xbf16, #tpu.memory_space<vmem>>, vector<1x32x128xbf16>
    %5 = vector.shape_cast %4 : vector<1x32x128xbf16> to vector<32x128xbf16>
    %c0_5 = arith.constant 0 : index
    %c0_6 = arith.constant 0 : index
    %c0_7 = arith.constant 0 : index
    %6 = vector.load %arg3[%c0_5, %c0_6, %c0_7] : memref<1x128x256xbf16, #tpu.memory_space<vmem>>, vector<1x128x256xbf16>
    %7 = vector.shape_cast %6 : vector<1x128x256xbf16> to vector<128x256xbf16>
    %cst = arith.constant dense<0.000000e+00> : vector<32x256xf32>
    %8 = tpu.matmul %5, %7, %cst {dimension_numbers = #tpu.dot_dimension_numbers<[1], [0], [0], [1], [0, 0, 1, 1], [], []>} : vector<32x128xbf16>, vector<128x256xbf16>, vector<32x256xf32> -> vector<32x256xf32>
    %9 = arith.addf %3, %8 : vector<32x256xf32>
    %c0_8 = arith.constant 0 : index
    %c0_9 = arith.constant 0 : index
    %10 = vector.load %arg6[%c0_8, %c0_9] : memref<32x256xf32, #tpu.memory_space<vmem>>, vector<32x256xf32>
    tpu.vector_store %arg6[%c0_8, %c0_9], %9 {strides = array<i32>} : memref<32x256xf32, #tpu.memory_space<vmem>>, vector<32x256xf32>,
    %c8_i32 = arith.constant 8 : i32
    %11 = arith.cmpi eq, %arg1, %c8_i32 : i32
    %12 = arith.extui %11 : i1 to i32
    %c0_i32_10 = arith.constant 0 : i32
    %13 = arith.cmpi ne, %12, %c0_i32_10 : i32
    scf.if %13 {
      %c0_11 = arith.constant 0 : index
      %c0_12 = arith.constant 0 : index
      %14 = vector.load %arg6[%c0_11, %c0_12] : memref<32x256xf32, #tpu.memory_space<vmem>>, vector<32x256xf32>
      %c0_13 = arith.constant 0 : index
      %c0_14 = arith.constant 0 : index
      %15 = vector.load %arg4[%c0_13, %c0_14] : memref<1x256xf32, #tpu.memory_space<vmem>>, vector<1x256xf32>
      %16 = vector.broadcast %15 : vector<1x256xf32> to vector<32x256xf32>
      %17 = arith.addf %14, %16 : vector<32x256xf32>
      %cst_15 = arith.constant 0.000000e+00 : f32
      %18 = vector.broadcast %cst_15 : f32 to vector<32x256xf32>
      %19 = arith.maximumf %17, %18 : vector<32x256xf32>
      %20 = arith.truncf %19 : vector<32x256xf32> to vector<32x256xbf16>
      %c0_16 = arith.constant 0 : index
      %c0_17 = arith.constant 0 : index
      %21 = vector.load %arg5[%c0_16, %c0_17] : memref<32x256xbf16, #tpu.memory_space<vmem>>, vector<32x256xbf16>
      tpu.vector_store %arg5[%c0_16, %c0_17], %20 {strides = array<i32>} : memref<32x256xbf16, #tpu.memory_space<vmem>>, vector<32x256xbf16>,
    } else {
    }
    return
  }
  func.func @transform_0(%arg0: i32, %arg1: i32) -> (i32, i32, i32) {
    %c0_i32 = arith.constant 0 : i32
    %c0_i32_0 = arith.constant 0 : i32
    return %arg1, %arg0, %c0_i32 : i32, i32, i32
  }
  func.func @transform_1(%arg0: i32, %arg1: i32) -> (i32, i32, i32) {
    %c0_i32 = arith.constant 0 : i32
    %c0_i32_0 = arith.constant 0 : i32
    %c0_i32_1 = arith.constant 0 : i32
    return %arg1, %c0_i32, %c0_i32_0 : i32, i32, i32
  }
  func.func @transform_2(%arg0: i32, %arg1: i32) -> (i32, i32) {
    %c0_i32 = arith.constant 0 : i32
    %c0_i32_0 = arith.constant 0 : i32
    %c0_i32_1 = arith.constant 0 : i32
    return %c0_i32, %c0_i32_0 : i32, i32
  }
  func.func @transform_3(%arg0: i32, %arg1: i32) -> (i32, i32) {
    %c0_i32 = arith.constant 0 : i32
    %c0_i32_0 = arith.constant 0 : i32
    return %arg0, %c0_i32 : i32, i32
  }
}

module attributes {stable_mosaic.version = 11 : i64} {
  func.func @_conv_tap_kernel(%arg0: i32, %arg1: i32, %arg2: memref<1x128x256xbf16, #tpu.memory_space<vmem>>, %arg3: memref<1x256x128xbf16, #tpu.memory_space<vmem>>, %arg4: memref<1x128xf32, #tpu.memory_space<vmem>>, %arg5: memref<128x128xbf16, #tpu.memory_space<vmem>>, %arg6: memref<128x128xf32, #tpu.memory_space<vmem>>) attributes {dimension_semantics = [#tpu.dimension_semantics<parallel>, #tpu.dimension_semantics<arbitrary>], iteration_bounds = array<i64: 1, 9>, scalar_prefetch = 0 : i64, scratch_operands = 1 : i64, tpu.core_type = #tpu.core_type<tc>, window_params = [{transform_indices = @transform_0, window_bounds = array<i64: 1, 128, 256>}, {transform_indices = @transform_1, window_bounds = array<i64: 1, 256, 128>}, {pipeline_mode = #tpu.pipeline_mode<synchronous>, transform_indices = @transform_2, window_bounds = array<i64: 1, 128>}, {transform_indices = @transform_3, window_bounds = array<i64: 128, 128>}]} {
    %c0_i32 = arith.constant 0 : i32
    %0 = arith.cmpi eq, %arg1, %c0_i32 : i32
    %1 = arith.extui %0 : i1 to i32
    %c0_i32_0 = arith.constant 0 : i32
    %2 = arith.cmpi ne, %1, %c0_i32_0 : i32
    scf.if %2 {
      %cst_11 = arith.constant 0.000000e+00 : f32
      %14 = vector.broadcast %cst_11 : f32 to vector<128x128xf32>
      %c0_12 = arith.constant 0 : index
      %c0_13 = arith.constant 0 : index
      %15 = vector.load %arg6[%c0_12, %c0_13] : memref<128x128xf32, #tpu.memory_space<vmem>>, vector<128x128xf32>
      tpu.vector_store %arg6[%c0_12, %c0_13], %14 {strides = array<i32>} : memref<128x128xf32, #tpu.memory_space<vmem>>, vector<128x128xf32>,
    } else {
    }
    %c0 = arith.constant 0 : index
    %c0_1 = arith.constant 0 : index
    %3 = vector.load %arg6[%c0, %c0_1] : memref<128x128xf32, #tpu.memory_space<vmem>>, vector<128x128xf32>
    %c0_2 = arith.constant 0 : index
    %c0_3 = arith.constant 0 : index
    %c0_4 = arith.constant 0 : index
    %4 = vector.load %arg2[%c0_2, %c0_3, %c0_4] : memref<1x128x256xbf16, #tpu.memory_space<vmem>>, vector<1x128x256xbf16>
    %5 = vector.shape_cast %4 : vector<1x128x256xbf16> to vector<128x256xbf16>
    %c0_5 = arith.constant 0 : index
    %c0_6 = arith.constant 0 : index
    %c0_7 = arith.constant 0 : index
    %6 = vector.load %arg3[%c0_5, %c0_6, %c0_7] : memref<1x256x128xbf16, #tpu.memory_space<vmem>>, vector<1x256x128xbf16>
    %7 = vector.shape_cast %6 : vector<1x256x128xbf16> to vector<256x128xbf16>
    %cst = arith.constant dense<0.000000e+00> : vector<128x128xf32>
    %8 = tpu.matmul %5, %7, %cst {dimension_numbers = #tpu.dot_dimension_numbers<[1], [0], [0], [1], [0, 0, 1, 1], [], []>} : vector<128x256xbf16>, vector<256x128xbf16>, vector<128x128xf32> -> vector<128x128xf32>
    %9 = arith.addf %3, %8 : vector<128x128xf32>
    %c0_8 = arith.constant 0 : index
    %c0_9 = arith.constant 0 : index
    %10 = vector.load %arg6[%c0_8, %c0_9] : memref<128x128xf32, #tpu.memory_space<vmem>>, vector<128x128xf32>
    tpu.vector_store %arg6[%c0_8, %c0_9], %9 {strides = array<i32>} : memref<128x128xf32, #tpu.memory_space<vmem>>, vector<128x128xf32>,
    %c8_i32 = arith.constant 8 : i32
    %11 = arith.cmpi eq, %arg1, %c8_i32 : i32
    %12 = arith.extui %11 : i1 to i32
    %c0_i32_10 = arith.constant 0 : i32
    %13 = arith.cmpi ne, %12, %c0_i32_10 : i32
    scf.if %13 {
      %c0_11 = arith.constant 0 : index
      %c0_12 = arith.constant 0 : index
      %14 = vector.load %arg6[%c0_11, %c0_12] : memref<128x128xf32, #tpu.memory_space<vmem>>, vector<128x128xf32>
      %c0_13 = arith.constant 0 : index
      %c0_14 = arith.constant 0 : index
      %15 = vector.load %arg4[%c0_13, %c0_14] : memref<1x128xf32, #tpu.memory_space<vmem>>, vector<1x128xf32>
      %16 = vector.broadcast %15 : vector<1x128xf32> to vector<128x128xf32>
      %17 = arith.addf %14, %16 : vector<128x128xf32>
      %cst_15 = arith.constant 0.000000e+00 : f32
      %18 = vector.broadcast %cst_15 : f32 to vector<128x128xf32>
      %19 = arith.maximumf %17, %18 : vector<128x128xf32>
      %20 = arith.truncf %19 : vector<128x128xf32> to vector<128x128xbf16>
      %c0_16 = arith.constant 0 : index
      %c0_17 = arith.constant 0 : index
      %21 = vector.load %arg5[%c0_16, %c0_17] : memref<128x128xbf16, #tpu.memory_space<vmem>>, vector<128x128xbf16>
      tpu.vector_store %arg5[%c0_16, %c0_17], %20 {strides = array<i32>} : memref<128x128xbf16, #tpu.memory_space<vmem>>, vector<128x128xbf16>,
    } else {
    }
    return
  }
  func.func @transform_0(%arg0: i32, %arg1: i32) -> (i32, i32, i32) {
    %c0_i32 = arith.constant 0 : i32
    %c0_i32_0 = arith.constant 0 : i32
    return %arg1, %arg0, %c0_i32 : i32, i32, i32
  }
  func.func @transform_1(%arg0: i32, %arg1: i32) -> (i32, i32, i32) {
    %c0_i32 = arith.constant 0 : i32
    %c0_i32_0 = arith.constant 0 : i32
    %c0_i32_1 = arith.constant 0 : i32
    return %arg1, %c0_i32, %c0_i32_0 : i32, i32, i32
  }
  func.func @transform_2(%arg0: i32, %arg1: i32) -> (i32, i32) {
    %c0_i32 = arith.constant 0 : i32
    %c0_i32_0 = arith.constant 0 : i32
    %c0_i32_1 = arith.constant 0 : i32
    return %c0_i32, %c0_i32_0 : i32, i32
  }
  func.func @transform_3(%arg0: i32, %arg1: i32) -> (i32, i32) {
    %c0_i32 = arith.constant 0 : i32
    %c0_i32_0 = arith.constant 0 : i32
    return %arg0, %c0_i32 : i32, i32
  }
}

module attributes {stable_mosaic.version = 11 : i64} {
  func.func @_conv_tap_kernel(%arg0: i32, %arg1: i32, %arg2: memref<1x256x128xbf16, #tpu.memory_space<vmem>>, %arg3: memref<1x128x64xbf16, #tpu.memory_space<vmem>>, %arg4: memref<1x64xf32, #tpu.memory_space<vmem>>, %arg5: memref<256x64xbf16, #tpu.memory_space<vmem>>, %arg6: memref<256x64xf32, #tpu.memory_space<vmem>>) attributes {dimension_semantics = [#tpu.dimension_semantics<parallel>, #tpu.dimension_semantics<arbitrary>], iteration_bounds = array<i64: 2, 9>, scalar_prefetch = 0 : i64, scratch_operands = 1 : i64, tpu.core_type = #tpu.core_type<tc>, window_params = [{transform_indices = @transform_0, window_bounds = array<i64: 1, 256, 128>}, {transform_indices = @transform_1, window_bounds = array<i64: 1, 128, 64>}, {pipeline_mode = #tpu.pipeline_mode<synchronous>, transform_indices = @transform_2, window_bounds = array<i64: 1, 64>}, {transform_indices = @transform_3, window_bounds = array<i64: 256, 64>}]} {
    %c0_i32 = arith.constant 0 : i32
    %0 = arith.cmpi eq, %arg1, %c0_i32 : i32
    %1 = arith.extui %0 : i1 to i32
    %c0_i32_0 = arith.constant 0 : i32
    %2 = arith.cmpi ne, %1, %c0_i32_0 : i32
    scf.if %2 {
      %cst_11 = arith.constant 0.000000e+00 : f32
      %14 = vector.broadcast %cst_11 : f32 to vector<256x64xf32>
      %c0_12 = arith.constant 0 : index
      %c0_13 = arith.constant 0 : index
      %15 = vector.load %arg6[%c0_12, %c0_13] : memref<256x64xf32, #tpu.memory_space<vmem>>, vector<256x64xf32>
      tpu.vector_store %arg6[%c0_12, %c0_13], %14 {strides = array<i32>} : memref<256x64xf32, #tpu.memory_space<vmem>>, vector<256x64xf32>,
    } else {
    }
    %c0 = arith.constant 0 : index
    %c0_1 = arith.constant 0 : index
    %3 = vector.load %arg6[%c0, %c0_1] : memref<256x64xf32, #tpu.memory_space<vmem>>, vector<256x64xf32>
    %c0_2 = arith.constant 0 : index
    %c0_3 = arith.constant 0 : index
    %c0_4 = arith.constant 0 : index
    %4 = vector.load %arg2[%c0_2, %c0_3, %c0_4] : memref<1x256x128xbf16, #tpu.memory_space<vmem>>, vector<1x256x128xbf16>
    %5 = vector.shape_cast %4 : vector<1x256x128xbf16> to vector<256x128xbf16>
    %c0_5 = arith.constant 0 : index
    %c0_6 = arith.constant 0 : index
    %c0_7 = arith.constant 0 : index
    %6 = vector.load %arg3[%c0_5, %c0_6, %c0_7] : memref<1x128x64xbf16, #tpu.memory_space<vmem>>, vector<1x128x64xbf16>
    %7 = vector.shape_cast %6 : vector<1x128x64xbf16> to vector<128x64xbf16>
    %cst = arith.constant dense<0.000000e+00> : vector<256x64xf32>
    %8 = tpu.matmul %5, %7, %cst {dimension_numbers = #tpu.dot_dimension_numbers<[1], [0], [0], [1], [0, 0, 1, 1], [], []>} : vector<256x128xbf16>, vector<128x64xbf16>, vector<256x64xf32> -> vector<256x64xf32>
    %9 = arith.addf %3, %8 : vector<256x64xf32>
    %c0_8 = arith.constant 0 : index
    %c0_9 = arith.constant 0 : index
    %10 = vector.load %arg6[%c0_8, %c0_9] : memref<256x64xf32, #tpu.memory_space<vmem>>, vector<256x64xf32>
    tpu.vector_store %arg6[%c0_8, %c0_9], %9 {strides = array<i32>} : memref<256x64xf32, #tpu.memory_space<vmem>>, vector<256x64xf32>,
    %c8_i32 = arith.constant 8 : i32
    %11 = arith.cmpi eq, %arg1, %c8_i32 : i32
    %12 = arith.extui %11 : i1 to i32
    %c0_i32_10 = arith.constant 0 : i32
    %13 = arith.cmpi ne, %12, %c0_i32_10 : i32
    scf.if %13 {
      %c0_11 = arith.constant 0 : index
      %c0_12 = arith.constant 0 : index
      %14 = vector.load %arg6[%c0_11, %c0_12] : memref<256x64xf32, #tpu.memory_space<vmem>>, vector<256x64xf32>
      %c0_13 = arith.constant 0 : index
      %c0_14 = arith.constant 0 : index
      %15 = vector.load %arg4[%c0_13, %c0_14] : memref<1x64xf32, #tpu.memory_space<vmem>>, vector<1x64xf32>
      %16 = vector.broadcast %15 : vector<1x64xf32> to vector<256x64xf32>
      %17 = arith.addf %14, %16 : vector<256x64xf32>
      %cst_15 = arith.constant 0.000000e+00 : f32
      %18 = vector.broadcast %cst_15 : f32 to vector<256x64xf32>
      %19 = arith.maximumf %17, %18 : vector<256x64xf32>
      %20 = arith.truncf %19 : vector<256x64xf32> to vector<256x64xbf16>
      %c0_16 = arith.constant 0 : index
      %c0_17 = arith.constant 0 : index
      %21 = vector.load %arg5[%c0_16, %c0_17] : memref<256x64xbf16, #tpu.memory_space<vmem>>, vector<256x64xbf16>
      tpu.vector_store %arg5[%c0_16, %c0_17], %20 {strides = array<i32>} : memref<256x64xbf16, #tpu.memory_space<vmem>>, vector<256x64xbf16>,
    } else {
    }
    return
  }
  func.func @transform_0(%arg0: i32, %arg1: i32) -> (i32, i32, i32) {
    %c0_i32 = arith.constant 0 : i32
    %c0_i32_0 = arith.constant 0 : i32
    return %arg1, %arg0, %c0_i32 : i32, i32, i32
  }
  func.func @transform_1(%arg0: i32, %arg1: i32) -> (i32, i32, i32) {
    %c0_i32 = arith.constant 0 : i32
    %c0_i32_0 = arith.constant 0 : i32
    %c0_i32_1 = arith.constant 0 : i32
    return %arg1, %c0_i32, %c0_i32_0 : i32, i32, i32
  }
  func.func @transform_2(%arg0: i32, %arg1: i32) -> (i32, i32) {
    %c0_i32 = arith.constant 0 : i32
    %c0_i32_0 = arith.constant 0 : i32
    %c0_i32_1 = arith.constant 0 : i32
    return %c0_i32, %c0_i32_0 : i32, i32
  }
  func.func @transform_3(%arg0: i32, %arg1: i32) -> (i32, i32) {
    %c0_i32 = arith.constant 0 : i32
    %c0_i32_0 = arith.constant 0 : i32
    return %arg0, %c0_i32 : i32, i32
  }
}

module attributes {stable_mosaic.version = 11 : i64} {
  func.func @_conv_tap_kernel(%arg0: i32, %arg1: i32, %arg2: memref<1x256x64xbf16, #tpu.memory_space<vmem>>, %arg3: memref<1x64x3xbf16, #tpu.memory_space<vmem>>, %arg4: memref<1x3xf32, #tpu.memory_space<vmem>>, %arg5: memref<256x3xf32, #tpu.memory_space<vmem>>, %arg6: memref<256x3xf32, #tpu.memory_space<vmem>>) attributes {dimension_semantics = [#tpu.dimension_semantics<parallel>, #tpu.dimension_semantics<arbitrary>], iteration_bounds = array<i64: 2, 9>, scalar_prefetch = 0 : i64, scratch_operands = 1 : i64, tpu.core_type = #tpu.core_type<tc>, window_params = [{transform_indices = @transform_0, window_bounds = array<i64: 1, 256, 64>}, {transform_indices = @transform_1, window_bounds = array<i64: 1, 64, 3>}, {pipeline_mode = #tpu.pipeline_mode<synchronous>, transform_indices = @transform_2, window_bounds = array<i64: 1, 3>}, {transform_indices = @transform_3, window_bounds = array<i64: 256, 3>}]} {
    %c0_i32 = arith.constant 0 : i32
    %0 = arith.cmpi eq, %arg1, %c0_i32 : i32
    %1 = arith.extui %0 : i1 to i32
    %c0_i32_0 = arith.constant 0 : i32
    %2 = arith.cmpi ne, %1, %c0_i32_0 : i32
    scf.if %2 {
      %cst_11 = arith.constant 0.000000e+00 : f32
      %14 = vector.broadcast %cst_11 : f32 to vector<256x3xf32>
      %c0_12 = arith.constant 0 : index
      %c0_13 = arith.constant 0 : index
      %15 = vector.load %arg6[%c0_12, %c0_13] : memref<256x3xf32, #tpu.memory_space<vmem>>, vector<256x3xf32>
      tpu.vector_store %arg6[%c0_12, %c0_13], %14 {strides = array<i32>} : memref<256x3xf32, #tpu.memory_space<vmem>>, vector<256x3xf32>,
    } else {
    }
    %c0 = arith.constant 0 : index
    %c0_1 = arith.constant 0 : index
    %3 = vector.load %arg6[%c0, %c0_1] : memref<256x3xf32, #tpu.memory_space<vmem>>, vector<256x3xf32>
    %c0_2 = arith.constant 0 : index
    %c0_3 = arith.constant 0 : index
    %c0_4 = arith.constant 0 : index
    %4 = vector.load %arg2[%c0_2, %c0_3, %c0_4] : memref<1x256x64xbf16, #tpu.memory_space<vmem>>, vector<1x256x64xbf16>
    %5 = vector.shape_cast %4 : vector<1x256x64xbf16> to vector<256x64xbf16>
    %c0_5 = arith.constant 0 : index
    %c0_6 = arith.constant 0 : index
    %c0_7 = arith.constant 0 : index
    %6 = vector.load %arg3[%c0_5, %c0_6, %c0_7] : memref<1x64x3xbf16, #tpu.memory_space<vmem>>, vector<1x64x3xbf16>
    %7 = vector.shape_cast %6 : vector<1x64x3xbf16> to vector<64x3xbf16>
    %cst = arith.constant dense<0.000000e+00> : vector<256x3xf32>
    %8 = tpu.matmul %5, %7, %cst {dimension_numbers = #tpu.dot_dimension_numbers<[1], [0], [0], [1], [0, 0, 1, 1], [], []>} : vector<256x64xbf16>, vector<64x3xbf16>, vector<256x3xf32> -> vector<256x3xf32>
    %9 = arith.addf %3, %8 : vector<256x3xf32>
    %c0_8 = arith.constant 0 : index
    %c0_9 = arith.constant 0 : index
    %10 = vector.load %arg6[%c0_8, %c0_9] : memref<256x3xf32, #tpu.memory_space<vmem>>, vector<256x3xf32>
    tpu.vector_store %arg6[%c0_8, %c0_9], %9 {strides = array<i32>} : memref<256x3xf32, #tpu.memory_space<vmem>>, vector<256x3xf32>,
    %c8_i32 = arith.constant 8 : i32
    %11 = arith.cmpi eq, %arg1, %c8_i32 : i32
    %12 = arith.extui %11 : i1 to i32
    %c0_i32_10 = arith.constant 0 : i32
    %13 = arith.cmpi ne, %12, %c0_i32_10 : i32
    scf.if %13 {
      %c0_11 = arith.constant 0 : index
      %c0_12 = arith.constant 0 : index
      %14 = vector.load %arg6[%c0_11, %c0_12] : memref<256x3xf32, #tpu.memory_space<vmem>>, vector<256x3xf32>
      %c0_13 = arith.constant 0 : index
      %c0_14 = arith.constant 0 : index
      %15 = vector.load %arg4[%c0_13, %c0_14] : memref<1x3xf32, #tpu.memory_space<vmem>>, vector<1x3xf32>
      %16 = vector.broadcast %15 : vector<1x3xf32> to vector<256x3xf32>
      %17 = arith.addf %14, %16 : vector<256x3xf32>
      %c0_15 = arith.constant 0 : index
      %c0_16 = arith.constant 0 : index
      %18 = vector.load %arg5[%c0_15, %c0_16] : memref<256x3xf32, #tpu.memory_space<vmem>>, vector<256x3xf32>
      tpu.vector_store %arg5[%c0_15, %c0_16], %17 {strides = array<i32>} : memref<256x3xf32, #tpu.memory_space<vmem>>, vector<256x3xf32>,
    } else {
    }
    return
  }
  func.func @transform_0(%arg0: i32, %arg1: i32) -> (i32, i32, i32) {
    %c0_i32 = arith.constant 0 : i32
    %c0_i32_0 = arith.constant 0 : i32
    return %arg1, %arg0, %c0_i32 : i32, i32, i32
  }
  func.func @transform_1(%arg0: i32, %arg1: i32) -> (i32, i32, i32) {
    %c0_i32 = arith.constant 0 : i32
    %c0_i32_0 = arith.constant 0 : i32
    %c0_i32_1 = arith.constant 0 : i32
    return %arg1, %c0_i32, %c0_i32_0 : i32, i32, i32
  }
  func.func @transform_2(%arg0: i32, %arg1: i32) -> (i32, i32) {
    %c0_i32 = arith.constant 0 : i32
    %c0_i32_0 = arith.constant 0 : i32
    %c0_i32_1 = arith.constant 0 : i32
    return %c0_i32, %c0_i32_0 : i32, i32
  }
  func.func @transform_3(%arg0: i32, %arg1: i32) -> (i32, i32) {
    %c0_i32 = arith.constant 0 : i32
    %c0_i32_0 = arith.constant 0 : i32
    return %arg0, %c0_i32 : i32, i32
  }
}

</mosaic_0001>

<llo_original>
// kernel: fcn_generator_forward.6
$region0: #{fcn_generator_forward.6}
  #allocation0 [shape = 'u32[]', space=smem, size = 0x4, offset = 0x4, fixed_abs, tag = 'smem constant byte address 0x4 - core index']
  #allocation1 [shape = 'u32[144,128]{1,0:T(1,128)}', space=vmem, size = 0x12000, scoped, tag = 'internal scratch']
  #allocation2 [shape = 'f32[256,64]{1,0:T(8,128)}', space=vmem, size = 0x20000, scoped, tag = 'scratch operand']
  %s0 = inlined_call_operand.vmem [shape: bf16[9,512,4], index: 0, kind: input, shape index: {}]
  %s1 = inlined_call_operand.vmem [shape: bf16[9,4,64], index: 1, kind: input, shape index: {}]
  %s2 = inlined_call_operand.vmem [shape: f32[1,64], index: 2, kind: input, shape index: {}]
  %s3 = inlined_call_operand.vmem [shape: bf16[512,64], index: 3, kind: output, shape index: {}]
  %s4 = sld [smem:[#allocation0]]
  $region53: #{fcn_generator_forward.6} parent=0
    _
  %s6 = ssub.s32 1, %s4
  %s7 = scalar_select 0, %s6, %s4
  loop: start=0, step=1, limit=20
  $region2: #{fcn_generator_forward.6} parent=0 // loop_pre_header
    _
  $region3: #{fcn_generator_forward.6} parent=0 // loop_header
    %s9 = sphi 0, %s13
    %p10 = scmp.ge.s32.totalorder %s9, 20
    %s16 = sphi 0, %s28
    %s17 = sphi 0, %s24
    %s18 = sphi 0, %s16
    %s19 = sphi 0, %s17
    %s20 = sphi 0, %s18
    %s21 = sphi 0, %s19
    %s33 = sphi 0, %s35
    %s36 = sphi 0, %s33
    %s37 = sphi 0, %s36
    %s53 = sphi 0, %s37
    %s59 = sphi 0, %s61
    %s62 = sphi 0, %s59
    %s63 = sphi 0, %s62
    %s79 = sphi 0, %s63
    %s83 = sphi 0, %s83
    %s85 = sphi 0, %s83
    %s86 = sphi 0, %s85
    %s100 = sphi 0, %s86
    %s106 = sphi 0, %s108
    %s109 = sphi 0, %s106
    %s110 = sphi 0, %s109
    %s126 = sphi 0, %s110
  $region4: #{fcn_generator_forward.6} parent=0 // loop_header_branch
    %12 = sbr.rel (%p10) target = $region8
  $region5: #{fcn_generator_forward.6} parent=0 // loop_body
    %s14 = ssub.s32 %s9, 1
    %s15 = ssub.s32 %s9, 2
    %s22 = sadd.s32 1, %s17
    %p23 = scmp.ge.s32.totalorder %s22, 9
    %s24 = scalar_select %p23, 0, %s22
    %s25 = sadd.s32 1, %s16
    %s26 = scalar_select %p23, %s25, %s16
    %p27 = scmp.ge.s32.totalorder %s26, 2
    %s28 = scalar_select %p27, 0, %s26
    %s29 = ssub.s32 %s17, %s24
    %s30 = ssub.s32 %s16, %s28
    %s31 = sor.u32 %s29, %s30
    %p32 = scmp.eq.s32.totalorder %s31, 0
    %s34 = sadd.s32 %s33, 1
    %s35 = scalar_select %p32, %s33, %s34
    %p38 = pneg %p32
    %p39 = scmp.eq.s32.totalorder %s9, 17
    %p40 = por %p38, %p39
    %p41 = scmp.ne.s32.totalorder %s33, %s36
    %p42 = scmp.eq.s32.totalorder %s9, 0
    %p43 = por %p41, %p42
    %p44 = scmp.ne.s32.totalorder %s33, %s36
    %p45 = scmp.eq.s32.totalorder %s14, 17
    %p46 = por %p44, %p45
    %p47 = scmp.ne.s32.totalorder %s36, %s37
    %p48 = scmp.eq.s32.totalorder %s14, 0
    %p49 = por %p47, %p48
    %p50 = scmp.ne.s32.totalorder %s36, %s37
    %p51 = scmp.eq.s32.totalorder %s15, 17
    %p52 = por %p50, %p51
    %p54 = scmp.ne.s32.totalorder %s37, %s53
    %p55 = scmp.eq.s32.totalorder %s15, 0
    %p56 = por %p54, %p55
    %s57 = ssub.s32 %s17, %s24
    %p58 = scmp.eq.s32.totalorder %s57, 0
    %s60 = sadd.s32 %s59, 1
    %s61 = scalar_select %p58, %s59, %s60
    %p64 = pneg %p58
    %p65 = scmp.eq.s32.totalorder %s9, 17
    %p66 = por %p64, %p65
    %p67 = scmp.ne.s32.totalorder %s59, %s62
    %p68 = scmp.eq.s32.totalorder %s9, 0
    %p69 = por %p67, %p68
    %p70 = scmp.ne.s32.totalorder %s59, %s62
    %p71 = scmp.eq.s32.totalorder %s14, 17
    %p72 = por %p70, %p71
    %p73 = scmp.ne.s32.totalorder %s62, %s63
    %p74 = scmp.eq.s32.totalorder %s14, 0
    %p75 = por %p73, %p74
    %p76 = scmp.ne.s32.totalorder %s62, %s63
    %p77 = scmp.eq.s32.totalorder %s15, 17
    %p78 = por %p76, %p77
    %p80 = scmp.ne.s32.totalorder %s63, %s79
    %p81 = scmp.eq.s32.totalorder %s15, 0
    %p82 = por %p80, %p81
    %s84 = sadd.s32 %s83, 1
    %p87 = scmp.eq.s32.totalorder %s9, 17
    %p88 = scmp.ne.s32.totalorder %s83, %s85
    %p89 = scmp.eq.s32.totalorder %s9, 0
    %p90 = por %p88, %p89
    %p91 = scmp.ne.s32.totalorder %s83, %s85
    %p92 = scmp.eq.s32.totalorder %s14, 17
    %p93 = por %p91, %p92
    %p94 = scmp.ne.s32.totalorder %s85, %s86
    %p95 = scmp.eq.s32.totalorder %s14, 0
    %p96 = por %p94, %p95
    %p97 = scmp.ne.s32.totalorder %s85, %s86
    %p98 = scmp.eq.s32.totalorder %s15, 17
    %p99 = por %p97, %p98
    %p101 = scmp.ne.s32.totalorder %s86, %s100
    %p102 = scmp.eq.s32.totalorder %s15, 0
    %p103 = por %p101, %p102
    %s104 = ssub.s32 %s16, %s28
    %p105 = scmp.eq.s32.totalorder %s104, 0
    %s107 = sadd.s32 %s106, 1
    %s108 = scalar_select %p105, %s106, %s107
    %p111 = pneg %p105
    %p112 = scmp.eq.s32.totalorder %s9, 17
    %p113 = por %p111, %p112
    %p114 = scmp.ne.s32.totalorder %s106, %s109
    %p115 = scmp.eq.s32.totalorder %s9, 0
    %p116 = por %p114, %p115
    %p117 = scmp.ne.s32.totalorder %s106, %s109
    %p118 = scmp.eq.s32.totalorder %s14, 17
    %p119 = por %p117, %p118
    %p120 = scmp.ne.s32.totalorder %s109, %s110
    %p121 = scmp.eq.s32.totalorder %s14, 0
    %p122 = por %p120, %p121
    %p123 = scmp.ne.s32.totalorder %s109, %s110
    %p124 = scmp.eq.s32.totalorder %s15, 17
    %p125 = por %p123, %p124
    %p127 = scmp.ne.s32.totalorder %s110, %s126
    %p128 = scmp.eq.s32.totalorder %s15, 0
    %p129 = por %p127, %p128
    %p130 = scmp.le.s32.totalorder 1, %s9
    %p131 = scmp.lt.s32.totalorder %s9, 19
    %p132 = pnand %p130, %p131
    %p133 = pneg %p132
    // Predicated region
    $region9: #{fcn_generator_forward.6} parent=5 // pred_check
      _
    $region10: #{fcn_generator_forward.6} parent=5 // pred_check_branch
      %135 = sbr.rel (%p132) target = $region12
    $region11: #{fcn_generator_forward.6} parent=5 // pred_region
      %s136 = ssub.s32 %s9, 1
      // Predicated region
      $region13: #{fcn_generator_forward.6} parent=11 // pred_check
        %p137 = pneg %p96
      $region14: #{fcn_generator_forward.6} parent=11 // pred_check_branch
        %139 = sbr.rel (%p137) target = $region16
      $region15: #{fcn_generator_forward.6} parent=11 // pred_region
        _
      $region16: #{fcn_generator_forward.6} parent=11 // pred_fallthru
        _
    $region12: #{fcn_generator_forward.6} parent=5 // pred_fallthru
      _
    %p140 = scmp.lt.s32.totalorder %s9, 18
    // Predicated region
    $region17: #{fcn_generator_forward.6} parent=5 // pred_check
      %p141 = pneg %p140
    $region18: #{fcn_generator_forward.6} parent=5 // pred_check_branch
      %143 = sbr.rel (%p141) target = $region20
    $region19: #{fcn_generator_forward.6} parent=5 // pred_region
      // Predicated region
      $region21: #{fcn_generator_forward.6} parent=19 // pred_check
        %p144 = pneg %p43
      $region22: #{fcn_generator_forward.6} parent=19 // pred_check_branch
        %146 = sbr.rel (%p144) target = $region24
      $region23: #{fcn_generator_forward.6} parent=19 // pred_region
        %s147 = smul.u32 32, %s16
        %p148 = scmp.lt.s32.totalorder %s17, 8
        %s149 = scalar_select %p148, %s17, 8
        %p150 = scmp.lt.s32.totalorder %s147, 63
        %s151 = scalar_select %p150, %s147, 63
        %s152 = smul.addr %s149, 64
        %s153 = sadd.s32 %s151, %s152
        %s154 = smul.addr %s153, 4
        %s155 = scalar_lea.vmem %s0, %s154
        %s156 = smul.u32 32, %s16
      $region24: #{fcn_generator_forward.6} parent=19 // pred_fallthru
        _
      // Predicated region
      $region25: #{fcn_generator_forward.6} parent=19 // pred_check
        %p157 = pneg %p69
      $region26: #{fcn_generator_forward.6} parent=19 // pred_check_branch
        %159 = sbr.rel (%p157) target = $region28
      $region27: #{fcn_generator_forward.6} parent=19 // pred_region
        %p160 = scmp.lt.s32.totalorder %s17, 8
        %s161 = scalar_select %p160, %s17, 8
        %s162 = smul.addr %s161, 2
        %s163 = scalar_lea.vmem %s1, %s162
      $region28: #{fcn_generator_forward.6} parent=19 // pred_fallthru
        _
    $region20: #{fcn_generator_forward.6} parent=5 // pred_fallthru
      _
    %p164 = scmp.le.s32.totalorder 1, %s9
    %p165 = scmp.lt.s32.totalorder %s9, 19
    %p166 = pnand %p164, %p165
    %p167 = pneg %p166
    // Predicated region
    $region29: #{fcn_generator_forward.6} parent=5 // pred_check
      _
    $region30: #{fcn_generator_forward.6} parent=5 // pred_check_branch
      %169 = sbr.rel (%p166) target = $region32
    $region31: #{fcn_generator_forward.6} parent=5 // pred_region
      %s170 = ssub.s32 %s9, 1
      %s171 = smul.u32 32, %s18
      %p172 = scmp.lt.s32.totalorder %s19, 8
      %s173 = scalar_select %p172, %s19, 8
      %p174 = scmp.lt.s32.totalorder %s171, 63
      %s175 = scalar_select %p174, %s171, 63
      %s176 = smul.addr %s173, 64
      %s177 = sadd.s32 %s175, %s176
      %s178 = smul.addr %s177, 4
      %s179 = scalar_lea.vmem %s0, %s178
      %p180 = pneg %p49
      %p181 = pneg %p46
      %p182 = scmp.lt.s32.totalorder %s19, 8
      %s183 = scalar_select %p182, %s19, 8
      %s184 = smul.addr %s183, 2
      %s185 = scalar_lea.vmem %s1, %s184
      %p186 = pneg %p75
      %p187 = pneg %p72
      %p188 = pneg %p96
      %p189 = pneg %p93
      %p190 = pneg %p122
      %p191 = pneg %p119
      %s192 = smul.u32 32, %s18
      %p193 = scmp.lt.s32.totalorder %s192, 63
      %s194 = scalar_select %p193, %s192, 63
      %s195 = smul.addr %s194, 4
      %s196 = scalar_lea.vmem %s3, %s195
      %s197 = smul.u32 32, %s18
      %p198 = scmp.lt.s32.totalorder %s19, 8
      %s199 = scalar_select %p198, %s19, 8
      %p200 = scmp.lt.s32.totalorder %s197, 63
      %s201 = scalar_select %p200, %s197, 63
      %s202 = smul.addr %s199, 64
      %s203 = sadd.s32 %s201, %s202
      %s204 = smul.addr %s203, 4
      %s205 = scalar_lea.vmem %s0, %s204
      %s206 = smul.u32 32, %s18
      %p207 = scmp.lt.s32.totalorder %s19, 8
      %s208 = scalar_select %p207, %s19, 8
      %s209 = smul.addr %s208, 2
      %s210 = scalar_lea.vmem %s1, %s209
      %s211 = smul.u32 32, %s18
      %p212 = scmp.lt.s32.totalorder %s211, 63
      %s213 = scalar_select %p212, %s211, 63
      %s214 = smul.addr %s213, 4
      %s215 = scalar_lea.vmem %s3, %s214
      %s216 = smul.u32 32, %s18
      %p218 = scmp.eq.s32.totalorder %s19, 0
      // Predicated region
      $region33: #{fcn_generator_forward.6} parent=31 // pred_check
        %p219 = pneg %p218
      $region34: #{fcn_generator_forward.6} parent=31 // pred_check_branch
        %221 = sbr.rel (%p219) target = $region36
      $region35: #{fcn_generator_forward.6} parent=31 // pred_region
        %vm222 = vcmask 523264
        %223 = vst.msk [vmem:[#allocation2] sm:$0xff] %vm222, 0.0
        %224 = vst.msk [vmem:[#allocation2 + $0x8] sm:$0xff] %vm222, 0.0
        %225 = vst.msk [vmem:[#allocation2 + $0x10] sm:$0xff] %vm222, 0.0
        %226 = vst.msk [vmem:[#allocation2 + $0x18] sm:$0xff] %vm222, 0.0
        %227 = vst.msk [vmem:[#allocation2 + $0x20] sm:$0xff] %vm222, 0.0
        %228 = vst.msk [vmem:[#allocation2 + $0x28] sm:$0xff] %vm222, 0.0
        %229 = vst.msk [vmem:[#allocation2 + $0x30] sm:$0xff] %vm222, 0.0
        %230 = vst.msk [vmem:[#allocation2 + $0x38] sm:$0xff] %vm222, 0.0
        %231 = vst.msk [vmem:[#allocation2 + $0x40] sm:$0xff] %vm222, 0.0
        %232 = vst.msk [vmem:[#allocation2 + $0x48] sm:$0xff] %vm222, 0.0
        %233 = vst.msk [vmem:[#allocation2 + $0x50] sm:$0xff] %vm222, 0.0
        %234 = vst.msk [vmem:[#allocation2 + $0x58] sm:$0xff] %vm222, 0.0
        %235 = vst.msk [vmem:[#allocation2 + $0x60] sm:$0xff] %vm222, 0.0
        %236 = vst.msk [vmem:[#allocation2 + $0x68] sm:$0xff] %vm222, 0.0
        %237 = vst.msk [vmem:[#allocation2 + $0x70] sm:$0xff] %vm222, 0.0
        %238 = vst.msk [vmem:[#allocation2 + $0x78] sm:$0xff] %vm222, 0.0
        %239 = vst.msk [vmem:[#allocation2 + $0x80] sm:$0xff] %vm222, 0.0
        %240 = vst.msk [vmem:[#allocation2 + $0x88] sm:$0xff] %vm222, 0.0
        %241 = vst.msk [vmem:[#allocation2 + $0x90] sm:$0xff] %vm222, 0.0
        %242 = vst.msk [vmem:[#allocation2 + $0x98] sm:$0xff] %vm222, 0.0
        %243 = vst.msk [vmem:[#allocation2 + $0xa0] sm:$0xff] %vm222, 0.0
        %244 = vst.msk [vmem:[#allocation2 + $0xa8] sm:$0xff] %vm222, 0.0
        %245 = vst.msk [vmem:[#allocation2 + $0xb0] sm:$0xff] %vm222, 0.0
        %246 = vst.msk [vmem:[#allocation2 + $0xb8] sm:$0xff] %vm222, 0.0
        %247 = vst.msk [vmem:[#allocation2 + $0xc0] sm:$0xff] %vm222, 0.0
        %248 = vst.msk [vmem:[#allocation2 + $0xc8] sm:$0xff] %vm222, 0.0
        %249 = vst.msk [vmem:[#allocation2 + $0xd0] sm:$0xff] %vm222, 0.0
        %250 = vst.msk [vmem:[#allocation2 + $0xd8] sm:$0xff] %vm222, 0.0
        %251 = vst.msk [vmem:[#allocation2 + $0xe0] sm:$0xff] %vm222, 0.0
        %252 = vst.msk [vmem:[#allocation2 + $0xe8] sm:$0xff] %vm222, 0.0
        %253 = vst.msk [vmem:[#allocation2 + $0xf0] sm:$0xff] %vm222, 0.0
        %254 = vst.msk [vmem:[#allocation2 + $0xf8] sm:$0xff] %vm222, 0.0
      $region36: #{fcn_generator_forward.6} parent=31 // pred_fallthru
        _
      %v255 = vld [vmem:[#allocation2] sm:$0xff]
      %v256 = vld [vmem:[#allocation2 + $0x8] sm:$0xff]
      %v257 = vld [vmem:[#allocation2 + $0x10] sm:$0xff]
      %v258 = vld [vmem:[#allocation2 + $0x18] sm:$0xff]
      %v259 = vld [vmem:[#allocation2 + $0x20] sm:$0xff]
      %v260 = vld [vmem:[#allocation2 + $0x28] sm:$0xff]
      %v261 = vld [vmem:[#allocation2 + $0x30] sm:$0xff]
      %v262 = vld [vmem:[#allocation2 + $0x38] sm:$0xff]
      %v263 = vld [vmem:[#allocation2 + $0x40] sm:$0xff]
      %v264 = vld [vmem:[#allocation2 + $0x48] sm:$0xff]
      %v265 = vld [vmem:[#allocation2 + $0x50] sm:$0xff]
      %v266 = vld [vmem:[#allocation2 + $0x58] sm:$0xff]
      %v267 = vld [vmem:[#allocation2 + $0x60] sm:$0xff]
      %v268 = vld [vmem:[#allocation2 + $0x68] sm:$0xff]
      %v269 = vld [vmem:[#allocation2 + $0x70] sm:$0xff]
      %v270 = vld [vmem:[#allocation2 + $0x78] sm:$0xff]
      %v271 = vld [vmem:[#allocation2 + $0x80] sm:$0xff]
      %v272 = vld [vmem:[#allocation2 + $0x88] sm:$0xff]
      %v273 = vld [vmem:[#allocation2 + $0x90] sm:$0xff]
      %v274 = vld [vmem:[#allocation2 + $0x98] sm:$0xff]
      %v275 = vld [vmem:[#allocation2 + $0xa0] sm:$0xff]
      %v276 = vld [vmem:[#allocation2 + $0xa8] sm:$0xff]
      %v277 = vld [vmem:[#allocation2 + $0xb0] sm:$0xff]
      %v278 = vld [vmem:[#allocation2 + $0xb8] sm:$0xff]
      %v279 = vld [vmem:[#allocation2 + $0xc0] sm:$0xff]
      %v280 = vld [vmem:[#allocation2 + $0xc8] sm:$0xff]
      %v281 = vld [vmem:[#allocation2 + $0xd0] sm:$0xff]
      %v282 = vld [vmem:[#allocation2 + $0xd8] sm:$0xff]
      %v283 = vld [vmem:[#allocation2 + $0xe0] sm:$0xff]
      %v284 = vld [vmem:[#allocation2 + $0xe8] sm:$0xff]
      %v285 = vld [vmem:[#allocation2 + $0xf0] sm:$0xff]
      %v286 = vld [vmem:[#allocation2 + $0xf8] sm:$0xff]
      %v287 = vld [vmem:[%s205] sm:$0xf]
      %v288 = vld [vmem:[%s205 + $0x4] sm:$0xf]
      %v289 = vld [vmem:[%s205 + $0x8] sm:$0xf]
      %v290 = vld [vmem:[%s205 + $0xc] sm:$0xf]
      %v291 = vld [vmem:[%s205 + $0x10] sm:$0xf]
      %v292 = vld [vmem:[%s205 + $0x14] sm:$0xf]
      %v293 = vld [vmem:[%s205 + $0x18] sm:$0xf]
      %v294 = vld [vmem:[%s205 + $0x1c] sm:$0xf]
      %v295 = vld [vmem:[%s205 + $0x20] sm:$0xf]
      %v296 = vld [vmem:[%s205 + $0x24] sm:$0xf]
      %v297 = vld [vmem:[%s205 + $0x28] sm:$0xf]
      %v298 = vld [vmem:[%s205 + $0x2c] sm:$0xf]
      %v299 = vld [vmem:[%s205 + $0x30] sm:$0xf]
      %v300 = vld [vmem:[%s205 + $0x34] sm:$0xf]
      %v301 = vld [vmem:[%s205 + $0x38] sm:$0xf]
      %v302 = vld [vmem:[%s205 + $0x3c] sm:$0xf]
      %v303 = vld [vmem:[%s205 + $0x40] sm:$0xf]
      %v304 = vld [vmem:[%s205 + $0x44] sm:$0xf]
      %v305 = vld [vmem:[%s205 + $0x48] sm:$0xf]
      %v306 = vld [vmem:[%s205 + $0x4c] sm:$0xf]
      %v307 = vld [vmem:[%s205 + $0x50] sm:$0xf]
      %v308 = vld [vmem:[%s205 + $0x54] sm:$0xf]
      %v309 = vld [vmem:[%s205 + $0x58] sm:$0xf]
      %v310 = vld [vmem:[%s205 + $0x5c] sm:$0xf]
      %v311 = vld [vmem:[%s205 + $0x60] sm:$0xf]
      %v312 = vld [vmem:[%s205 + $0x64] sm:$0xf]
      %v313 = vld [vmem:[%s205 + $0x68] sm:$0xf]
      %v314 = vld [vmem:[%s205 + $0x6c] sm:$0xf]
      %v315 = vld [vmem:[%s205 + $0x70] sm:$0xf]
      %v316 = vld [vmem:[%s205 + $0x74] sm:$0xf]
      %v317 = vld [vmem:[%s205 + $0x78] sm:$0xf]
      %v318 = vld [vmem:[%s205 + $0x7c] sm:$0xf]
      %v319 = vld [vmem:[%s210] sm:$0x3]
      %v352 = vunpack.c.l.b16 %v287
      %v353 = vunpack.c.l.b16 %v288
      %v354 = vunpack.c.l.b16 %v289
      %v355 = vunpack.c.l.b16 %v290
      %v356 = vunpack.c.l.b16 %v291
      %v357 = vunpack.c.l.b16 %v292
      %v358 = vunpack.c.l.b16 %v293
      %v359 = vunpack.c.l.b16 %v294
      %v360 = vunpack.c.l.b16 %v295
      %v361 = vunpack.c.l.b16 %v296
      %v362 = vunpack.c.l.b16 %v297
      %v363 = vunpack.c.l.b16 %v298
      %v364 = vunpack.c.l.b16 %v299
      %v365 = vunpack.c.l.b16 %v300
      %v366 = vunpack.c.l.b16 %v301
      %v367 = vunpack.c.l.b16 %v302
      %v368 = vunpack.c.l.b16 %v303
      %v369 = vunpack.c.l.b16 %v304
      %v370 = vunpack.c.l.b16 %v305
      %v371 = vunpack.c.l.b16 %v306
      %v372 = vunpack.c.l.b16 %v307
      %v373 = vunpack.c.l.b16 %v308
      %v374 = vunpack.c.l.b16 %v309
      %v375 = vunpack.c.l.b16 %v310
      %v376 = vunpack.c.l.b16 %v311
      %v377 = vunpack.c.l.b16 %v312
      %v378 = vunpack.c.l.b16 %v313
      %v379 = vunpack.c.l.b16 %v314
      %v380 = vunpack.c.l.b16 %v315
      %v381 = vunpack.c.l.b16 %v316
      %v382 = vunpack.c.l.b16 %v317
      %v383 = vunpack.c.l.b16 %v318
      %v384 = vpack.c.b16 %v353, %v352
      %v385 = vpack.c.b16 %v355, %v354
      %v386 = vpack.c.b16 %v357, %v356
      %v387 = vpack.c.b16 %v359, %v358
      %v388 = vpack.c.b16 %v361, %v360
      %v389 = vpack.c.b16 %v363, %v362
      %v390 = vpack.c.b16 %v365, %v364
      %v391 = vpack.c.b16 %v367, %v366
      %v392 = vpack.c.b16 %v369, %v368
      %v393 = vpack.c.b16 %v371, %v370
      %v394 = vpack.c.b16 %v373, %v372
      %v395 = vpack.c.b16 %v375, %v374
      %v396 = vpack.c.b16 %v377, %v376
      %v397 = vpack.c.b16 %v379, %v378
      %v398 = vpack.c.b16 %v381, %v380
      %v399 = vpack.c.b16 %v383, %v382
      %vm400 = vcmask 31744
      %v402 = vsel %vm400, %v384, 0
      %v405 = vsel %vm400, %v385, 0
      %v408 = vsel %vm400, %v386, 0
      %v411 = vsel %vm400, %v387, 0
      %v414 = vsel %vm400, %v388, 0
      %v417 = vsel %vm400, %v389, 0
      %v420 = vsel %vm400, %v390, 0
      %v423 = vsel %vm400, %v391, 0
      %v426 = vsel %vm400, %v392, 0
      %v429 = vsel %vm400, %v393, 0
      %v432 = vsel %vm400, %v394, 0
      %v435 = vsel %vm400, %v395, 0
      %v438 = vsel %vm400, %v396, 0
      %v441 = vsel %vm400, %v397, 0
      %v444 = vsel %vm400, %v398, 0
      %v447 = vsel %vm400, %v399, 0
      %vm449 = vcmask 1041408
      %v451 = vsel %vm449, %v319, 0
      %453 = vmatprep.subr.bf16.mxu0 0
      %454 = vmatpush1.bf16.msra.mxu0 %v451
      %455 = vmatprep.subr.bf16.mxu0 0
      %456 = vmatpush1.bf16.msra.mxu0 0
      %457 = vmatprep.subr.bf16.mxu0 0
      %458 = vmatpush1.bf16.msra.mxu0 0
      %459 = vmatprep.subr.bf16.mxu0 0
      %460 = vmatpush1.bf16.msra.mxu0 0
      %461 = vmatprep.subr.bf16.mxu0 0
      %462 = vmatpush1.bf16.msra.mxu0 0
      %463 = vmatprep.subr.bf16.mxu0 0
      %464 = vmatpush1.bf16.msra.mxu0 0
      %465 = vmatprep.subr.bf16.mxu0 0
      %466 = vmatpush1.bf16.msra.mxu0 0
      %467 = vmatprep.subr.bf16.mxu0 0
      %468 = vmatpush1.bf16.msra.mxu0 0
      %469 = vmatprep.subr.bf16.mxu0 0
      %470 = vmatpush1.bf16.msra.mxu0 0
      %471 = vmatprep.subr.bf16.mxu0 0
      %472 = vmatpush1.bf16.msra.mxu0 0
      %473 = vmatprep.subr.bf16.mxu0 0
      %474 = vmatpush1.bf16.msra.mxu0 0
      %475 = vmatprep.subr.bf16.mxu0 0
      %476 = vmatpush1.bf16.msra.mxu0 0
      %477 = vmatprep.subr.bf16.mxu0 0
      %478 = vmatpush1.bf16.msra.mxu0 0
      %479 = vmatprep.subr.bf16.mxu0 0
      %480 = vmatpush1.bf16.msra.mxu0 0
      %481 = vmatprep.subr.bf16.mxu0 0
      %482 = vmatpush1.bf16.msra.mxu0 0
      %483 = vmatprep.subr.bf16.mxu0 0
      %484 = vmatpush1.bf16.msra.mxu0 0
      %485 = vmatprep.mubr.bf16.mxu0 0
      %486 = vmatmul.mubr.bf16.gmra.mrb[0].mxu0 %v402
      %v487 = vpop.f32.mrb[0].mxu0
      %v488 = vadd.f32 0.0, %v487
      %v489 = vpop.f32.mrb[0].mxu0
      %v490 = vpop.f32.mrb[0].mxu0
      %v491 = vadd.f32 0.0, %v490
      %v492 = vpop.f32.mrb[0].mxu0
      %493 = vmatprep.mubr.bf16.mxu0 0
      %494 = vmatmul.mubr.bf16.gmra.mrb[0].mxu0 %v405
      %v495 = vpop.f32.mrb[0].mxu0
      %v496 = vadd.f32 0.0, %v495
      %v497 = vpop.f32.mrb[0].mxu0
      %v498 = vpop.f32.mrb[0].mxu0
      %v499 = vadd.f32 0.0, %v498
      %v500 = vpop.f32.mrb[0].mxu0
      %501 = vmatprep.mubr.bf16.mxu0 0
      %502 = vmatmul.mubr.bf16.gmra.mrb[0].mxu0 %v408
      %v503 = vpop.f32.mrb[0].mxu0
      %v504 = vadd.f32 0.0, %v503
      %v505 = vpop.f32.mrb[0].mxu0
      %v506 = vpop.f32.mrb[0].mxu0
      %v507 = vadd.f32 0.0, %v506
      %v508 = vpop.f32.mrb[0].mxu0
      %509 = vmatprep.mubr.bf16.mxu0 0
      %510 = vmatmul.mubr.bf16.gmra.mrb[0].mxu0 %v411
      %v511 = vpop.f32.mrb[0].mxu0
      %v512 = vadd.f32 0.0, %v511
      %v513 = vpop.f32.mrb[0].mxu0
      %v514 = vpop.f32.mrb[0].mxu0
      %v515 = vadd.f32 0.0, %v514
      %v516 = vpop.f32.mrb[0].mxu0
      %517 = vmatprep.mubr.bf16.mxu0 0
      %518 = vmatmul.mubr.bf16.gmra.mrb[0].mxu0 %v414
      %v519 = vpop.f32.mrb[0].mxu0
      %v520 = vadd.f32 0.0, %v519
      %v521 = vpop.f32.mrb[0].mxu0
      %v522 = vpop.f32.mrb[0].mxu0
      %v523 = vadd.f32 0.0, %v522
      %v524 = vpop.f32.mrb[0].mxu0
      %525 = vmatprep.mubr.bf16.mxu0 0
      %526 = vmatmul.mubr.bf16.gmra.mrb[0].mxu0 %v417
      %v527 = vpop.f32.mrb[0].mxu0
      %v528 = vadd.f32 0.0, %v527
      %v529 = vpop.f32.mrb[0].mxu0
      %v530 = vpop.f32.mrb[0].mxu0
      %v531 = vadd.f32 0.0, %v530
      %v532 = vpop.f32.mrb[0].mxu0
      %533 = vmatprep.mubr.bf16.mxu0 0
      %534 = vmatmul.mubr.bf16.gmra.mrb[0].mxu0 %v420
      %v535 = vpop.f32.mrb[0].mxu0
      %v536 = vadd.f32 0.0, %v535
      %v537 = vpop.f32.mrb[0].mxu0
      %v538 = vpop.f32.mrb[0].mxu0
      %v539 = vadd.f32 0.0, %v538
      %v540 = vpop.f32.mrb[0].mxu0
      %541 = vmatprep.mubr.bf16.mxu0 0
      %542 = vmatmul.mubr.bf16.gmra.mrb[0].mxu0 %v423
      %v543 = vpop.f32.mrb[0].mxu0
      %v544 = vadd.f32 0.0, %v543
      %v545 = vpop.f32.mrb[0].mxu0
      %v546 = vpop.f32.mrb[0].mxu0
      %v547 = vadd.f32 0.0, %v546
      %v548 = vpop.f32.mrb[0].mxu0
      %549 = vmatprep.mubr.bf16.mxu0 0
      %550 = vmatmul.mubr.bf16.gmra.mrb[0].mxu0 %v426
      %v551 = vpop.f32.mrb[0].mxu0
      %v552 = vadd.f32 0.0, %v551
      %v553 = vpop.f32.mrb[0].mxu0
      %v554 = vpop.f32.mrb[0].mxu0
      %v555 = vadd.f32 0.0, %v554
      %v556 = vpop.f32.mrb[0].mxu0
      %557 = vmatprep.mubr.bf16.mxu0 0
      %558 = vmatmul.mubr.bf16.gmra.mrb[0].mxu0 %v429
      %v559 = vpop.f32.mrb[0].mxu0
      %v560 = vadd.f32 0.0, %v559
      %v561 = vpop.f32.mrb[0].mxu0
      %v562 = vpop.f32.mrb[0].mxu0
      %v563 = vadd.f32 0.0, %v562
      %v564 = vpop.f32.mrb[0].mxu0
      %565 = vmatprep.mubr.bf16.mxu0 0
      %566 = vmatmul.mubr.bf16.gmra.mrb[0].mxu0 %v432
      %v567 = vpop.f32.mrb[0].mxu0
      %v568 = vadd.f32 0.0, %v567
      %v569 = vpop.f32.mrb[0].mxu0
      %v570 = vpop.f32.mrb[0].mxu0
      %v571 = vadd.f32 0.0, %v570
      %v572 = vpop.f32.mrb[0].mxu0
      %573 = vmatprep.mubr.bf16.mxu0 0
      %574 = vmatmul.mubr.bf16.gmra.mrb[0].mxu0 %v435
      %v575 = vpop.f32.mrb[0].mxu0
      %v576 = vadd.f32 0.0, %v575
      %v577 = vpop.f32.mrb[0].mxu0
      %v578 = vpop.f32.mrb[0].mxu0
      %v579 = vadd.f32 0.0, %v578
      %v580 = vpop.f32.mrb[0].mxu0
      %581 = vmatprep.mubr.bf16.mxu0 0
      %582 = vmatmul.mubr.bf16.gmra.mrb[0].mxu0 %v438
      %v583 = vpop.f32.mrb[0].mxu0
      %v584 = vadd.f32 0.0, %v583
      %v585 = vpop.f32.mrb[0].mxu0
      %v586 = vpop.f32.mrb[0].mxu0
      %v587 = vadd.f32 0.0, %v586
      %v588 = vpop.f32.mrb[0].mxu0
      %589 = vmatprep.mubr.bf16.mxu0 0
      %590 = vmatmul.mubr.bf16.gmra.mrb[0].mxu0 %v441
      %v591 = vpop.f32.mrb[0].mxu0
      %v592 = vadd.f32 0.0, %v591
      %v593 = vpop.f32.mrb[0].mxu0
      %v594 = vpop.f32.mrb[0].mxu0
      %v595 = vadd.f32 0.0, %v594
      %v596 = vpop.f32.mrb[0].mxu0
      %597 = vmatprep.mubr.bf16.mxu0 0
      %598 = vmatmul.mubr.bf16.gmra.mrb[0].mxu0 %v444
      %v599 = vpop.f32.mrb[0].mxu0
      %v600 = vadd.f32 0.0, %v599
      %v601 = vpop.f32.mrb[0].mxu0
      %v602 = vpop.f32.mrb[0].mxu0
      %v603 = vadd.f32 0.0, %v602
      %v604 = vpop.f32.mrb[0].mxu0
      %605 = vmatprep.mubr.bf16.mxu0 0
      %606 = vmatmul.mubr.bf16.gmra.mrb[0].mxu0 %v447
      %v607 = vpop.f32.mrb[0].mxu0
      %v608 = vadd.f32 0.0, %v607
      %v609 = vpop.f32.mrb[0].mxu0
      %v610 = vpop.f32.mrb[0].mxu0
      %v611 = vadd.f32 0.0, %v610
      %v612 = vpop.f32.mrb[0].mxu0
      %613 = vdwg.mxu0
      %v614 = vadd.f32 %v255, %v488
      %v615 = vadd.f32 %v256, %v491
      %v616 = vadd.f32 %v257, %v496
      %v617 = vadd.f32 %v258, %v499
      %v618 = vadd.f32 %v259, %v504
      %v619 = vadd.f32 %v260, %v507
      %v620 = vadd.f32 %v261, %v512
      %v621 = vadd.f32 %v262, %v515
      %v622 = vadd.f32 %v263, %v520
      %v623 = vadd.f32 %v264, %v523
      %v624 = vadd.f32 %v265, %v528
      %v625 = vadd.f32 %v266, %v531
      %v626 = vadd.f32 %v267, %v536
      %v627 = vadd.f32 %v268, %v539
      %v628 = vadd.f32 %v269, %v544
      %v629 = vadd.f32 %v270, %v547
      %v630 = vadd.f32 %v271, %v552
      %v631 = vadd.f32 %v272, %v555
      %v632 = vadd.f32 %v273, %v560
      %v633 = vadd.f32 %v274, %v563
      %v634 = vadd.f32 %v275, %v568
      %v635 = vadd.f32 %v276, %v571
      %v636 = vadd.f32 %v277, %v576
      %v637 = vadd.f32 %v278, %v579
      %v638 = vadd.f32 %v279, %v584
      %v639 = vadd.f32 %v280, %v587
      %v640 = vadd.f32 %v281, %v592
      %v641 = vadd.f32 %v282, %v595
      %v642 = vadd.f32 %v283, %v600
      %v643 = vadd.f32 %v284, %v603
      %v644 = vadd.f32 %v285, %v608
      %v645 = vadd.f32 %v286, %v611
      %vm646 = vcmask 523264
      %647 = vst.msk [vmem:[#allocation2] sm:$0xff] %vm646, %v614
      %648 = vst.msk [vmem:[#allocation2 + $0x8] sm:$0xff] %vm646, %v615
      %649 = vst.msk [vmem:[#allocation2 + $0x10] sm:$0xff] %vm646, %v616
      %650 = vst.msk [vmem:[#allocation2 + $0x18] sm:$0xff] %vm646, %v617
      %651 = vst.msk [vmem:[#allocation2 + $0x20] sm:$0xff] %vm646, %v618
      %652 = vst.msk [vmem:[#allocation2 + $0x28] sm:$0xff] %vm646, %v619
      %653 = vst.msk [vmem:[#allocation2 + $0x30] sm:$0xff] %vm646, %v620
      %654 = vst.msk [vmem:[#allocation2 + $0x38] sm:$0xff] %vm646, %v621
      %655 = vst.msk [vmem:[#allocation2 + $0x40] sm:$0xff] %vm646, %v622
      %656 = vst.msk [vmem:[#allocation2 + $0x48] sm:$0xff] %vm646, %v623
      %657 = vst.msk [vmem:[#allocation2 + $0x50] sm:$0xff] %vm646, %v624
      %658 = vst.msk [vmem:[#allocation2 + $0x58] sm:$0xff] %vm646, %v625
      %659 = vst.msk [vmem:[#allocation2 + $0x60] sm:$0xff] %vm646, %v626
      %660 = vst.msk [vmem:[#allocation2 + $0x68] sm:$0xff] %vm646, %v627
      %661 = vst.msk [vmem:[#allocation2 + $0x70] sm:$0xff] %vm646, %v628
      %662 = vst.msk [vmem:[#allocation2 + $0x78] sm:$0xff] %vm646, %v629
      %663 = vst.msk [vmem:[#allocation2 + $0x80] sm:$0xff] %vm646, %v630
      %664 = vst.msk [vmem:[#allocation2 + $0x88] sm:$0xff] %vm646, %v631
      %665 = vst.msk [vmem:[#allocation2 + $0x90] sm:$0xff] %vm646, %v632
      %666 = vst.msk [vmem:[#allocation2 + $0x98] sm:$0xff] %vm646, %v633
      %667 = vst.msk [vmem:[#allocation2 + $0xa0] sm:$0xff] %vm646, %v634
      %668 = vst.msk [vmem:[#allocation2 + $0xa8] sm:$0xff] %vm646, %v635
      %669 = vst.msk [vmem:[#allocation2 + $0xb0] sm:$0xff] %vm646, %v636
      %670 = vst.msk [vmem:[#allocation2 + $0xb8] sm:$0xff] %vm646, %v637
      %671 = vst.msk [vmem:[#allocation2 + $0xc0] sm:$0xff] %vm646, %v638
      %672 = vst.msk [vmem:[#allocation2 + $0xc8] sm:$0xff] %vm646, %v639
      %673 = vst.msk [vmem:[#allocation2 + $0xd0] sm:$0xff] %vm646, %v640
      %674 = vst.msk [vmem:[#allocation2 + $0xd8] sm:$0xff] %vm646, %v641
      %675 = vst.msk [vmem:[#allocation2 + $0xe0] sm:$0xff] %vm646, %v642
      %676 = vst.msk [vmem:[#allocation2 + $0xe8] sm:$0xff] %vm646, %v643
      %677 = vst.msk [vmem:[#allocation2 + $0xf0] sm:$0xff] %vm646, %v644
      %678 = vst.msk [vmem:[#allocation2 + $0xf8] sm:$0xff] %vm646, %v645
      %p679 = scmp.eq.s32.totalorder %s19, 8
      // Predicated region
      $region37: #{fcn_generator_forward.6} parent=31 // pred_check
        %p680 = pneg %p679
      $region38: #{fcn_generator_forward.6} parent=31 // pred_check_branch
        %682 = sbr.rel (%p680) target = $region40
      $region39: #{fcn_generator_forward.6} parent=31 // pred_region
        %v683 = vld [vmem:[#allocation2] sm:$0xff]
        %v684 = vld [vmem:[#allocation2 + $0x8] sm:$0xff]
        %v685 = vld [vmem:[#allocation2 + $0x10] sm:$0xff]
        %v686 = vld [vmem:[#allocation2 + $0x18] sm:$0xff]
        %v687 = vld [vmem:[#allocation2 + $0x20] sm:$0xff]
        %v688 = vld [vmem:[#allocation2 + $0x28] sm:$0xff]
        %v689 = vld [vmem:[#allocation2 + $0x30] sm:$0xff]
        %v690 = vld [vmem:[#allocation2 + $0x38] sm:$0xff]
        %v691 = vld [vmem:[#allocation2 + $0x40] sm:$0xff]
        %v692 = vld [vmem:[#allocation2 + $0x48] sm:$0xff]
        %v693 = vld [vmem:[#allocation2 + $0x50] sm:$0xff]
        %v694 = vld [vmem:[#allocation2 + $0x58] sm:$0xff]
        %v695 = vld [vmem:[#allocation2 + $0x60] sm:$0xff]
        %v696 = vld [vmem:[#allocation2 + $0x68] sm:$0xff]
        %v697 = vld [vmem:[#allocation2 + $0x70] sm:$0xff]
        %v698 = vld [vmem:[#allocation2 + $0x78] sm:$0xff]
        %v699 = vld [vmem:[#allocation2 + $0x80] sm:$0xff]
        %v700 = vld [vmem:[#allocation2 + $0x88] sm:$0xff]
        %v701 = vld [vmem:[#allocation2 + $0x90] sm:$0xff]
        %v702 = vld [vmem:[#allocation2 + $0x98] sm:$0xff]
        %v703 = vld [vmem:[#allocation2 + $0xa0] sm:$0xff]
        %v704 = vld [vmem:[#allocation2 + $0xa8] sm:$0xff]
        %v705 = vld [vmem:[#allocation2 + $0xb0] sm:$0xff]
        %v706 = vld [vmem:[#allocation2 + $0xb8] sm:$0xff]
        %v707 = vld [vmem:[#allocation2 + $0xc0] sm:$0xff]
        %v708 = vld [vmem:[#allocation2 + $0xc8] sm:$0xff]
        %v709 = vld [vmem:[#allocation2 + $0xd0] sm:$0xff]
        %v710 = vld [vmem:[#allocation2 + $0xd8] sm:$0xff]
        %v711 = vld [vmem:[#allocation2 + $0xe0] sm:$0xff]
        %v712 = vld [vmem:[#allocation2 + $0xe8] sm:$0xff]
        %v713 = vld [vmem:[#allocation2 + $0xf0] sm:$0xff]
        %v714 = vld [vmem:[#allocation2 + $0xf8] sm:$0xff]
        %v715 = vld [vmem:[%s2] sm:$0x1]
        %v717 = vlaneseq
        %v718 = vshrl.u32 %v717, 7
        %v719 = vsub.s32 0, %v718
        %v720 = vrot.slane %v715, %v719
        %v722 = vadd.f32 %v683, %v720
        %v723 = vadd.f32 %v684, %v720
        %v724 = vadd.f32 %v685, %v720
        %v725 = vadd.f32 %v686, %v720
        %v726 = vadd.f32 %v687, %v720
        %v727 = vadd.f32 %v688, %v720
        %v728 = vadd.f32 %v689, %v720
        %v729 = vadd.f32 %v690, %v720
        %v730 = vadd.f32 %v691, %v720
        %v731 = vadd.f32 %v692, %v720
        %v732 = vadd.f32 %v693, %v720
        %v733 = vadd.f32 %v694, %v720
        %v734 = vadd.f32 %v695, %v720
        %v735 = vadd.f32 %v696, %v720
        %v736 = vadd.f32 %v697, %v720
        %v737 = vadd.f32 %v698, %v720
        %v738 = vadd.f32 %v699, %v720
        %v739 = vadd.f32 %v700, %v720
        %v740 = vadd.f32 %v701, %v720
        %v741 = vadd.f32 %v702, %v720
        %v742 = vadd.f32 %v703, %v720
        %v743 = vadd.f32 %v704, %v720
        %v744 = vadd.f32 %v705, %v720
        %v745 = vadd.f32 %v706, %v720
        %v746 = vadd.f32 %v707, %v720
        %v747 = vadd.f32 %v708, %v720
        %v748 = vadd.f32 %v709, %v720
        %v749 = vadd.f32 %v710, %v720
        %v750 = vadd.f32 %v711, %v720
        %v751 = vadd.f32 %v712, %v720
        %v752 = vadd.f32 %v713, %v720
        %v753 = vadd.f32 %v714, %v720
        %v754 = vmax.f32 %v722, 0.0
        %v755 = vmax.f32 %v723, 0.0
        %v756 = vmax.f32 %v724, 0.0
        %v757 = vmax.f32 %v725, 0.0
        %v758 = vmax.f32 %v726, 0.0
        %v759 = vmax.f32 %v727, 0.0
        %v760 = vmax.f32 %v728, 0.0
        %v761 = vmax.f32 %v729, 0.0
        %v762 = vmax.f32 %v730, 0.0
        %v763 = vmax.f32 %v731, 0.0
        %v764 = vmax.f32 %v732, 0.0
        %v765 = vmax.f32 %v733, 0.0
        %v766 = vmax.f32 %v734, 0.0
        %v767 = vmax.f32 %v735, 0.0
        %v768 = vmax.f32 %v736, 0.0
        %v769 = vmax.f32 %v737, 0.0
        %v770 = vmax.f32 %v738, 0.0
        %v771 = vmax.f32 %v739, 0.0
        %v772 = vmax.f32 %v740, 0.0
        %v773 = vmax.f32 %v741, 0.0
        %v774 = vmax.f32 %v742, 0.0
        %v775 = vmax.f32 %v743, 0.0
        %v776 = vmax.f32 %v744, 0.0
        %v777 = vmax.f32 %v745, 0.0
        %v778 = vmax.f32 %v746, 0.0
        %v779 = vmax.f32 %v747, 0.0
        %v780 = vmax.f32 %v748, 0.0
        %v781 = vmax.f32 %v749, 0.0
        %v782 = vmax.f32 %v750, 0.0
        %v783 = vmax.f32 %v751, 0.0
        %v784 = vmax.f32 %v752, 0.0
        %v785 = vmax.f32 %v753, 0.0
        %v786 = vpack.c.bf16 %v755, %v754
        %v787 = vpack.c.bf16 %v757, %v756
        %v788 = vpack.c.bf16 %v759, %v758
        %v789 = vpack.c.bf16 %v761, %v760
        %v790 = vpack.c.bf16 %v763, %v762
        %v791 = vpack.c.bf16 %v765, %v764
        %v792 = vpack.c.bf16 %v767, %v766
        %v793 = vpack.c.bf16 %v769, %v768
        %v794 = vpack.c.bf16 %v771, %v770
        %v795 = vpack.c.bf16 %v773, %v772
        %v796 = vpack.c.bf16 %v775, %v774
        %v797 = vpack.c.bf16 %v777, %v776
        %v798 = vpack.c.bf16 %v779, %v778
        %v799 = vpack.c.bf16 %v781, %v780
        %v800 = vpack.c.bf16 %v783, %v782
        %v801 = vpack.c.bf16 %v785, %v784
        %v818 = vunpack.c.l.b16 %v786
        %v819 = vunpack.c.h.b16 %v786
        %v820 = vunpack.c.l.b16 %v787
        %v821 = vunpack.c.h.b16 %v787
        %v822 = vunpack.c.l.b16 %v788
        %v823 = vunpack.c.h.b16 %v788
        %v824 = vunpack.c.l.b16 %v789
        %v825 = vunpack.c.h.b16 %v789
        %v826 = vunpack.c.l.b16 %v790
        %v827 = vunpack.c.h.b16 %v790
        %v828 = vunpack.c.l.b16 %v791
        %v829 = vunpack.c.h.b16 %v791
        %v830 = vunpack.c.l.b16 %v792
        %v831 = vunpack.c.h.b16 %v792
        %v832 = vunpack.c.l.b16 %v793
        %v833 = vunpack.c.h.b16 %v793
        %v834 = vunpack.c.l.b16 %v794
        %v835 = vunpack.c.h.b16 %v794
        %v836 = vunpack.c.l.b16 %v795
        %v837 = vunpack.c.h.b16 %v795
        %v838 = vunpack.c.l.b16 %v796
        %v839 = vunpack.c.h.b16 %v796
        %v840 = vunpack.c.l.b16 %v797
        %v841 = vunpack.c.h.b16 %v797
        %v842 = vunpack.c.l.b16 %v798
        %v843 = vunpack.c.h.b16 %v798
        %v844 = vunpack.c.l.b16 %v799
        %v845 = vunpack.c.h.b16 %v799
        %v846 = vunpack.c.l.b16 %v800
        %v847 = vunpack.c.h.b16 %v800
        %v848 = vunpack.c.l.b16 %v801
        %v849 = vunpack.c.h.b16 %v801
        %v850 = vpack.c.b16 %v818, %v818
        %v851 = vpack.c.b16 %v819, %v819
        %v852 = vpack.c.b16 %v820, %v820
        %v853 = vpack.c.b16 %v821, %v821
        %v854 = vpack.c.b16 %v822, %v822
        %v855 = vpack.c.b16 %v823, %v823
        %v856 = vpack.c.b16 %v824, %v824
        %v857 = vpack.c.b16 %v825, %v825
        %v858 = vpack.c.b16 %v826, %v826
        %v859 = vpack.c.b16 %v827, %v827
        %v860 = vpack.c.b16 %v828, %v828
        %v861 = vpack.c.b16 %v829, %v829
        %v862 = vpack.c.b16 %v830, %v830
        %v863 = vpack.c.b16 %v831, %v831
        %v864 = vpack.c.b16 %v832, %v832
        %v865 = vpack.c.b16 %v833, %v833
        %v866 = vpack.c.b16 %v834, %v834
        %v867 = vpack.c.b16 %v835, %v835
        %v868 = vpack.c.b16 %v836, %v836
        %v869 = vpack.c.b16 %v837, %v837
        %v870 = vpack.c.b16 %v838, %v838
        %v871 = vpack.c.b16 %v839, %v839
        %v872 = vpack.c.b16 %v840, %v840
        %v873 = vpack.c.b16 %v841, %v841
        %v874 = vpack.c.b16 %v842, %v842
        %v875 = vpack.c.b16 %v843, %v843
        %v876 = vpack.c.b16 %v844, %v844
        %v877 = vpack.c.b16 %v845, %v845
        %v878 = vpack.c.b16 %v846, %v846
        %v879 = vpack.c.b16 %v847, %v847
        %v880 = vpack.c.b16 %v848, %v848
        %v881 = vpack.c.b16 %v849, %v849
        %vm914 = vcmask 519168
        %915 = vst.msk [vmem:[%s215] sm:$0xf] %vm914, %v850
        %916 = vst.msk [vmem:[%s215 + $0x4] sm:$0xf] %vm914, %v851
        %917 = vst.msk [vmem:[%s215 + $0x8] sm:$0xf] %vm914, %v852
        %918 = vst.msk [vmem:[%s215 + $0xc] sm:$0xf] %vm914, %v853
        %919 = vst.msk [vmem:[%s215 + $0x10] sm:$0xf] %vm914, %v854
        %920 = vst.msk [vmem:[%s215 + $0x14] sm:$0xf] %vm914, %v855
        %921 = vst.msk [vmem:[%s215 + $0x18] sm:$0xf] %vm914, %v856
        %922 = vst.msk [vmem:[%s215 + $0x1c] sm:$0xf] %vm914, %v857
        %923 = vst.msk [vmem:[%s215 + $0x20] sm:$0xf] %vm914, %v858
        %924 = vst.msk [vmem:[%s215 + $0x24] sm:$0xf] %vm914, %v859
        %925 = vst.msk [vmem:[%s215 + $0x28] sm:$0xf] %vm914, %v860
        %926 = vst.msk [vmem:[%s215 + $0x2c] sm:$0xf] %vm914, %v861
        %927 = vst.msk [vmem:[%s215 + $0x30] sm:$0xf] %vm914, %v862
        %928 = vst.msk [vmem:[%s215 + $0x34] sm:$0xf] %vm914, %v863
        %929 = vst.msk [vmem:[%s215 + $0x38] sm:$0xf] %vm914, %v864
        %930 = vst.msk [vmem:[%s215 + $0x3c] sm:$0xf] %vm914, %v865
        %931 = vst.msk [vmem:[%s215 + $0x40] sm:$0xf] %vm914, %v866
        %932 = vst.msk [vmem:[%s215 + $0x44] sm:$0xf] %vm914, %v867
        %933 = vst.msk [vmem:[%s215 + $0x48] sm:$0xf] %vm914, %v868
        %934 = vst.msk [vmem:[%s215 + $0x4c] sm:$0xf] %vm914, %v869
        %935 = vst.msk [vmem:[%s215 + $0x50] sm:$0xf] %vm914, %v870
        %936 = vst.msk [vmem:[%s215 + $0x54] sm:$0xf] %vm914, %v871
        %937 = vst.msk [vmem:[%s215 + $0x58] sm:$0xf] %vm914, %v872
        %938 = vst.msk [vmem:[%s215 + $0x5c] sm:$0xf] %vm914, %v873
        %939 = vst.msk [vmem:[%s215 + $0x60] sm:$0xf] %vm914, %v874
        %940 = vst.msk [vmem:[%s215 + $0x64] sm:$0xf] %vm914, %v875
        %941 = vst.msk [vmem:[%s215 + $0x68] sm:$0xf] %vm914, %v876
        %942 = vst.msk [vmem:[%s215 + $0x6c] sm:$0xf] %vm914, %v877
        %943 = vst.msk [vmem:[%s215 + $0x70] sm:$0xf] %vm914, %v878
        %944 = vst.msk [vmem:[%s215 + $0x74] sm:$0xf] %vm914, %v879
        %945 = vst.msk [vmem:[%s215 + $0x78] sm:$0xf] %vm914, %v880
        %946 = vst.msk [vmem:[%s215 + $0x7c] sm:$0xf] %vm914, %v881
      $region40: #{fcn_generator_forward.6} parent=31 // pred_fallthru
        _
      %s947 = smul.u32 32, %s18
      %p948 = scmp.lt.s32.totalorder %s947, 63
      %s949 = scalar_select %p948, %s947, 63
      %s950 = smul.addr %s949, 4
      %s951 = scalar_lea.vmem %s3, %s950
      // Predicated region
      $region41: #{fcn_generator_forward.6} parent=31 // pred_check
        %p952 = pneg %p119
      $region42: #{fcn_generator_forward.6} parent=31 // pred_check_branch
        %954 = sbr.rel (%p952) target = $region44
      $region43: #{fcn_generator_forward.6} parent=31 // pred_region
        %s955 = smul.u32 32, %s18
      $region44: #{fcn_generator_forward.6} parent=31 // pred_fallthru
        _
    $region32: #{fcn_generator_forward.6} parent=5 // pred_fallthru
      _
    %p956 = scmp.le.s32.totalorder 2, %s9
    // Predicated region
    $region45: #{fcn_generator_forward.6} parent=5 // pred_check
      %p957 = pneg %p956
    $region46: #{fcn_generator_forward.6} parent=5 // pred_check_branch
      %959 = sbr.rel (%p957) target = $region48
    $region47: #{fcn_generator_forward.6} parent=5 // pred_region
      %s960 = ssub.s32 %s9, 2
      // Predicated region
      $region49: #{fcn_generator_forward.6} parent=47 // pred_check
        %p961 = pneg %p125
      $region50: #{fcn_generator_forward.6} parent=47 // pred_check_branch
        %963 = sbr.rel (%p961) target = $region52
      $region51: #{fcn_generator_forward.6} parent=47 // pred_region
        %s964 = smul.u32 32, %s20
        %p965 = scmp.lt.s32.totalorder %s964, 63
        %s966 = scalar_select %p965, %s964, 63
        %s967 = smul.addr %s966, 4
        %s968 = scalar_lea.vmem %s3, %s967
      $region52: #{fcn_generator_forward.6} parent=47 // pred_fallthru
        _
    $region48: #{fcn_generator_forward.6} parent=5 // pred_fallthru
      _
  $region6: #{fcn_generator_forward.6} parent=0 // loop_footer
    %s13 = sadd.s32 1, %s9
  $region7: #{fcn_generator_forward.6} parent=0 // loop_footer_branch
    %8 = sbr.rel target = $region3
  $region8: #{fcn_generator_forward.6} parent=0 // loop_exit
    _

// kernel: fcn_generator_forward.7
$region0: #{fcn_generator_forward.7}
  #allocation0 [shape = 'u32[]', space=smem, size = 0x4, offset = 0x4, fixed_abs, tag = 'smem constant byte address 0x4 - core index']
  #allocation1 [shape = 'u32[144,128]{1,0:T(1,128)}', space=vmem, size = 0x12000, scoped, tag = 'internal scratch']
  #allocation2 [shape = 'f32[128,128]{1,0:T(8,128)}', space=vmem, size = 0x10000, scoped, tag = 'scratch operand']
  %s0 = inlined_call_operand.vmem [shape: bf16[9,128,64], index: 0, kind: input, shape index: {}]
  %s1 = inlined_call_operand.vmem [shape: bf16[9,64,128], index: 1, kind: input, shape index: {}]
  %s2 = inlined_call_operand.vmem [shape: f32[1,128], index: 2, kind: input, shape index: {}]
  %s3 = inlined_call_operand.vmem [shape: bf16[128,128], index: 3, kind: output, shape index: {}]
  %s4 = sld [smem:[#allocation0]]
  $region53: #{fcn_generator_forward.7} parent=0
    _
  %s6 = ssub.s32 1, %s4
  %s7 = scalar_select 0, %s6, %s4
  loop: start=0, step=1, limit=11
  $region2: #{fcn_generator_forward.7} parent=0 // loop_pre_header
    _
  $region3: #{fcn_generator_forward.7} parent=0 // loop_header
    %s9 = sphi 0, %s13
    %p10 = scmp.ge.s32.totalorder %s9, 11
    %s16 = sphi 0, %s28
    %s17 = sphi 0, %s24
    %s18 = sphi 0, %s16
    %s19 = sphi 0, %s17
    %s20 = sphi 0, %s18
    %s21 = sphi 0, %s19
    %s33 = sphi 0, %s35
    %s36 = sphi 0, %s33
    %s37 = sphi 0, %s36
    %s53 = sphi 0, %s37
    %s59 = sphi 0, %s61
    %s62 = sphi 0, %s59
    %s63 = sphi 0, %s62
    %s79 = sphi 0, %s63
    %s83 = sphi 0, %s83
    %s85 = sphi 0, %s83
    %s86 = sphi 0, %s85
    %s100 = sphi 0, %s86
    %s106 = sphi 0, %s108
    %s109 = sphi 0, %s106
    %s110 = sphi 0, %s109
    %s126 = sphi 0, %s110
  $region4: #{fcn_generator_forward.7} parent=0 // loop_header_branch
    %12 = sbr.rel (%p10) target = $region8
  $region5: #{fcn_generator_forward.7} parent=0 // loop_body
    %s14 = ssub.s32 %s9, 1
    %s15 = ssub.s32 %s9, 2
    %s22 = sadd.s32 1, %s17
    %p23 = scmp.ge.s32.totalorder %s22, 9
    %s24 = scalar_select %p23, 0, %s22
    %s25 = sadd.s32 1, %s16
    %s26 = scalar_select %p23, %s25, %s16
    %p27 = scmp.ge.s32.totalorder %s26, 1
    %s28 = scalar_select %p27, 0, %s26
    %s29 = ssub.s32 %s17, %s24
    %s30 = ssub.s32 %s16, %s28
    %s31 = sor.u32 %s29, %s30
    %p32 = scmp.eq.s32.totalorder %s31, 0
    %s34 = sadd.s32 %s33, 1
    %s35 = scalar_select %p32, %s33, %s34
    %p38 = pneg %p32
    %p39 = scmp.eq.s32.totalorder %s9, 8
    %p40 = por %p38, %p39
    %p41 = scmp.ne.s32.totalorder %s33, %s36
    %p42 = scmp.eq.s32.totalorder %s9, 0
    %p43 = por %p41, %p42
    %p44 = scmp.ne.s32.totalorder %s33, %s36
    %p45 = scmp.eq.s32.totalorder %s14, 8
    %p46 = por %p44, %p45
    %p47 = scmp.ne.s32.totalorder %s36, %s37
    %p48 = scmp.eq.s32.totalorder %s14, 0
    %p49 = por %p47, %p48
    %p50 = scmp.ne.s32.totalorder %s36, %s37
    %p51 = scmp.eq.s32.totalorder %s15, 8
    %p52 = por %p50, %p51
    %p54 = scmp.ne.s32.totalorder %s37, %s53
    %p55 = scmp.eq.s32.totalorder %s15, 0
    %p56 = por %p54, %p55
    %s57 = ssub.s32 %s17, %s24
    %p58 = scmp.eq.s32.totalorder %s57, 0
    %s60 = sadd.s32 %s59, 1
    %s61 = scalar_select %p58, %s59, %s60
    %p64 = pneg %p58
    %p65 = scmp.eq.s32.totalorder %s9, 8
    %p66 = por %p64, %p65
    %p67 = scmp.ne.s32.totalorder %s59, %s62
    %p68 = scmp.eq.s32.totalorder %s9, 0
    %p69 = por %p67, %p68
    %p70 = scmp.ne.s32.totalorder %s59, %s62
    %p71 = scmp.eq.s32.totalorder %s14, 8
    %p72 = por %p70, %p71
    %p73 = scmp.ne.s32.totalorder %s62, %s63
    %p74 = scmp.eq.s32.totalorder %s14, 0
    %p75 = por %p73, %p74
    %p76 = scmp.ne.s32.totalorder %s62, %s63
    %p77 = scmp.eq.s32.totalorder %s15, 8
    %p78 = por %p76, %p77
    %p80 = scmp.ne.s32.totalorder %s63, %s79
    %p81 = scmp.eq.s32.totalorder %s15, 0
    %p82 = por %p80, %p81
    %s84 = sadd.s32 %s83, 1
    %p87 = scmp.eq.s32.totalorder %s9, 8
    %p88 = scmp.ne.s32.totalorder %s83, %s85
    %p89 = scmp.eq.s32.totalorder %s9, 0
    %p90 = por %p88, %p89
    %p91 = scmp.ne.s32.totalorder %s83, %s85
    %p92 = scmp.eq.s32.totalorder %s14, 8
    %p93 = por %p91, %p92
    %p94 = scmp.ne.s32.totalorder %s85, %s86
    %p95 = scmp.eq.s32.totalorder %s14, 0
    %p96 = por %p94, %p95
    %p97 = scmp.ne.s32.totalorder %s85, %s86
    %p98 = scmp.eq.s32.totalorder %s15, 8
    %p99 = por %p97, %p98
    %p101 = scmp.ne.s32.totalorder %s86, %s100
    %p102 = scmp.eq.s32.totalorder %s15, 0
    %p103 = por %p101, %p102
    %s104 = ssub.s32 %s16, %s28
    %p105 = scmp.eq.s32.totalorder %s104, 0
    %s107 = sadd.s32 %s106, 1
    %s108 = scalar_select %p105, %s106, %s107
    %p111 = pneg %p105
    %p112 = scmp.eq.s32.totalorder %s9, 8
    %p113 = por %p111, %p112
    %p114 = scmp.ne.s32.totalorder %s106, %s109
    %p115 = scmp.eq.s32.totalorder %s9, 0
    %p116 = por %p114, %p115
    %p117 = scmp.ne.s32.totalorder %s106, %s109
    %p118 = scmp.eq.s32.totalorder %s14, 8
    %p119 = por %p117, %p118
    %p120 = scmp.ne.s32.totalorder %s109, %s110
    %p121 = scmp.eq.s32.totalorder %s14, 0
    %p122 = por %p120, %p121
    %p123 = scmp.ne.s32.totalorder %s109, %s110
    %p124 = scmp.eq.s32.totalorder %s15, 8
    %p125 = por %p123, %p124
    %p127 = scmp.ne.s32.totalorder %s110, %s126
    %p128 = scmp.eq.s32.totalorder %s15, 0
    %p129 = por %p127, %p128
    %p130 = scmp.le.s32.totalorder 1, %s9
    %p131 = scmp.lt.s32.totalorder %s9, 10
    %p132 = pnand %p130, %p131
    %p133 = pneg %p132
    // Predicated region
    $region9: #{fcn_generator_forward.7} parent=5 // pred_check
      _
    $region10: #{fcn_generator_forward.7} parent=5 // pred_check_branch
      %135 = sbr.rel (%p132) target = $region12
    $region11: #{fcn_generator_forward.7} parent=5 // pred_region
      %s136 = ssub.s32 %s9, 1
      // Predicated region
      $region13: #{fcn_generator_forward.7} parent=11 // pred_check
        %p137 = pneg %p96
      $region14: #{fcn_generator_forward.7} parent=11 // pred_check_branch
        %139 = sbr.rel (%p137) target = $region16
      $region15: #{fcn_generator_forward.7} parent=11 // pred_region
        _
      $region16: #{fcn_generator_forward.7} parent=11 // pred_fallthru
        _
    $region12: #{fcn_generator_forward.7} parent=5 // pred_fallthru
      _
    %p140 = scmp.lt.s32.totalorder %s9, 9
    // Predicated region
    $region17: #{fcn_generator_forward.7} parent=5 // pred_check
      %p141 = pneg %p140
    $region18: #{fcn_generator_forward.7} parent=5 // pred_check_branch
      %143 = sbr.rel (%p141) target = $region20
    $region19: #{fcn_generator_forward.7} parent=5 // pred_region
      // Predicated region
      $region21: #{fcn_generator_forward.7} parent=19 // pred_check
        %p144 = pneg %p43
      $region22: #{fcn_generator_forward.7} parent=19 // pred_check_branch
        %146 = sbr.rel (%p144) target = $region24
      $region23: #{fcn_generator_forward.7} parent=19 // pred_region
        %s147 = smul.u32 16, %s16
        %p148 = scmp.lt.s32.totalorder %s17, 8
        %s149 = scalar_select %p148, %s17, 8
        %p150 = scmp.lt.s32.totalorder %s147, 15
        %s151 = scalar_select %p150, %s147, 15
        %s152 = smul.addr %s149, 16
        %s153 = sadd.s32 %s151, %s152
        %s154 = smul.addr %s153, 4
        %s155 = scalar_lea.vmem %s0, %s154
        %s156 = smul.u32 16, %s16
      $region24: #{fcn_generator_forward.7} parent=19 // pred_fallthru
        _
      // Predicated region
      $region25: #{fcn_generator_forward.7} parent=19 // pred_check
        %p157 = pneg %p69
      $region26: #{fcn_generator_forward.7} parent=19 // pred_check_branch
        %159 = sbr.rel (%p157) target = $region28
      $region27: #{fcn_generator_forward.7} parent=19 // pred_region
        %p160 = scmp.lt.s32.totalorder %s17, 8
        %s161 = scalar_select %p160, %s17, 8
        %s162 = smul.addr %s161, 8
        %s163 = smul.addr %s162, 4
        %s164 = scalar_lea.vmem %s1, %s163
      $region28: #{fcn_generator_forward.7} parent=19 // pred_fallthru
        _
    $region20: #{fcn_generator_forward.7} parent=5 // pred_fallthru
      _
    %p165 = scmp.le.s32.totalorder 1, %s9
    %p166 = scmp.lt.s32.totalorder %s9, 10
    %p167 = pnand %p165, %p166
    %p168 = pneg %p167
    // Predicated region
    $region29: #{fcn_generator_forward.7} parent=5 // pred_check
      _
    $region30: #{fcn_generator_forward.7} parent=5 // pred_check_branch
      %170 = sbr.rel (%p167) target = $region32
    $region31: #{fcn_generator_forward.7} parent=5 // pred_region
      %s171 = ssub.s32 %s9, 1
      %s172 = smul.u32 16, %s18
      %p173 = scmp.lt.s32.totalorder %s19, 8
      %s174 = scalar_select %p173, %s19, 8
      %p175 = scmp.lt.s32.totalorder %s172, 15
      %s176 = scalar_select %p175, %s172, 15
      %s177 = smul.addr %s174, 16
      %s178 = sadd.s32 %s176, %s177
      %s179 = smul.addr %s178, 4
      %s180 = scalar_lea.vmem %s0, %s179
      %p181 = pneg %p49
      %p182 = pneg %p46
      %p183 = scmp.lt.s32.totalorder %s19, 8
      %s184 = scalar_select %p183, %s19, 8
      %s185 = smul.addr %s184, 8
      %s186 = smul.addr %s185, 4
      %s187 = scalar_lea.vmem %s1, %s186
      %p188 = pneg %p75
      %p189 = pneg %p72
      %p190 = pneg %p96
      %p191 = pneg %p93
      %p192 = pneg %p122
      %p193 = pneg %p119
      %s194 = smul.u32 16, %s18
      %p195 = scmp.lt.s32.totalorder %s194, 15
      %s196 = scalar_select %p195, %s194, 15
      %s197 = smul.addr %s196, 4
      %s198 = scalar_lea.vmem %s3, %s197
      %s199 = smul.u32 16, %s18
      %p200 = scmp.lt.s32.totalorder %s19, 8
      %s201 = scalar_select %p200, %s19, 8
      %p202 = scmp.lt.s32.totalorder %s199, 15
      %s203 = scalar_select %p202, %s199, 15
      %s204 = smul.addr %s201, 16
      %s205 = sadd.s32 %s203, %s204
      %s206 = smul.addr %s205, 4
      %s207 = scalar_lea.vmem %s0, %s206
      %s208 = smul.u32 16, %s18
      %p209 = scmp.lt.s32.totalorder %s19, 8
      %s210 = scalar_select %p209, %s19, 8
      %s211 = smul.addr %s210, 8
      %s212 = smul.addr %s211, 4
      %s213 = scalar_lea.vmem %s1, %s212
      %s214 = smul.u32 16, %s18
      %p215 = scmp.lt.s32.totalorder %s214, 15
      %s216 = scalar_select %p215, %s214, 15
      %s217 = smul.addr %s216, 4
      %s218 = scalar_lea.vmem %s3, %s217
      %s219 = smul.u32 16, %s18
      %p221 = scmp.eq.s32.totalorder %s19, 0
      // Predicated region
      $region33: #{fcn_generator_forward.7} parent=31 // pred_check
        %p222 = pneg %p221
      $region34: #{fcn_generator_forward.7} parent=31 // pred_check_branch
        %224 = sbr.rel (%p222) target = $region36
      $region35: #{fcn_generator_forward.7} parent=31 // pred_region
        %225 = vst [vmem:[#allocation2] sm:$0xff] 0.0
        %226 = vst [vmem:[#allocation2 + $0x8] sm:$0xff] 0.0
        %227 = vst [vmem:[#allocation2 + $0x10] sm:$0xff] 0.0
        %228 = vst [vmem:[#allocation2 + $0x18] sm:$0xff] 0.0
        %229 = vst [vmem:[#allocation2 + $0x20] sm:$0xff] 0.0
        %230 = vst [vmem:[#allocation2 + $0x28] sm:$0xff] 0.0
        %231 = vst [vmem:[#allocation2 + $0x30] sm:$0xff] 0.0
        %232 = vst [vmem:[#allocation2 + $0x38] sm:$0xff] 0.0
        %233 = vst [vmem:[#allocation2 + $0x40] sm:$0xff] 0.0
        %234 = vst [vmem:[#allocation2 + $0x48] sm:$0xff] 0.0
        %235 = vst [vmem:[#allocation2 + $0x50] sm:$0xff] 0.0
        %236 = vst [vmem:[#allocation2 + $0x58] sm:$0xff] 0.0
        %237 = vst [vmem:[#allocation2 + $0x60] sm:$0xff] 0.0
        %238 = vst [vmem:[#allocation2 + $0x68] sm:$0xff] 0.0
        %239 = vst [vmem:[#allocation2 + $0x70] sm:$0xff] 0.0
        %240 = vst [vmem:[#allocation2 + $0x78] sm:$0xff] 0.0
      $region36: #{fcn_generator_forward.7} parent=31 // pred_fallthru
        _
      %v241 = vld [vmem:[#allocation2] sm:$0xff]
      %v242 = vld [vmem:[#allocation2 + $0x8] sm:$0xff]
      %v243 = vld [vmem:[#allocation2 + $0x10] sm:$0xff]
      %v244 = vld [vmem:[#allocation2 + $0x18] sm:$0xff]
      %v245 = vld [vmem:[#allocation2 + $0x20] sm:$0xff]
      %v246 = vld [vmem:[#allocation2 + $0x28] sm:$0xff]
      %v247 = vld [vmem:[#allocation2 + $0x30] sm:$0xff]
      %v248 = vld [vmem:[#allocation2 + $0x38] sm:$0xff]
      %v249 = vld [vmem:[#allocation2 + $0x40] sm:$0xff]
      %v250 = vld [vmem:[#allocation2 + $0x48] sm:$0xff]
      %v251 = vld [vmem:[#allocation2 + $0x50] sm:$0xff]
      %v252 = vld [vmem:[#allocation2 + $0x58] sm:$0xff]
      %v253 = vld [vmem:[#allocation2 + $0x60] sm:$0xff]
      %v254 = vld [vmem:[#allocation2 + $0x68] sm:$0xff]
      %v255 = vld [vmem:[#allocation2 + $0x70] sm:$0xff]
      %v256 = vld [vmem:[#allocation2 + $0x78] sm:$0xff]
      %v257 = vld [vmem:[%s207] sm:$0xf]
      %v258 = vld [vmem:[%s207 + $0x4] sm:$0xf]
      %v259 = vld [vmem:[%s207 + $0x8] sm:$0xf]
      %v260 = vld [vmem:[%s207 + $0xc] sm:$0xf]
      %v261 = vld [vmem:[%s207 + $0x10] sm:$0xf]
      %v262 = vld [vmem:[%s207 + $0x14] sm:$0xf]
      %v263 = vld [vmem:[%s207 + $0x18] sm:$0xf]
      %v264 = vld [vmem:[%s207 + $0x1c] sm:$0xf]
      %v265 = vld [vmem:[%s207 + $0x20] sm:$0xf]
      %v266 = vld [vmem:[%s207 + $0x24] sm:$0xf]
      %v267 = vld [vmem:[%s207 + $0x28] sm:$0xf]
      %v268 = vld [vmem:[%s207 + $0x2c] sm:$0xf]
      %v269 = vld [vmem:[%s207 + $0x30] sm:$0xf]
      %v270 = vld [vmem:[%s207 + $0x34] sm:$0xf]
      %v271 = vld [vmem:[%s207 + $0x38] sm:$0xf]
      %v272 = vld [vmem:[%s207 + $0x3c] sm:$0xf]
      %v273 = vld [vmem:[%s213] sm:$0xf]
      %v274 = vld [vmem:[%s213 + $0x4] sm:$0xf]
      %v275 = vld [vmem:[%s213 + $0x8] sm:$0xf]
      %v276 = vld [vmem:[%s213 + $0xc] sm:$0xf]
      %v277 = vld [vmem:[%s213 + $0x10] sm:$0xf]
      %v278 = vld [vmem:[%s213 + $0x14] sm:$0xf]
      %v279 = vld [vmem:[%s213 + $0x18] sm:$0xf]
      %v280 = vld [vmem:[%s213 + $0x1c] sm:$0xf]
      %v297 = vunpack.c.l.b16 %v257
      %v298 = vunpack.c.l.b16 %v258
      %v299 = vunpack.c.l.b16 %v259
      %v300 = vunpack.c.l.b16 %v260
      %v301 = vunpack.c.l.b16 %v261
      %v302 = vunpack.c.l.b16 %v262
      %v303 = vunpack.c.l.b16 %v263
      %v304 = vunpack.c.l.b16 %v264
      %v305 = vunpack.c.l.b16 %v265
      %v306 = vunpack.c.l.b16 %v266
      %v307 = vunpack.c.l.b16 %v267
      %v308 = vunpack.c.l.b16 %v268
      %v309 = vunpack.c.l.b16 %v269
      %v310 = vunpack.c.l.b16 %v270
      %v311 = vunpack.c.l.b16 %v271
      %v312 = vunpack.c.l.b16 %v272
      %v313 = vpack.c.b16 %v298, %v297
      %v314 = vpack.c.b16 %v300, %v299
      %v315 = vpack.c.b16 %v302, %v301
      %v316 = vpack.c.b16 %v304, %v303
      %v317 = vpack.c.b16 %v306, %v305
      %v318 = vpack.c.b16 %v308, %v307
      %v319 = vpack.c.b16 %v310, %v309
      %v320 = vpack.c.b16 %v312, %v311
      %v329 = vunpack.c.l.b16 %v273
      %v330 = vunpack.c.l.b16 %v274
      %v331 = vunpack.c.l.b16 %v275
      %v332 = vunpack.c.l.b16 %v276
      %v333 = vunpack.c.l.b16 %v277
      %v334 = vunpack.c.l.b16 %v278
      %v335 = vunpack.c.l.b16 %v279
      %v336 = vunpack.c.l.b16 %v280
      %v337 = vpack.c.b16 %v330, %v329
      %v338 = vpack.c.b16 %v332, %v331
      %v339 = vpack.c.b16 %v334, %v333
      %v340 = vpack.c.b16 %v336, %v335
      %vm345 = vcmask 523264
      %v347 = vsel %vm345, %v313, 0
      %v350 = vsel %vm345, %v314, 0
      %v353 = vsel %vm345, %v315, 0
      %v356 = vsel %vm345, %v316, 0
      %v359 = vsel %vm345, %v317, 0
      %v362 = vsel %vm345, %v318, 0
      %v365 = vsel %vm345, %v319, 0
      %v368 = vsel %vm345, %v320, 0
      %370 = vmatprep.subr.bf16.mxu0 0
      %371 = vmatpush1.bf16.msra.mxu0 %v337
      %372 = vmatprep.subr.bf16.mxu0 0
      %373 = vmatpush1.bf16.msra.mxu0 %v338
      %374 = vmatprep.subr.bf16.mxu0 0
      %375 = vmatpush1.bf16.msra.mxu0 %v339
      %376 = vmatprep.subr.bf16.mxu0 0
      %377 = vmatpush1.bf16.msra.mxu0 %v340
      %378 = vmatprep.subr.bf16.mxu0 0
      %379 = vmatpush1.bf16.msra.mxu0 0
      %380 = vmatprep.subr.bf16.mxu0 0
      %381 = vmatpush1.bf16.msra.mxu0 0
      %382 = vmatprep.subr.bf16.mxu0 0
      %383 = vmatpush1.bf16.msra.mxu0 0
      %384 = vmatprep.subr.bf16.mxu0 0
      %385 = vmatpush1.bf16.msra.mxu0 0
      %386 = vmatprep.subr.bf16.mxu0 0
      %387 = vmatpush1.bf16.msra.mxu0 0
      %388 = vmatprep.subr.bf16.mxu0 0
      %389 = vmatpush1.bf16.msra.mxu0 0
      %390 = vmatprep.subr.bf16.mxu0 0
      %391 = vmatpush1.bf16.msra.mxu0 0
      %392 = vmatprep.subr.bf16.mxu0 0
      %393 = vmatpush1.bf16.msra.mxu0 0
      %394 = vmatprep.subr.bf16.mxu0 0
      %395 = vmatpush1.bf16.msra.mxu0 0
      %396 = vmatprep.subr.bf16.mxu0 0
      %397 = vmatpush1.bf16.msra.mxu0 0
      %398 = vmatprep.subr.bf16.mxu0 0
      %399 = vmatpush1.bf16.msra.mxu0 0
      %400 = vmatprep.subr.bf16.mxu0 0
      %401 = vmatpush1.bf16.msra.mxu0 0
      %402 = vmatprep.mubr.bf16.mxu0 0
      %403 = vmatmul.mubr.bf16.gmra.mrb[0].mxu0 %v347
      %v404 = vpop.f32.mrb[0].mxu0
      %v405 = vadd.f32 0.0, %v404
      %v406 = vpop.f32.mrb[0].mxu0
      %v407 = vpop.f32.mrb[0].mxu0
      %v408 = vadd.f32 0.0, %v407
      %v409 = vpop.f32.mrb[0].mxu0
      %410 = vmatprep.mubr.bf16.mxu0 0
      %411 = vmatmul.mubr.bf16.gmra.mrb[0].mxu0 %v350
      %v412 = vpop.f32.mrb[0].mxu0
      %v413 = vadd.f32 0.0, %v412
      %v414 = vpop.f32.mrb[0].mxu0
      %v415 = vpop.f32.mrb[0].mxu0
      %v416 = vadd.f32 0.0, %v415
      %v417 = vpop.f32.mrb[0].mxu0
      %418 = vmatprep.mubr.bf16.mxu0 0
      %419 = vmatmul.mubr.bf16.gmra.mrb[0].mxu0 %v353
      %v420 = vpop.f32.mrb[0].mxu0
      %v421 = vadd.f32 0.0, %v420
      %v422 = vpop.f32.mrb[0].mxu0
      %v423 = vpop.f32.mrb[0].mxu0
      %v424 = vadd.f32 0.0, %v423
      %v425 = vpop.f32.mrb[0].mxu0
      %426 = vmatprep.mubr.bf16.mxu0 0
      %427 = vmatmul.mubr.bf16.gmra.mrb[0].mxu0 %v356
      %v428 = vpop.f32.mrb[0].mxu0
      %v429 = vadd.f32 0.0, %v428
      %v430 = vpop.f32.mrb[0].mxu0
      %v431 = vpop.f32.mrb[0].mxu0
      %v432 = vadd.f32 0.0, %v431
      %v433 = vpop.f32.mrb[0].mxu0
      %434 = vmatprep.mubr.bf16.mxu0 0
      %435 = vmatmul.mubr.bf16.gmra.mrb[0].mxu0 %v359
      %v436 = vpop.f32.mrb[0].mxu0
      %v437 = vadd.f32 0.0, %v436
      %v438 = vpop.f32.mrb[0].mxu0
      %v439 = vpop.f32.mrb[0].mxu0
      %v440 = vadd.f32 0.0, %v439
      %v441 = vpop.f32.mrb[0].mxu0
      %442 = vmatprep.mubr.bf16.mxu0 0
      %443 = vmatmul.mubr.bf16.gmra.mrb[0].mxu0 %v362
      %v444 = vpop.f32.mrb[0].mxu0
      %v445 = vadd.f32 0.0, %v444
      %v446 = vpop.f32.mrb[0].mxu0
      %v447 = vpop.f32.mrb[0].mxu0
      %v448 = vadd.f32 0.0, %v447
      %v449 = vpop.f32.mrb[0].mxu0
      %450 = vmatprep.mubr.bf16.mxu0 0
      %451 = vmatmul.mubr.bf16.gmra.mrb[0].mxu0 %v365
      %v452 = vpop.f32.mrb[0].mxu0
      %v453 = vadd.f32 0.0, %v452
      %v454 = vpop.f32.mrb[0].mxu0
      %v455 = vpop.f32.mrb[0].mxu0
      %v456 = vadd.f32 0.0, %v455
      %v457 = vpop.f32.mrb[0].mxu0
      %458 = vmatprep.mubr.bf16.mxu0 0
      %459 = vmatmul.mubr.bf16.gmra.mrb[0].mxu0 %v368
      %v460 = vpop.f32.mrb[0].mxu0
      %v461 = vadd.f32 0.0, %v460
      %v462 = vpop.f32.mrb[0].mxu0
      %v463 = vpop.f32.mrb[0].mxu0
      %v464 = vadd.f32 0.0, %v463
      %v465 = vpop.f32.mrb[0].mxu0
      %466 = vdwg.mxu0
      %v467 = vadd.f32 %v241, %v405
      %v468 = vadd.f32 %v242, %v408
      %v469 = vadd.f32 %v243, %v413
      %v470 = vadd.f32 %v244, %v416
      %v471 = vadd.f32 %v245, %v421
      %v472 = vadd.f32 %v246, %v424
      %v473 = vadd.f32 %v247, %v429
      %v474 = vadd.f32 %v248, %v432
      %v475 = vadd.f32 %v249, %v437
      %v476 = vadd.f32 %v250, %v440
      %v477 = vadd.f32 %v251, %v445
      %v478 = vadd.f32 %v252, %v448
      %v479 = vadd.f32 %v253, %v453
      %v480 = vadd.f32 %v254, %v456
      %v481 = vadd.f32 %v255, %v461
      %v482 = vadd.f32 %v256, %v464
      %483 = vst [vmem:[#allocation2] sm:$0xff] %v467
      %484 = vst [vmem:[#allocation2 + $0x8] sm:$0xff] %v468
      %485 = vst [vmem:[#allocation2 + $0x10] sm:$0xff] %v469
      %486 = vst [vmem:[#allocation2 + $0x18] sm:$0xff] %v470
      %487 = vst [vmem:[#allocation2 + $0x20] sm:$0xff] %v471
      %488 = vst [vmem:[#allocation2 + $0x28] sm:$0xff] %v472
      %489 = vst [vmem:[#allocation2 + $0x30] sm:$0xff] %v473
      %490 = vst [vmem:[#allocation2 + $0x38] sm:$0xff] %v474
      %491 = vst [vmem:[#allocation2 + $0x40] sm:$0xff] %v475
      %492 = vst [vmem:[#allocation2 + $0x48] sm:$0xff] %v476
      %493 = vst [vmem:[#allocation2 + $0x50] sm:$0xff] %v477
      %494 = vst [vmem:[#allocation2 + $0x58] sm:$0xff] %v478
      %495 = vst [vmem:[#allocation2 + $0x60] sm:$0xff] %v479
      %496 = vst [vmem:[#allocation2 + $0x68] sm:$0xff] %v480
      %497 = vst [vmem:[#allocation2 + $0x70] sm:$0xff] %v481
      %498 = vst [vmem:[#allocation2 + $0x78] sm:$0xff] %v482
      %p499 = scmp.eq.s32.totalorder %s19, 8
      // Predicated region
      $region37: #{fcn_generator_forward.7} parent=31 // pred_check
        %p500 = pneg %p499
      $region38: #{fcn_generator_forward.7} parent=31 // pred_check_branch
        %502 = sbr.rel (%p500) target = $region40
      $region39: #{fcn_generator_forward.7} parent=31 // pred_region
        %v503 = vld [vmem:[#allocation2] sm:$0xff]
        %v504 = vld [vmem:[#allocation2 + $0x8] sm:$0xff]
        %v505 = vld [vmem:[#allocation2 + $0x10] sm:$0xff]
        %v506 = vld [vmem:[#allocation2 + $0x18] sm:$0xff]
        %v507 = vld [vmem:[#allocation2 + $0x20] sm:$0xff]
        %v508 = vld [vmem:[#allocation2 + $0x28] sm:$0xff]
        %v509 = vld [vmem:[#allocation2 + $0x30] sm:$0xff]
        %v510 = vld [vmem:[#allocation2 + $0x38] sm:$0xff]
        %v511 = vld [vmem:[#allocation2 + $0x40] sm:$0xff]
        %v512 = vld [vmem:[#allocation2 + $0x48] sm:$0xff]
        %v513 = vld [vmem:[#allocation2 + $0x50] sm:$0xff]
        %v514 = vld [vmem:[#allocation2 + $0x58] sm:$0xff]
        %v515 = vld [vmem:[#allocation2 + $0x60] sm:$0xff]
        %v516 = vld [vmem:[#allocation2 + $0x68] sm:$0xff]
        %v517 = vld [vmem:[#allocation2 + $0x70] sm:$0xff]
        %v518 = vld [vmem:[#allocation2 + $0x78] sm:$0xff]
        %v519 = vld [vmem:[%s2] sm:$0x1]
        %v521 = vlaneseq
        %v522 = vshrl.u32 %v521, 7
        %v523 = vsub.s32 0, %v522
        %v524 = vrot.slane %v519, %v523
        %v526 = vadd.f32 %v503, %v524
        %v527 = vadd.f32 %v504, %v524
        %v528 = vadd.f32 %v505, %v524
        %v529 = vadd.f32 %v506, %v524
        %v530 = vadd.f32 %v507, %v524
        %v531 = vadd.f32 %v508, %v524
        %v532 = vadd.f32 %v509, %v524
        %v533 = vadd.f32 %v510, %v524
        %v534 = vadd.f32 %v511, %v524
        %v535 = vadd.f32 %v512, %v524
        %v536 = vadd.f32 %v513, %v524
        %v537 = vadd.f32 %v514, %v524
        %v538 = vadd.f32 %v515, %v524
        %v539 = vadd.f32 %v516, %v524
        %v540 = vadd.f32 %v517, %v524
        %v541 = vadd.f32 %v518, %v524
        %v542 = vmax.f32 %v526, 0.0
        %v543 = vmax.f32 %v527, 0.0
        %v544 = vmax.f32 %v528, 0.0
        %v545 = vmax.f32 %v529, 0.0
        %v546 = vmax.f32 %v530, 0.0
        %v547 = vmax.f32 %v531, 0.0
        %v548 = vmax.f32 %v532, 0.0
        %v549 = vmax.f32 %v533, 0.0
        %v550 = vmax.f32 %v534, 0.0
        %v551 = vmax.f32 %v535, 0.0
        %v552 = vmax.f32 %v536, 0.0
        %v553 = vmax.f32 %v537, 0.0
        %v554 = vmax.f32 %v538, 0.0
        %v555 = vmax.f32 %v539, 0.0
        %v556 = vmax.f32 %v540, 0.0
        %v557 = vmax.f32 %v541, 0.0
        %v558 = vpack.c.bf16 %v543, %v542
        %v559 = vpack.c.bf16 %v545, %v544
        %v560 = vpack.c.bf16 %v547, %v546
        %v561 = vpack.c.bf16 %v549, %v548
        %v562 = vpack.c.bf16 %v551, %v550
        %v563 = vpack.c.bf16 %v553, %v552
        %v564 = vpack.c.bf16 %v555, %v554
        %v565 = vpack.c.bf16 %v557, %v556
        %v574 = vunpack.c.l.b16 %v558
        %v575 = vunpack.c.h.b16 %v558
        %v576 = vunpack.c.l.b16 %v559
        %v577 = vunpack.c.h.b16 %v559
        %v578 = vunpack.c.l.b16 %v560
        %v579 = vunpack.c.h.b16 %v560
        %v580 = vunpack.c.l.b16 %v561
        %v581 = vunpack.c.h.b16 %v561
        %v582 = vunpack.c.l.b16 %v562
        %v583 = vunpack.c.h.b16 %v562
        %v584 = vunpack.c.l.b16 %v563
        %v585 = vunpack.c.h.b16 %v563
        %v586 = vunpack.c.l.b16 %v564
        %v587 = vunpack.c.h.b16 %v564
        %v588 = vunpack.c.l.b16 %v565
        %v589 = vunpack.c.h.b16 %v565
        %v590 = vpack.c.b16 %v574, %v574
        %v591 = vpack.c.b16 %v575, %v575
        %v592 = vpack.c.b16 %v576, %v576
        %v593 = vpack.c.b16 %v577, %v577
        %v594 = vpack.c.b16 %v578, %v578
        %v595 = vpack.c.b16 %v579, %v579
        %v596 = vpack.c.b16 %v580, %v580
        %v597 = vpack.c.b16 %v581, %v581
        %v598 = vpack.c.b16 %v582, %v582
        %v599 = vpack.c.b16 %v583, %v583
        %v600 = vpack.c.b16 %v584, %v584
        %v601 = vpack.c.b16 %v585, %v585
        %v602 = vpack.c.b16 %v586, %v586
        %v603 = vpack.c.b16 %v587, %v587
        %v604 = vpack.c.b16 %v588, %v588
        %v605 = vpack.c.b16 %v589, %v589
        %622 = vst [vmem:[%s218] sm:$0xf] %v590
        %623 = vst [vmem:[%s218 + $0x4] sm:$0xf] %v591
        %624 = vst [vmem:[%s218 + $0x8] sm:$0xf] %v592
        %625 = vst [vmem:[%s218 + $0xc] sm:$0xf] %v593
        %626 = vst [vmem:[%s218 + $0x10] sm:$0xf] %v594
        %627 = vst [vmem:[%s218 + $0x14] sm:$0xf] %v595
        %628 = vst [vmem:[%s218 + $0x18] sm:$0xf] %v596
        %629 = vst [vmem:[%s218 + $0x1c] sm:$0xf] %v597
        %630 = vst [vmem:[%s218 + $0x20] sm:$0xf] %v598
        %631 = vst [vmem:[%s218 + $0x24] sm:$0xf] %v599
        %632 = vst [vmem:[%s218 + $0x28] sm:$0xf] %v600
        %633 = vst [vmem:[%s218 + $0x2c] sm:$0xf] %v601
        %634 = vst [vmem:[%s218 + $0x30] sm:$0xf] %v602
        %635 = vst [vmem:[%s218 + $0x34] sm:$0xf] %v603
        %636 = vst [vmem:[%s218 + $0x38] sm:$0xf] %v604
        %637 = vst [vmem:[%s218 + $0x3c] sm:$0xf] %v605
      $region40: #{fcn_generator_forward.7} parent=31 // pred_fallthru
        _
      %s638 = smul.u32 16, %s18
      %p639 = scmp.lt.s32.totalorder %s638, 15
      %s640 = scalar_select %p639, %s638, 15
      %s641 = smul.addr %s640, 4
      %s642 = scalar_lea.vmem %s3, %s641
      // Predicated region
      $region41: #{fcn_generator_forward.7} parent=31 // pred_check
        %p643 = pneg %p119
      $region42: #{fcn_generator_forward.7} parent=31 // pred_check_branch
        %645 = sbr.rel (%p643) target = $region44
      $region43: #{fcn_generator_forward.7} parent=31 // pred_region
        %s646 = smul.u32 16, %s18
      $region44: #{fcn_generator_forward.7} parent=31 // pred_fallthru
        _
      // Predicated region
      $region45: #{fcn_generator_forward.7} parent=31 // pred_check
        %p647 = pneg %p119
      $region46: #{fcn_generator_forward.7} parent=31 // pred_check_branch
        %649 = sbr.rel (%p647) target = $region48
      $region47: #{fcn_generator_forward.7} parent=31 // pred_region
        %s650 = smul.u32 16, %s18
        %p651 = scmp.lt.s32.totalorder %s650, 15
        %s652 = scalar_select %p651, %s650, 15
        %s653 = smul.addr %s652, 4
        %s654 = scalar_lea.vmem %s3, %s653
      $region48: #{fcn_generator_forward.7} parent=31 // pred_fallthru
        _
    $region32: #{fcn_generator_forward.7} parent=5 // pred_fallthru
      _
    %p655 = scmp.le.s32.totalorder 2, %s9
    // Predicated region
    $region49: #{fcn_generator_forward.7} parent=5 // pred_check
      %p656 = pneg %p655
    $region50: #{fcn_generator_forward.7} parent=5 // pred_check_branch
      %658 = sbr.rel (%p656) target = $region52
    $region51: #{fcn_generator_forward.7} parent=5 // pred_region
      %s659 = ssub.s32 %s9, 2
    $region52: #{fcn_generator_forward.7} parent=5 // pred_fallthru
      _
  $region6: #{fcn_generator_forward.7} parent=0 // loop_footer
    %s13 = sadd.s32 1, %s9
  $region7: #{fcn_generator_forward.7} parent=0 // loop_footer_branch
    %8 = sbr.rel target = $region3
  $region8: #{fcn_generator_forward.7} parent=0 // loop_exit
    _

// kernel: fcn_generator_forward.8
$region0: #{fcn_generator_forward.8}
  #allocation0 [shape = 'u32[]', space=smem, size = 0x4, offset = 0x4, fixed_abs, tag = 'smem constant byte address 0x4 - core index']
  #allocation1 [shape = 'u32[144,128]{1,0:T(1,128)}', space=vmem, size = 0x12000, scoped, tag = 'internal scratch']
  #allocation2 [shape = 'f32[32,256]{1,0:T(8,128)}', space=vmem, size = 0x8000, scoped, tag = 'scratch operand']
  %s0 = inlined_call_operand.vmem [shape: bf16[9,32,128], index: 0, kind: input, shape index: {}]
  %s1 = inlined_call_operand.vmem [shape: bf16[9,128,256], index: 1, kind: input, shape index: {}]
  %s2 = inlined_call_operand.vmem [shape: f32[1,256], index: 2, kind: input, shape index: {}]
  %s3 = inlined_call_operand.vmem [shape: bf16[32,256], index: 3, kind: output, shape index: {}]
  %s4 = sld [smem:[#allocation0]]
  $region53: #{fcn_generator_forward.8} parent=0
    _
  %s6 = ssub.s32 1, %s4
  %s7 = scalar_select 0, %s6, %s4
  loop: start=0, step=1, limit=11
  $region2: #{fcn_generator_forward.8} parent=0 // loop_pre_header
    _
  $region3: #{fcn_generator_forward.8} parent=0 // loop_header
    %s9 = sphi 0, %s13
    %p10 = scmp.ge.s32.totalorder %s9, 11
    %s16 = sphi 0, %s28
    %s17 = sphi 0, %s24
    %s18 = sphi 0, %s16
    %s19 = sphi 0, %s17
    %s20 = sphi 0, %s18
    %s21 = sphi 0, %s19
    %s33 = sphi 0, %s35
    %s36 = sphi 0, %s33
    %s37 = sphi 0, %s36
    %s53 = sphi 0, %s37
    %s59 = sphi 0, %s61
    %s62 = sphi 0, %s59
    %s63 = sphi 0, %s62
    %s79 = sphi 0, %s63
    %s83 = sphi 0, %s83
    %s85 = sphi 0, %s83
    %s86 = sphi 0, %s85
    %s100 = sphi 0, %s86
    %s106 = sphi 0, %s108
    %s109 = sphi 0, %s106
    %s110 = sphi 0, %s109
    %s126 = sphi 0, %s110
  $region4: #{fcn_generator_forward.8} parent=0 // loop_header_branch
    %12 = sbr.rel (%p10) target = $region8
  $region5: #{fcn_generator_forward.8} parent=0 // loop_body
    %s14 = ssub.s32 %s9, 1
    %s15 = ssub.s32 %s9, 2
    %s22 = sadd.s32 1, %s17
    %p23 = scmp.ge.s32.totalorder %s22, 9
    %s24 = scalar_select %p23, 0, %s22
    %s25 = sadd.s32 1, %s16
    %s26 = scalar_select %p23, %s25, %s16
    %p27 = scmp.ge.s32.totalorder %s26, 1
    %s28 = scalar_select %p27, 0, %s26
    %s29 = ssub.s32 %s17, %s24
    %s30 = ssub.s32 %s16, %s28
    %s31 = sor.u32 %s29, %s30
    %p32 = scmp.eq.s32.totalorder %s31, 0
    %s34 = sadd.s32 %s33, 1
    %s35 = scalar_select %p32, %s33, %s34
    %p38 = pneg %p32
    %p39 = scmp.eq.s32.totalorder %s9, 8
    %p40 = por %p38, %p39
    %p41 = scmp.ne.s32.totalorder %s33, %s36
    %p42 = scmp.eq.s32.totalorder %s9, 0
    %p43 = por %p41, %p42
    %p44 = scmp.ne.s32.totalorder %s33, %s36
    %p45 = scmp.eq.s32.totalorder %s14, 8
    %p46 = por %p44, %p45
    %p47 = scmp.ne.s32.totalorder %s36, %s37
    %p48 = scmp.eq.s32.totalorder %s14, 0
    %p49 = por %p47, %p48
    %p50 = scmp.ne.s32.totalorder %s36, %s37
    %p51 = scmp.eq.s32.totalorder %s15, 8
    %p52 = por %p50, %p51
    %p54 = scmp.ne.s32.totalorder %s37, %s53
    %p55 = scmp.eq.s32.totalorder %s15, 0
    %p56 = por %p54, %p55
    %s57 = ssub.s32 %s17, %s24
    %p58 = scmp.eq.s32.totalorder %s57, 0
    %s60 = sadd.s32 %s59, 1
    %s61 = scalar_select %p58, %s59, %s60
    %p64 = pneg %p58
    %p65 = scmp.eq.s32.totalorder %s9, 8
    %p66 = por %p64, %p65
    %p67 = scmp.ne.s32.totalorder %s59, %s62
    %p68 = scmp.eq.s32.totalorder %s9, 0
    %p69 = por %p67, %p68
    %p70 = scmp.ne.s32.totalorder %s59, %s62
    %p71 = scmp.eq.s32.totalorder %s14, 8
    %p72 = por %p70, %p71
    %p73 = scmp.ne.s32.totalorder %s62, %s63
    %p74 = scmp.eq.s32.totalorder %s14, 0
    %p75 = por %p73, %p74
    %p76 = scmp.ne.s32.totalorder %s62, %s63
    %p77 = scmp.eq.s32.totalorder %s15, 8
    %p78 = por %p76, %p77
    %p80 = scmp.ne.s32.totalorder %s63, %s79
    %p81 = scmp.eq.s32.totalorder %s15, 0
    %p82 = por %p80, %p81
    %s84 = sadd.s32 %s83, 1
    %p87 = scmp.eq.s32.totalorder %s9, 8
    %p88 = scmp.ne.s32.totalorder %s83, %s85
    %p89 = scmp.eq.s32.totalorder %s9, 0
    %p90 = por %p88, %p89
    %p91 = scmp.ne.s32.totalorder %s83, %s85
    %p92 = scmp.eq.s32.totalorder %s14, 8
    %p93 = por %p91, %p92
    %p94 = scmp.ne.s32.totalorder %s85, %s86
    %p95 = scmp.eq.s32.totalorder %s14, 0
    %p96 = por %p94, %p95
    %p97 = scmp.ne.s32.totalorder %s85, %s86
    %p98 = scmp.eq.s32.totalorder %s15, 8
    %p99 = por %p97, %p98
    %p101 = scmp.ne.s32.totalorder %s86, %s100
    %p102 = scmp.eq.s32.totalorder %s15, 0
    %p103 = por %p101, %p102
    %s104 = ssub.s32 %s16, %s28
    %p105 = scmp.eq.s32.totalorder %s104, 0
    %s107 = sadd.s32 %s106, 1
    %s108 = scalar_select %p105, %s106, %s107
    %p111 = pneg %p105
    %p112 = scmp.eq.s32.totalorder %s9, 8
    %p113 = por %p111, %p112
    %p114 = scmp.ne.s32.totalorder %s106, %s109
    %p115 = scmp.eq.s32.totalorder %s9, 0
    %p116 = por %p114, %p115
    %p117 = scmp.ne.s32.totalorder %s106, %s109
    %p118 = scmp.eq.s32.totalorder %s14, 8
    %p119 = por %p117, %p118
    %p120 = scmp.ne.s32.totalorder %s109, %s110
    %p121 = scmp.eq.s32.totalorder %s14, 0
    %p122 = por %p120, %p121
    %p123 = scmp.ne.s32.totalorder %s109, %s110
    %p124 = scmp.eq.s32.totalorder %s15, 8
    %p125 = por %p123, %p124
    %p127 = scmp.ne.s32.totalorder %s110, %s126
    %p128 = scmp.eq.s32.totalorder %s15, 0
    %p129 = por %p127, %p128
    %p130 = scmp.le.s32.totalorder 1, %s9
    %p131 = scmp.lt.s32.totalorder %s9, 10
    %p132 = pnand %p130, %p131
    %p133 = pneg %p132
    // Predicated region
    $region9: #{fcn_generator_forward.8} parent=5 // pred_check
      _
    $region10: #{fcn_generator_forward.8} parent=5 // pred_check_branch
      %135 = sbr.rel (%p132) target = $region12
    $region11: #{fcn_generator_forward.8} parent=5 // pred_region
      %s136 = ssub.s32 %s9, 1
      // Predicated region
      $region13: #{fcn_generator_forward.8} parent=11 // pred_check
        %p137 = pneg %p96
      $region14: #{fcn_generator_forward.8} parent=11 // pred_check_branch
        %139 = sbr.rel (%p137) target = $region16
      $region15: #{fcn_generator_forward.8} parent=11 // pred_region
        _
      $region16: #{fcn_generator_forward.8} parent=11 // pred_fallthru
        _
    $region12: #{fcn_generator_forward.8} parent=5 // pred_fallthru
      _
    %p140 = scmp.lt.s32.totalorder %s9, 9
    // Predicated region
    $region17: #{fcn_generator_forward.8} parent=5 // pred_check
      %p141 = pneg %p140
    $region18: #{fcn_generator_forward.8} parent=5 // pred_check_branch
      %143 = sbr.rel (%p141) target = $region20
    $region19: #{fcn_generator_forward.8} parent=5 // pred_region
      // Predicated region
      $region21: #{fcn_generator_forward.8} parent=19 // pred_check
        %p144 = pneg %p43
      $region22: #{fcn_generator_forward.8} parent=19 // pred_check_branch
        %146 = sbr.rel (%p144) target = $region24
      $region23: #{fcn_generator_forward.8} parent=19 // pred_region
        %s147 = smul.u32 4, %s16
        %p148 = scmp.lt.s32.totalorder %s17, 8
        %s149 = scalar_select %p148, %s17, 8
        %p150 = scmp.lt.s32.totalorder %s147, 3
        %s151 = scalar_select %p150, %s147, 3
        %s152 = smul.addr %s149, 4
        %s153 = sadd.s32 %s151, %s152
        %s154 = smul.addr %s153, 4
        %s155 = scalar_lea.vmem %s0, %s154
        %s156 = smul.u32 4, %s16
      $region24: #{fcn_generator_forward.8} parent=19 // pred_fallthru
        _
      // Predicated region
      $region25: #{fcn_generator_forward.8} parent=19 // pred_check
        %p157 = pneg %p69
      $region26: #{fcn_generator_forward.8} parent=19 // pred_check_branch
        %159 = sbr.rel (%p157) target = $region28
      $region27: #{fcn_generator_forward.8} parent=19 // pred_region
        %p160 = scmp.lt.s32.totalorder %s17, 8
        %s161 = scalar_select %p160, %s17, 8
        %s162 = smul.addr %s161, 32
        %s163 = smul.addr %s162, 4
        %s164 = scalar_lea.vmem %s1, %s163
      $region28: #{fcn_generator_forward.8} parent=19 // pred_fallthru
        _
    $region20: #{fcn_generator_forward.8} parent=5 // pred_fallthru
      _
    %p165 = scmp.le.s32.totalorder 1, %s9
    %p166 = scmp.lt.s32.totalorder %s9, 10
    %p167 = pnand %p165, %p166
    %p168 = pneg %p167
    // Predicated region
    $region29: #{fcn_generator_forward.8} parent=5 // pred_check
      _
    $region30: #{fcn_generator_forward.8} parent=5 // pred_check_branch
      %170 = sbr.rel (%p167) target = $region32
    $region31: #{fcn_generator_forward.8} parent=5 // pred_region
      %s171 = ssub.s32 %s9, 1
      %s172 = smul.u32 4, %s18
      %p173 = scmp.lt.s32.totalorder %s19, 8
      %s174 = scalar_select %p173, %s19, 8
      %p175 = scmp.lt.s32.totalorder %s172, 3
      %s176 = scalar_select %p175, %s172, 3
      %s177 = smul.addr %s174, 4
      %s178 = sadd.s32 %s176, %s177
      %s179 = smul.addr %s178, 4
      %s180 = scalar_lea.vmem %s0, %s179
      %p181 = pneg %p49
      %p182 = pneg %p46
      %p183 = scmp.lt.s32.totalorder %s19, 8
      %s184 = scalar_select %p183, %s19, 8
      %s185 = smul.addr %s184, 32
      %s186 = smul.addr %s185, 4
      %s187 = scalar_lea.vmem %s1, %s186
      %p188 = pneg %p75
      %p189 = pneg %p72
      %p190 = pneg %p96
      %p191 = pneg %p93
      %p192 = pneg %p122
      %p193 = pneg %p119
      %s194 = smul.u32 4, %s18
      %p195 = scmp.lt.s32.totalorder %s194, 3
      %s196 = scalar_select %p195, %s194, 3
      %s197 = smul.addr %s196, 2
      %s198 = smul.addr %s197, 4
      %s199 = scalar_lea.vmem %s3, %s198
      %s200 = smul.u32 4, %s18
      %p201 = scmp.lt.s32.totalorder %s19, 8
      %s202 = scalar_select %p201, %s19, 8
      %p203 = scmp.lt.s32.totalorder %s200, 3
      %s204 = scalar_select %p203, %s200, 3
      %s205 = smul.addr %s202, 4
      %s206 = sadd.s32 %s204, %s205
      %s207 = smul.addr %s206, 4
      %s208 = scalar_lea.vmem %s0, %s207
      %s209 = smul.u32 4, %s18
      %p210 = scmp.lt.s32.totalorder %s19, 8
      %s211 = scalar_select %p210, %s19, 8
      %s212 = smul.addr %s211, 32
      %s213 = smul.addr %s212, 4
      %s214 = scalar_lea.vmem %s1, %s213
      %s215 = smul.u32 4, %s18
      %p216 = scmp.lt.s32.totalorder %s215, 3
      %s217 = scalar_select %p216, %s215, 3
      %s218 = smul.addr %s217, 2
      %s219 = smul.addr %s218, 4
      %s220 = scalar_lea.vmem %s3, %s219
      %s221 = smul.u32 4, %s18
      %p223 = scmp.eq.s32.totalorder %s19, 0
      // Predicated region
      $region33: #{fcn_generator_forward.8} parent=31 // pred_check
        %p224 = pneg %p223
      $region34: #{fcn_generator_forward.8} parent=31 // pred_check_branch
        %226 = sbr.rel (%p224) target = $region36
      $region35: #{fcn_generator_forward.8} parent=31 // pred_region
        %227 = vst [vmem:[#allocation2] sm:$0xff] 0.0
        %228 = vst [vmem:[#allocation2 + $0x8] sm:$0xff] 0.0
        %229 = vst [vmem:[#allocation2 + $0x10] sm:$0xff] 0.0
        %230 = vst [vmem:[#allocation2 + $0x18] sm:$0xff] 0.0
        %231 = vst [vmem:[#allocation2 + $0x20] sm:$0xff] 0.0
        %232 = vst [vmem:[#allocation2 + $0x28] sm:$0xff] 0.0
        %233 = vst [vmem:[#allocation2 + $0x30] sm:$0xff] 0.0
        %234 = vst [vmem:[#allocation2 + $0x38] sm:$0xff] 0.0
      $region36: #{fcn_generator_forward.8} parent=31 // pred_fallthru
        _
      %v235 = vld [vmem:[#allocation2] sm:$0xff]
      %v236 = vld [vmem:[#allocation2 + $0x8] sm:$0xff]
      %v237 = vld [vmem:[#allocation2 + $0x10] sm:$0xff]
      %v238 = vld [vmem:[#allocation2 + $0x18] sm:$0xff]
      %v239 = vld [vmem:[#allocation2 + $0x20] sm:$0xff]
      %v240 = vld [vmem:[#allocation2 + $0x28] sm:$0xff]
      %v241 = vld [vmem:[#allocation2 + $0x30] sm:$0xff]
      %v242 = vld [vmem:[#allocation2 + $0x38] sm:$0xff]
      %v243 = vld [vmem:[%s208] sm:$0xf]
      %v244 = vld [vmem:[%s208 + $0x4] sm:$0xf]
      %v245 = vld [vmem:[%s208 + $0x8] sm:$0xf]
      %v246 = vld [vmem:[%s208 + $0xc] sm:$0xf]
      %v247 = vld [vmem:[%s214] sm:$0xff]
      %v248 = vld [vmem:[%s214 + $0x8] sm:$0xff]
      %v249 = vld [vmem:[%s214 + $0x10] sm:$0xff]
      %v250 = vld [vmem:[%s214 + $0x18] sm:$0xff]
      %v251 = vld [vmem:[%s214 + $0x20] sm:$0xff]
      %v252 = vld [vmem:[%s214 + $0x28] sm:$0xff]
      %v253 = vld [vmem:[%s214 + $0x30] sm:$0xff]
      %v254 = vld [vmem:[%s214 + $0x38] sm:$0xff]
      %v255 = vld [vmem:[%s214 + $0x40] sm:$0xff]
      %v256 = vld [vmem:[%s214 + $0x48] sm:$0xff]
      %v257 = vld [vmem:[%s214 + $0x50] sm:$0xff]
      %v258 = vld [vmem:[%s214 + $0x58] sm:$0xff]
      %v259 = vld [vmem:[%s214 + $0x60] sm:$0xff]
      %v260 = vld [vmem:[%s214 + $0x68] sm:$0xff]
      %v261 = vld [vmem:[%s214 + $0x70] sm:$0xff]
      %v262 = vld [vmem:[%s214 + $0x78] sm:$0xff]
      %v267 = vunpack.c.l.b16 %v243
      %v268 = vunpack.c.l.b16 %v244
      %v269 = vunpack.c.l.b16 %v245
      %v270 = vunpack.c.l.b16 %v246
      %v271 = vpack.c.b16 %v268, %v267
      %v272 = vpack.c.b16 %v270, %v269
      %v291 = vunpack.c.l.b16 %v247
      %v292 = vunpack.c.h.b16 %v247
      %v293 = vunpack.c.l.b16 %v248
      %v294 = vunpack.c.h.b16 %v248
      %v295 = vunpack.c.l.b16 %v249
      %v296 = vunpack.c.h.b16 %v249
      %v297 = vunpack.c.l.b16 %v250
      %v298 = vunpack.c.h.b16 %v250
      %v299 = vunpack.c.l.b16 %v251
      %v300 = vunpack.c.h.b16 %v251
      %v301 = vunpack.c.l.b16 %v252
      %v302 = vunpack.c.h.b16 %v252
      %v303 = vunpack.c.l.b16 %v253
      %v304 = vunpack.c.h.b16 %v253
      %v305 = vunpack.c.l.b16 %v254
      %v306 = vunpack.c.h.b16 %v254
      %v307 = vunpack.c.l.b16 %v255
      %v308 = vunpack.c.h.b16 %v255
      %v309 = vunpack.c.l.b16 %v256
      %v310 = vunpack.c.h.b16 %v256
      %v311 = vunpack.c.l.b16 %v257
      %v312 = vunpack.c.h.b16 %v257
      %v313 = vunpack.c.l.b16 %v258
      %v314 = vunpack.c.h.b16 %v258
      %v315 = vunpack.c.l.b16 %v259
      %v316 = vunpack.c.h.b16 %v259
      %v317 = vunpack.c.l.b16 %v260
      %v318 = vunpack.c.h.b16 %v260
      %v319 = vunpack.c.l.b16 %v261
      %v320 = vunpack.c.h.b16 %v261
      %v321 = vunpack.c.l.b16 %v262
      %v322 = vunpack.c.h.b16 %v262
      %v323 = vpack.c.b16 %v293, %v291
      %v324 = vpack.c.b16 %v294, %v292
      %v325 = vpack.c.b16 %v297, %v295
      %v326 = vpack.c.b16 %v298, %v296
      %v327 = vpack.c.b16 %v301, %v299
      %v328 = vpack.c.b16 %v302, %v300
      %v329 = vpack.c.b16 %v305, %v303
      %v330 = vpack.c.b16 %v306, %v304
      %v331 = vpack.c.b16 %v309, %v307
      %v332 = vpack.c.b16 %v310, %v308
      %v333 = vpack.c.b16 %v313, %v311
      %v334 = vpack.c.b16 %v314, %v312
      %v335 = vpack.c.b16 %v317, %v315
      %v336 = vpack.c.b16 %v318, %v316
      %v337 = vpack.c.b16 %v321, %v319
      %v338 = vpack.c.b16 %v322, %v320
      %355 = vmatprep.subr.bf16.mxu0 %v324
      %356 = vmatpush1.bf16.msra.mxu0 %v323
      %357 = vmatprep.subr.bf16.mxu0 %v326
      %358 = vmatpush1.bf16.msra.mxu0 %v325
      %359 = vmatprep.subr.bf16.mxu0 %v328
      %360 = vmatpush1.bf16.msra.mxu0 %v327
      %361 = vmatprep.subr.bf16.mxu0 %v330
      %362 = vmatpush1.bf16.msra.mxu0 %v329
      %363 = vmatprep.subr.bf16.mxu0 %v332
      %364 = vmatpush1.bf16.msra.mxu0 %v331
      %365 = vmatprep.subr.bf16.mxu0 %v334
      %366 = vmatpush1.bf16.msra.mxu0 %v333
      %367 = vmatprep.subr.bf16.mxu0 %v336
      %368 = vmatpush1.bf16.msra.mxu0 %v335
      %369 = vmatprep.subr.bf16.mxu0 %v338
      %370 = vmatpush1.bf16.msra.mxu0 %v337
      %371 = vmatprep.subr.bf16.mxu0 0
      %372 = vmatpush1.bf16.msra.mxu0 0
      %373 = vmatprep.subr.bf16.mxu0 0
      %374 = vmatpush1.bf16.msra.mxu0 0
      %375 = vmatprep.subr.bf16.mxu0 0
      %376 = vmatpush1.bf16.msra.mxu0 0
      %377 = vmatprep.subr.bf16.mxu0 0
      %378 = vmatpush1.bf16.msra.mxu0 0
      %379 = vmatprep.subr.bf16.mxu0 0
      %380 = vmatpush1.bf16.msra.mxu0 0
      %381 = vmatprep.subr.bf16.mxu0 0
      %382 = vmatpush1.bf16.msra.mxu0 0
      %383 = vmatprep.subr.bf16.mxu0 0
      %384 = vmatpush1.bf16.msra.mxu0 0
      %385 = vmatprep.subr.bf16.mxu0 0
      %386 = vmatpush1.bf16.msra.mxu0 0
      %387 = vmatprep.mubr.bf16.mxu0 0
      %388 = vmatmul.mubr.bf16.gmra.mrb[0].mxu0 %v271
      %v389 = vpop.f32.mrb[0].mxu0
      %v390 = vadd.f32 0.0, %v389
      %v391 = vpop.f32.mrb[0].mxu0
      %v392 = vadd.f32 0.0, %v391
      %v393 = vpop.f32.mrb[0].mxu0
      %v394 = vadd.f32 0.0, %v393
      %v395 = vpop.f32.mrb[0].mxu0
      %v396 = vadd.f32 0.0, %v395
      %397 = vmatprep.mubr.bf16.mxu0 0
      %398 = vmatmul.mubr.bf16.gmra.mrb[0].mxu0 %v272
      %v399 = vpop.f32.mrb[0].mxu0
      %v400 = vadd.f32 0.0, %v399
      %v401 = vpop.f32.mrb[0].mxu0
      %v402 = vadd.f32 0.0, %v401
      %v403 = vpop.f32.mrb[0].mxu0
      %v404 = vadd.f32 0.0, %v403
      %v405 = vpop.f32.mrb[0].mxu0
      %v406 = vadd.f32 0.0, %v405
      %407 = vdwg.mxu0
      %v408 = vadd.f32 %v235, %v390
      %v409 = vadd.f32 %v236, %v392
      %v410 = vadd.f32 %v237, %v394
      %v411 = vadd.f32 %v238, %v396
      %v412 = vadd.f32 %v239, %v400
      %v413 = vadd.f32 %v240, %v402
      %v414 = vadd.f32 %v241, %v404
      %v415 = vadd.f32 %v242, %v406
      %416 = vst [vmem:[#allocation2] sm:$0xff] %v408
      %417 = vst [vmem:[#allocation2 + $0x8] sm:$0xff] %v409
      %418 = vst [vmem:[#allocation2 + $0x10] sm:$0xff] %v410
      %419 = vst [vmem:[#allocation2 + $0x18] sm:$0xff] %v411
      %420 = vst [vmem:[#allocation2 + $0x20] sm:$0xff] %v412
      %421 = vst [vmem:[#allocation2 + $0x28] sm:$0xff] %v413
      %422 = vst [vmem:[#allocation2 + $0x30] sm:$0xff] %v414
      %423 = vst [vmem:[#allocation2 + $0x38] sm:$0xff] %v415
      %p424 = scmp.eq.s32.totalorder %s19, 8
      // Predicated region
      $region37: #{fcn_generator_forward.8} parent=31 // pred_check
        %p425 = pneg %p424
      $region38: #{fcn_generator_forward.8} parent=31 // pred_check_branch
        %427 = sbr.rel (%p425) target = $region40
      $region39: #{fcn_generator_forward.8} parent=31 // pred_region
        %v428 = vld [vmem:[#allocation2] sm:$0xff]
        %v429 = vld [vmem:[#allocation2 + $0x8] sm:$0xff]
        %v430 = vld [vmem:[#allocation2 + $0x10] sm:$0xff]
        %v431 = vld [vmem:[#allocation2 + $0x18] sm:$0xff]
        %v432 = vld [vmem:[#allocation2 + $0x20] sm:$0xff]
        %v433 = vld [vmem:[#allocation2 + $0x28] sm:$0xff]
        %v434 = vld [vmem:[#allocation2 + $0x30] sm:$0xff]
        %v435 = vld [vmem:[#allocation2 + $0x38] sm:$0xff]
        %v436 = vld [vmem:[%s2] sm:$0x3]
        %v438 = vlaneseq
        %v439 = vshrl.u32 %v438, 7
        %v440 = vsub.s32 0, %v439
        %v441 = vrot.slane %v436, %v440
        %v442 = vlaneseq
        %v443 = vshrl.u32 %v442, 7
        %v444 = vsub.s32 1, %v443
        %v445 = vrot.slane %v436, %v444
        %v448 = vadd.f32 %v428, %v441
        %v449 = vadd.f32 %v429, %v445
        %v450 = vadd.f32 %v430, %v441
        %v451 = vadd.f32 %v431, %v445
        %v452 = vadd.f32 %v432, %v441
        %v453 = vadd.f32 %v433, %v445
        %v454 = vadd.f32 %v434, %v441
        %v455 = vadd.f32 %v435, %v445
        %v456 = vmax.f32 %v448, 0.0
        %v457 = vmax.f32 %v449, 0.0
        %v458 = vmax.f32 %v450, 0.0
        %v459 = vmax.f32 %v451, 0.0
        %v460 = vmax.f32 %v452, 0.0
        %v461 = vmax.f32 %v453, 0.0
        %v462 = vmax.f32 %v454, 0.0
        %v463 = vmax.f32 %v455, 0.0
        %v464 = vpack.c.bf16 %v458, %v456
        %v465 = vpack.c.bf16 %v459, %v457
        %v466 = vpack.c.bf16 %v462, %v460
        %v467 = vpack.c.bf16 %v463, %v461
        %v472 = vunpack.c.l.b16 %v464
        %v473 = vunpack.c.l.b16 %v465
        %v474 = vunpack.c.h.b16 %v464
        %v475 = vunpack.c.h.b16 %v465
        %v476 = vunpack.c.l.b16 %v466
        %v477 = vunpack.c.l.b16 %v467
        %v478 = vunpack.c.h.b16 %v466
        %v479 = vunpack.c.h.b16 %v467
        %v480 = vpack.c.b16 %v473, %v472
        %v481 = vpack.c.b16 %v475, %v474
        %v482 = vpack.c.b16 %v477, %v476
        %v483 = vpack.c.b16 %v479, %v478
        %488 = vst [vmem:[%s220] sm:$0xff] %v480
        %489 = vst [vmem:[%s220 + $0x8] sm:$0xff] %v481
        %490 = vst [vmem:[%s220 + $0x10] sm:$0xff] %v482
        %491 = vst [vmem:[%s220 + $0x18] sm:$0xff] %v483
      $region40: #{fcn_generator_forward.8} parent=31 // pred_fallthru
        _
      %s492 = smul.u32 4, %s18
      %p493 = scmp.lt.s32.totalorder %s492, 3
      %s494 = scalar_select %p493, %s492, 3
      %s495 = smul.addr %s494, 2
      %s496 = smul.addr %s495, 4
      %s497 = scalar_lea.vmem %s3, %s496
      // Predicated region
      $region41: #{fcn_generator_forward.8} parent=31 // pred_check
        %p498 = pneg %p119
      $region42: #{fcn_generator_forward.8} parent=31 // pred_check_branch
        %500 = sbr.rel (%p498) target = $region44
      $region43: #{fcn_generator_forward.8} parent=31 // pred_region
        %s501 = smul.u32 4, %s18
      $region44: #{fcn_generator_forward.8} parent=31 // pred_fallthru
        _
      // Predicated region
      $region45: #{fcn_generator_forward.8} parent=31 // pred_check
        %p502 = pneg %p119
      $region46: #{fcn_generator_forward.8} parent=31 // pred_check_branch
        %504 = sbr.rel (%p502) target = $region48
      $region47: #{fcn_generator_forward.8} parent=31 // pred_region
        %s505 = smul.u32 4, %s18
        %p506 = scmp.lt.s32.totalorder %s505, 3
        %s507 = scalar_select %p506, %s505, 3
        %s508 = smul.addr %s507, 2
        %s509 = smul.addr %s508, 4
        %s510 = scalar_lea.vmem %s3, %s509
      $region48: #{fcn_generator_forward.8} parent=31 // pred_fallthru
        _
    $region32: #{fcn_generator_forward.8} parent=5 // pred_fallthru
      _
    %p511 = scmp.le.s32.totalorder 2, %s9
    // Predicated region
    $region49: #{fcn_generator_forward.8} parent=5 // pred_check
      %p512 = pneg %p511
    $region50: #{fcn_generator_forward.8} parent=5 // pred_check_branch
      %514 = sbr.rel (%p512) target = $region52
    $region51: #{fcn_generator_forward.8} parent=5 // pred_region
      %s515 = ssub.s32 %s9, 2
    $region52: #{fcn_generator_forward.8} parent=5 // pred_fallthru
      _
  $region6: #{fcn_generator_forward.8} parent=0 // loop_footer
    %s13 = sadd.s32 1, %s9
  $region7: #{fcn_generator_forward.8} parent=0 // loop_footer_branch
    %8 = sbr.rel target = $region3
  $region8: #{fcn_generator_forward.8} parent=0 // loop_exit
    _

// kernel: fcn_generator_forward.9
$region0: #{fcn_generator_forward.9}
  #allocation0 [shape = 'u32[]', space=smem, size = 0x4, offset = 0x4, fixed_abs, tag = 'smem constant byte address 0x4 - core index']
  #allocation1 [shape = 'u32[144,128]{1,0:T(1,128)}', space=vmem, size = 0x12000, scoped, tag = 'internal scratch']
  #allocation2 [shape = 'f32[128,128]{1,0:T(8,128)}', space=vmem, size = 0x10000, scoped, tag = 'scratch operand']
  %s0 = inlined_call_operand.vmem [shape: bf16[9,128,256], index: 0, kind: input, shape index: {}]
  %s1 = inlined_call_operand.vmem [shape: bf16[9,256,128], index: 1, kind: input, shape index: {}]
  %s2 = inlined_call_operand.vmem [shape: f32[1,128], index: 2, kind: input, shape index: {}]
  %s3 = inlined_call_operand.vmem [shape: bf16[128,128], index: 3, kind: output, shape index: {}]
  %s4 = sld [smem:[#allocation0]]
  $region53: #{fcn_generator_forward.9} parent=0
    _
  %s6 = ssub.s32 1, %s4
  %s7 = scalar_select 0, %s6, %s4
  loop: start=0, step=1, limit=11
  $region2: #{fcn_generator_forward.9} parent=0 // loop_pre_header
    _
  $region3: #{fcn_generator_forward.9} parent=0 // loop_header
    %s9 = sphi 0, %s13
    %p10 = scmp.ge.s32.totalorder %s9, 11
    %s16 = sphi 0, %s28
    %s17 = sphi 0, %s24
    %s18 = sphi 0, %s16
    %s19 = sphi 0, %s17
    %s20 = sphi 0, %s18
    %s21 = sphi 0, %s19
    %s33 = sphi 0, %s35
    %s36 = sphi 0, %s33
    %s37 = sphi 0, %s36
    %s53 = sphi 0, %s37
    %s59 = sphi 0, %s61
    %s62 = sphi 0, %s59
    %s63 = sphi 0, %s62
    %s79 = sphi 0, %s63
    %s83 = sphi 0, %s83
    %s85 = sphi 0, %s83
    %s86 = sphi 0, %s85
    %s100 = sphi 0, %s86
    %s106 = sphi 0, %s108
    %s109 = sphi 0, %s106
    %s110 = sphi 0, %s109
    %s126 = sphi 0, %s110
  $region4: #{fcn_generator_forward.9} parent=0 // loop_header_branch
    %12 = sbr.rel (%p10) target = $region8
  $region5: #{fcn_generator_forward.9} parent=0 // loop_body
    %s14 = ssub.s32 %s9, 1
    %s15 = ssub.s32 %s9, 2
    %s22 = sadd.s32 1, %s17
    %p23 = scmp.ge.s32.totalorder %s22, 9
    %s24 = scalar_select %p23, 0, %s22
    %s25 = sadd.s32 1, %s16
    %s26 = scalar_select %p23, %s25, %s16
    %p27 = scmp.ge.s32.totalorder %s26, 1
    %s28 = scalar_select %p27, 0, %s26
    %s29 = ssub.s32 %s17, %s24
    %s30 = ssub.s32 %s16, %s28
    %s31 = sor.u32 %s29, %s30
    %p32 = scmp.eq.s32.totalorder %s31, 0
    %s34 = sadd.s32 %s33, 1
    %s35 = scalar_select %p32, %s33, %s34
    %p38 = pneg %p32
    %p39 = scmp.eq.s32.totalorder %s9, 8
    %p40 = por %p38, %p39
    %p41 = scmp.ne.s32.totalorder %s33, %s36
    %p42 = scmp.eq.s32.totalorder %s9, 0
    %p43 = por %p41, %p42
    %p44 = scmp.ne.s32.totalorder %s33, %s36
    %p45 = scmp.eq.s32.totalorder %s14, 8
    %p46 = por %p44, %p45
    %p47 = scmp.ne.s32.totalorder %s36, %s37
    %p48 = scmp.eq.s32.totalorder %s14, 0
    %p49 = por %p47, %p48
    %p50 = scmp.ne.s32.totalorder %s36, %s37
    %p51 = scmp.eq.s32.totalorder %s15, 8
    %p52 = por %p50, %p51
    %p54 = scmp.ne.s32.totalorder %s37, %s53
    %p55 = scmp.eq.s32.totalorder %s15, 0
    %p56 = por %p54, %p55
    %s57 = ssub.s32 %s17, %s24
    %p58 = scmp.eq.s32.totalorder %s57, 0
    %s60 = sadd.s32 %s59, 1
    %s61 = scalar_select %p58, %s59, %s60
    %p64 = pneg %p58
    %p65 = scmp.eq.s32.totalorder %s9, 8
    %p66 = por %p64, %p65
    %p67 = scmp.ne.s32.totalorder %s59, %s62
    %p68 = scmp.eq.s32.totalorder %s9, 0
    %p69 = por %p67, %p68
    %p70 = scmp.ne.s32.totalorder %s59, %s62
    %p71 = scmp.eq.s32.totalorder %s14, 8
    %p72 = por %p70, %p71
    %p73 = scmp.ne.s32.totalorder %s62, %s63
    %p74 = scmp.eq.s32.totalorder %s14, 0
    %p75 = por %p73, %p74
    %p76 = scmp.ne.s32.totalorder %s62, %s63
    %p77 = scmp.eq.s32.totalorder %s15, 8
    %p78 = por %p76, %p77
    %p80 = scmp.ne.s32.totalorder %s63, %s79
    %p81 = scmp.eq.s32.totalorder %s15, 0
    %p82 = por %p80, %p81
    %s84 = sadd.s32 %s83, 1
    %p87 = scmp.eq.s32.totalorder %s9, 8
    %p88 = scmp.ne.s32.totalorder %s83, %s85
    %p89 = scmp.eq.s32.totalorder %s9, 0
    %p90 = por %p88, %p89
    %p91 = scmp.ne.s32.totalorder %s83, %s85
    %p92 = scmp.eq.s32.totalorder %s14, 8
    %p93 = por %p91, %p92
    %p94 = scmp.ne.s32.totalorder %s85, %s86
    %p95 = scmp.eq.s32.totalorder %s14, 0
    %p96 = por %p94, %p95
    %p97 = scmp.ne.s32.totalorder %s85, %s86
    %p98 = scmp.eq.s32.totalorder %s15, 8
    %p99 = por %p97, %p98
    %p101 = scmp.ne.s32.totalorder %s86, %s100
    %p102 = scmp.eq.s32.totalorder %s15, 0
    %p103 = por %p101, %p102
    %s104 = ssub.s32 %s16, %s28
    %p105 = scmp.eq.s32.totalorder %s104, 0
    %s107 = sadd.s32 %s106, 1
    %s108 = scalar_select %p105, %s106, %s107
    %p111 = pneg %p105
    %p112 = scmp.eq.s32.totalorder %s9, 8
    %p113 = por %p111, %p112
    %p114 = scmp.ne.s32.totalorder %s106, %s109
    %p115 = scmp.eq.s32.totalorder %s9, 0
    %p116 = por %p114, %p115
    %p117 = scmp.ne.s32.totalorder %s106, %s109
    %p118 = scmp.eq.s32.totalorder %s14, 8
    %p119 = por %p117, %p118
    %p120 = scmp.ne.s32.totalorder %s109, %s110
    %p121 = scmp.eq.s32.totalorder %s14, 0
    %p122 = por %p120, %p121
    %p123 = scmp.ne.s32.totalorder %s109, %s110
    %p124 = scmp.eq.s32.totalorder %s15, 8
    %p125 = por %p123, %p124
    %p127 = scmp.ne.s32.totalorder %s110, %s126
    %p128 = scmp.eq.s32.totalorder %s15, 0
    %p129 = por %p127, %p128
    %p130 = scmp.le.s32.totalorder 1, %s9
    %p131 = scmp.lt.s32.totalorder %s9, 10
    %p132 = pnand %p130, %p131
    %p133 = pneg %p132
    // Predicated region
    $region9: #{fcn_generator_forward.9} parent=5 // pred_check
      _
    $region10: #{fcn_generator_forward.9} parent=5 // pred_check_branch
      %135 = sbr.rel (%p132) target = $region12
    $region11: #{fcn_generator_forward.9} parent=5 // pred_region
      %s136 = ssub.s32 %s9, 1
      // Predicated region
      $region13: #{fcn_generator_forward.9} parent=11 // pred_check
        %p137 = pneg %p96
      $region14: #{fcn_generator_forward.9} parent=11 // pred_check_branch
        %139 = sbr.rel (%p137) target = $region16
      $region15: #{fcn_generator_forward.9} parent=11 // pred_region
        _
      $region16: #{fcn_generator_forward.9} parent=11 // pred_fallthru
        _
    $region12: #{fcn_generator_forward.9} parent=5 // pred_fallthru
      _
    %p140 = scmp.lt.s32.totalorder %s9, 9
    // Predicated region
    $region17: #{fcn_generator_forward.9} parent=5 // pred_check
      %p141 = pneg %p140
    $region18: #{fcn_generator_forward.9} parent=5 // pred_check_branch
      %143 = sbr.rel (%p141) target = $region20
    $region19: #{fcn_generator_forward.9} parent=5 // pred_region
      // Predicated region
      $region21: #{fcn_generator_forward.9} parent=19 // pred_check
        %p144 = pneg %p43
      $region22: #{fcn_generator_forward.9} parent=19 // pred_check_branch
        %146 = sbr.rel (%p144) target = $region24
      $region23: #{fcn_generator_forward.9} parent=19 // pred_region
        %s147 = smul.u32 16, %s16
        %p148 = scmp.lt.s32.totalorder %s17, 8
        %s149 = scalar_select %p148, %s17, 8
        %p150 = scmp.lt.s32.totalorder %s147, 15
        %s151 = scalar_select %p150, %s147, 15
        %s152 = smul.addr %s151, 2
        %s153 = smul.addr %s149, 32
        %s154 = sadd.s32 %s152, %s153
        %s155 = smul.addr %s154, 4
        %s156 = scalar_lea.vmem %s0, %s155
        %s157 = smul.u32 16, %s16
      $region24: #{fcn_generator_forward.9} parent=19 // pred_fallthru
        _
      // Predicated region
      $region25: #{fcn_generator_forward.9} parent=19 // pred_check
        %p158 = pneg %p69
      $region26: #{fcn_generator_forward.9} parent=19 // pred_check_branch
        %160 = sbr.rel (%p158) target = $region28
      $region27: #{fcn_generator_forward.9} parent=19 // pred_region
        %p161 = scmp.lt.s32.totalorder %s17, 8
        %s162 = scalar_select %p161, %s17, 8
        %s163 = smul.addr %s162, 32
        %s164 = smul.addr %s163, 4
        %s165 = scalar_lea.vmem %s1, %s164
      $region28: #{fcn_generator_forward.9} parent=19 // pred_fallthru
        _
    $region20: #{fcn_generator_forward.9} parent=5 // pred_fallthru
      _
    %p166 = scmp.le.s32.totalorder 1, %s9
    %p167 = scmp.lt.s32.totalorder %s9, 10
    %p168 = pnand %p166, %p167
    %p169 = pneg %p168
    // Predicated region
    $region29: #{fcn_generator_forward.9} parent=5 // pred_check
      _
    $region30: #{fcn_generator_forward.9} parent=5 // pred_check_branch
      %171 = sbr.rel (%p168) target = $region32
    $region31: #{fcn_generator_forward.9} parent=5 // pred_region
      %s172 = ssub.s32 %s9, 1
      %s173 = smul.u32 16, %s18
      %p174 = scmp.lt.s32.totalorder %s19, 8
      %s175 = scalar_select %p174, %s19, 8
      %p176 = scmp.lt.s32.totalorder %s173, 15
      %s177 = scalar_select %p176, %s173, 15
      %s178 = smul.addr %s177, 2
      %s179 = smul.addr %s175, 32
      %s180 = sadd.s32 %s178, %s179
      %s181 = smul.addr %s180, 4
      %s182 = scalar_lea.vmem %s0, %s181
      %p183 = pneg %p49
      %p184 = pneg %p46
      %p185 = scmp.lt.s32.totalorder %s19, 8
      %s186 = scalar_select %p185, %s19, 8
      %s187 = smul.addr %s186, 32
      %s188 = smul.addr %s187, 4
      %s189 = scalar_lea.vmem %s1, %s188
      %p190 = pneg %p75
      %p191 = pneg %p72
      %p192 = pneg %p96
      %p193 = pneg %p93
      %p194 = pneg %p122
      %p195 = pneg %p119
      %s196 = smul.u32 16, %s18
      %p197 = scmp.lt.s32.totalorder %s196, 15
      %s198 = scalar_select %p197, %s196, 15
      %s199 = smul.addr %s198, 4
      %s200 = scalar_lea.vmem %s3, %s199
      %s201 = smul.u32 16, %s18
      %p202 = scmp.lt.s32.totalorder %s19, 8
      %s203 = scalar_select %p202, %s19, 8
      %p204 = scmp.lt.s32.totalorder %s201, 15
      %s205 = scalar_select %p204, %s201, 15
      %s206 = smul.addr %s205, 2
      %s207 = smul.addr %s203, 32
      %s208 = sadd.s32 %s206, %s207
      %s209 = smul.addr %s208, 4
      %s210 = scalar_lea.vmem %s0, %s209
      %s211 = smul.u32 16, %s18
      %p212 = scmp.lt.s32.totalorder %s19, 8
      %s213 = scalar_select %p212, %s19, 8
      %s214 = smul.addr %s213, 32
      %s215 = smul.addr %s214, 4
      %s216 = scalar_lea.vmem %s1, %s215
      %s217 = smul.u32 16, %s18
      %p218 = scmp.lt.s32.totalorder %s217, 15
      %s219 = scalar_select %p218, %s217, 15
      %s220 = smul.addr %s219, 4
      %s221 = scalar_lea.vmem %s3, %s220
      %s222 = smul.u32 16, %s18
      %p224 = scmp.eq.s32.totalorder %s19, 0
      // Predicated region
      $region33: #{fcn_generator_forward.9} parent=31 // pred_check
        %p225 = pneg %p224
      $region34: #{fcn_generator_forward.9} parent=31 // pred_check_branch
        %227 = sbr.rel (%p225) target = $region36
      $region35: #{fcn_generator_forward.9} parent=31 // pred_region
        %228 = vst [vmem:[#allocation2] sm:$0xff] 0.0
        %229 = vst [vmem:[#allocation2 + $0x8] sm:$0xff] 0.0
        %230 = vst [vmem:[#allocation2 + $0x10] sm:$0xff] 0.0
        %231 = vst [vmem:[#allocation2 + $0x18] sm:$0xff] 0.0
        %232 = vst [vmem:[#allocation2 + $0x20] sm:$0xff] 0.0
        %233 = vst [vmem:[#allocation2 + $0x28] sm:$0xff] 0.0
        %234 = vst [vmem:[#allocation2 + $0x30] sm:$0xff] 0.0
        %235 = vst [vmem:[#allocation2 + $0x38] sm:$0xff] 0.0
        %236 = vst [vmem:[#allocation2 + $0x40] sm:$0xff] 0.0
        %237 = vst [vmem:[#allocation2 + $0x48] sm:$0xff] 0.0
        %238 = vst [vmem:[#allocation2 + $0x50] sm:$0xff] 0.0
        %239 = vst [vmem:[#allocation2 + $0x58] sm:$0xff] 0.0
        %240 = vst [vmem:[#allocation2 + $0x60] sm:$0xff] 0.0
        %241 = vst [vmem:[#allocation2 + $0x68] sm:$0xff] 0.0
        %242 = vst [vmem:[#allocation2 + $0x70] sm:$0xff] 0.0
        %243 = vst [vmem:[#allocation2 + $0x78] sm:$0xff] 0.0
      $region36: #{fcn_generator_forward.9} parent=31 // pred_fallthru
        _
      %v244 = vld [vmem:[#allocation2] sm:$0xff]
      %v245 = vld [vmem:[#allocation2 + $0x8] sm:$0xff]
      %v246 = vld [vmem:[#allocation2 + $0x10] sm:$0xff]
      %v247 = vld [vmem:[#allocation2 + $0x18] sm:$0xff]
      %v248 = vld [vmem:[#allocation2 + $0x20] sm:$0xff]
      %v249 = vld [vmem:[#allocation2 + $0x28] sm:$0xff]
      %v250 = vld [vmem:[#allocation2 + $0x30] sm:$0xff]
      %v251 = vld [vmem:[#allocation2 + $0x38] sm:$0xff]
      %v252 = vld [vmem:[#allocation2 + $0x40] sm:$0xff]
      %v253 = vld [vmem:[#allocation2 + $0x48] sm:$0xff]
      %v254 = vld [vmem:[#allocation2 + $0x50] sm:$0xff]
      %v255 = vld [vmem:[#allocation2 + $0x58] sm:$0xff]
      %v256 = vld [vmem:[#allocation2 + $0x60] sm:$0xff]
      %v257 = vld [vmem:[#allocation2 + $0x68] sm:$0xff]
      %v258 = vld [vmem:[#allocation2 + $0x70] sm:$0xff]
      %v259 = vld [vmem:[#allocation2 + $0x78] sm:$0xff]
      %v260 = vld [vmem:[%s210] sm:$0xff]
      %v261 = vld [vmem:[%s210 + $0x8] sm:$0xff]
      %v262 = vld [vmem:[%s210 + $0x10] sm:$0xff]
      %v263 = vld [vmem:[%s210 + $0x18] sm:$0xff]
      %v264 = vld [vmem:[%s210 + $0x20] sm:$0xff]
      %v265 = vld [vmem:[%s210 + $0x28] sm:$0xff]
      %v266 = vld [vmem:[%s210 + $0x30] sm:$0xff]
      %v267 = vld [vmem:[%s210 + $0x38] sm:$0xff]
      %v268 = vld [vmem:[%s210 + $0x40] sm:$0xff]
      %v269 = vld [vmem:[%s210 + $0x48] sm:$0xff]
      %v270 = vld [vmem:[%s210 + $0x50] sm:$0xff]
      %v271 = vld [vmem:[%s210 + $0x58] sm:$0xff]
      %v272 = vld [vmem:[%s210 + $0x60] sm:$0xff]
      %v273 = vld [vmem:[%s210 + $0x68] sm:$0xff]
      %v274 = vld [vmem:[%s210 + $0x70] sm:$0xff]
      %v275 = vld [vmem:[%s210 + $0x78] sm:$0xff]
      %v276 = vld [vmem:[%s216] sm:$0xf]
      %v277 = vld [vmem:[%s216 + $0x4] sm:$0xf]
      %v278 = vld [vmem:[%s216 + $0x8] sm:$0xf]
      %v279 = vld [vmem:[%s216 + $0xc] sm:$0xf]
      %v280 = vld [vmem:[%s216 + $0x10] sm:$0xf]
      %v281 = vld [vmem:[%s216 + $0x14] sm:$0xf]
      %v282 = vld [vmem:[%s216 + $0x18] sm:$0xf]
      %v283 = vld [vmem:[%s216 + $0x1c] sm:$0xf]
      %v284 = vld [vmem:[%s216 + $0x20] sm:$0xf]
      %v285 = vld [vmem:[%s216 + $0x24] sm:$0xf]
      %v286 = vld [vmem:[%s216 + $0x28] sm:$0xf]
      %v287 = vld [vmem:[%s216 + $0x2c] sm:$0xf]
      %v288 = vld [vmem:[%s216 + $0x30] sm:$0xf]
      %v289 = vld [vmem:[%s216 + $0x34] sm:$0xf]
      %v290 = vld [vmem:[%s216 + $0x38] sm:$0xf]
      %v291 = vld [vmem:[%s216 + $0x3c] sm:$0xf]
      %v292 = vld [vmem:[%s216 + $0x40] sm:$0xf]
      %v293 = vld [vmem:[%s216 + $0x44] sm:$0xf]
      %v294 = vld [vmem:[%s216 + $0x48] sm:$0xf]
      %v295 = vld [vmem:[%s216 + $0x4c] sm:$0xf]
      %v296 = vld [vmem:[%s216 + $0x50] sm:$0xf]
      %v297 = vld [vmem:[%s216 + $0x54] sm:$0xf]
      %v298 = vld [vmem:[%s216 + $0x58] sm:$0xf]
      %v299 = vld [vmem:[%s216 + $0x5c] sm:$0xf]
      %v300 = vld [vmem:[%s216 + $0x60] sm:$0xf]
      %v301 = vld [vmem:[%s216 + $0x64] sm:$0xf]
      %v302 = vld [vmem:[%s216 + $0x68] sm:$0xf]
      %v303 = vld [vmem:[%s216 + $0x6c] sm:$0xf]
      %v304 = vld [vmem:[%s216 + $0x70] sm:$0xf]
      %v305 = vld [vmem:[%s216 + $0x74] sm:$0xf]
      %v306 = vld [vmem:[%s216 + $0x78] sm:$0xf]
      %v307 = vld [vmem:[%s216 + $0x7c] sm:$0xf]
      %v324 = vunpack.c.l.b16 %v260
      %v325 = vunpack.c.h.b16 %v260
      %v326 = vunpack.c.l.b16 %v261
      %v327 = vunpack.c.h.b16 %v261
      %v328 = vunpack.c.l.b16 %v262
      %v329 = vunpack.c.h.b16 %v262
      %v330 = vunpack.c.l.b16 %v263
      %v331 = vunpack.c.h.b16 %v263
      %v332 = vunpack.c.l.b16 %v264
      %v333 = vunpack.c.h.b16 %v264
      %v334 = vunpack.c.l.b16 %v265
      %v335 = vunpack.c.h.b16 %v265
      %v336 = vunpack.c.l.b16 %v266
      %v337 = vunpack.c.h.b16 %v266
      %v338 = vunpack.c.l.b16 %v267
      %v339 = vunpack.c.h.b16 %v267
      %v340 = vunpack.c.l.b16 %v268
      %v341 = vunpack.c.h.b16 %v268
      %v342 = vunpack.c.l.b16 %v269
      %v343 = vunpack.c.h.b16 %v269
      %v344 = vunpack.c.l.b16 %v270
      %v345 = vunpack.c.h.b16 %v270
      %v346 = vunpack.c.l.b16 %v271
      %v347 = vunpack.c.h.b16 %v271
      %v348 = vunpack.c.l.b16 %v272
      %v349 = vunpack.c.h.b16 %v272
      %v350 = vunpack.c.l.b16 %v273
      %v351 = vunpack.c.h.b16 %v273
      %v352 = vunpack.c.l.b16 %v274
      %v353 = vunpack.c.h.b16 %v274
      %v354 = vunpack.c.l.b16 %v275
      %v355 = vunpack.c.h.b16 %v275
      %v356 = vpack.c.b16 %v326, %v324
      %v357 = vpack.c.b16 %v327, %v325
      %v358 = vpack.c.b16 %v330, %v328
      %v359 = vpack.c.b16 %v331, %v329
      %v360 = vpack.c.b16 %v334, %v332
      %v361 = vpack.c.b16 %v335, %v333
      %v362 = vpack.c.b16 %v338, %v336
      %v363 = vpack.c.b16 %v339, %v337
      %v364 = vpack.c.b16 %v342, %v340
      %v365 = vpack.c.b16 %v343, %v341
      %v366 = vpack.c.b16 %v346, %v344
      %v367 = vpack.c.b16 %v347, %v345
      %v368 = vpack.c.b16 %v350, %v348
      %v369 = vpack.c.b16 %v351, %v349
      %v370 = vpack.c.b16 %v354, %v352
      %v371 = vpack.c.b16 %v355, %v353
      %v420 = vunpack.c.l.b16 %v276
      %v421 = vunpack.c.l.b16 %v277
      %v422 = vunpack.c.l.b16 %v278
      %v423 = vunpack.c.l.b16 %v279
      %v424 = vunpack.c.l.b16 %v280
      %v425 = vunpack.c.l.b16 %v281
      %v426 = vunpack.c.l.b16 %v282
      %v427 = vunpack.c.l.b16 %v283
      %v428 = vunpack.c.l.b16 %v284
      %v429 = vunpack.c.l.b16 %v285
      %v430 = vunpack.c.l.b16 %v286
      %v431 = vunpack.c.l.b16 %v287
      %v432 = vunpack.c.l.b16 %v288
      %v433 = vunpack.c.l.b16 %v289
      %v434 = vunpack.c.l.b16 %v290
      %v435 = vunpack.c.l.b16 %v291
      %v436 = vunpack.c.l.b16 %v292
      %v437 = vunpack.c.l.b16 %v293
      %v438 = vunpack.c.l.b16 %v294
      %v439 = vunpack.c.l.b16 %v295
      %v440 = vunpack.c.l.b16 %v296
      %v441 = vunpack.c.l.b16 %v297
      %v442 = vunpack.c.l.b16 %v298
      %v443 = vunpack.c.l.b16 %v299
      %v444 = vunpack.c.l.b16 %v300
      %v445 = vunpack.c.l.b16 %v301
      %v446 = vunpack.c.l.b16 %v302
      %v447 = vunpack.c.l.b16 %v303
      %v448 = vunpack.c.l.b16 %v304
      %v449 = vunpack.c.l.b16 %v305
      %v450 = vunpack.c.l.b16 %v306
      %v451 = vunpack.c.l.b16 %v307
      %v452 = vpack.c.b16 %v421, %v420
      %v453 = vpack.c.b16 %v423, %v422
      %v454 = vpack.c.b16 %v425, %v424
      %v455 = vpack.c.b16 %v427, %v426
      %v456 = vpack.c.b16 %v429, %v428
      %v457 = vpack.c.b16 %v431, %v430
      %v458 = vpack.c.b16 %v433, %v432
      %v459 = vpack.c.b16 %v435, %v434
      %v460 = vpack.c.b16 %v437, %v436
      %v461 = vpack.c.b16 %v439, %v438
      %v462 = vpack.c.b16 %v441, %v440
      %v463 = vpack.c.b16 %v443, %v442
      %v464 = vpack.c.b16 %v445, %v444
      %v465 = vpack.c.b16 %v447, %v446
      %v466 = vpack.c.b16 %v449, %v448
      %v467 = vpack.c.b16 %v451, %v450
      %484 = vmatprep.subr.bf16.mxu0 0
      %485 = vmatpush1.bf16.msra.mxu0 %v452
      %486 = vmatprep.subr.bf16.mxu0 0
      %487 = vmatpush1.bf16.msra.mxu0 %v453
      %488 = vmatprep.subr.bf16.mxu0 0
      %489 = vmatpush1.bf16.msra.mxu0 %v454
      %490 = vmatprep.subr.bf16.mxu0 0
      %491 = vmatpush1.bf16.msra.mxu0 %v455
      %492 = vmatprep.subr.bf16.mxu0 0
      %493 = vmatpush1.bf16.msra.mxu0 %v456
      %494 = vmatprep.subr.bf16.mxu0 0
      %495 = vmatpush1.bf16.msra.mxu0 %v457
      %496 = vmatprep.subr.bf16.mxu0 0
      %497 = vmatpush1.bf16.msra.mxu0 %v458
      %498 = vmatprep.subr.bf16.mxu0 0
      %499 = vmatpush1.bf16.msra.mxu0 %v459
      %500 = vmatprep.subr.bf16.mxu0 0
      %501 = vmatpush1.bf16.msra.mxu0 %v460
      %502 = vmatprep.subr.bf16.mxu0 0
      %503 = vmatpush1.bf16.msra.mxu0 %v461
      %504 = vmatprep.subr.bf16.mxu0 0
      %505 = vmatpush1.bf16.msra.mxu0 %v462
      %506 = vmatprep.subr.bf16.mxu0 0
      %507 = vmatpush1.bf16.msra.mxu0 %v463
      %508 = vmatprep.subr.bf16.mxu0 0
      %509 = vmatpush1.bf16.msra.mxu0 %v464
      %510 = vmatprep.subr.bf16.mxu0 0
      %511 = vmatpush1.bf16.msra.mxu0 %v465
      %512 = vmatprep.subr.bf16.mxu0 0
      %513 = vmatpush1.bf16.msra.mxu0 %v466
      %514 = vmatprep.subr.bf16.mxu0 0
      %515 = vmatpush1.bf16.msra.mxu0 %v467
      %516 = vmatprep.mubr.bf16.mxu0 %v357
      %517 = vmatmul.mubr.bf16.gmra.mrb[0].mxu0 %v356
      %v518 = vpop.f32.mrb[0].mxu0
      %v519 = vadd.f32 0.0, %v518
      %v520 = vpop.f32.mrb[0].mxu0
      %v521 = vpop.f32.mrb[0].mxu0
      %v522 = vadd.f32 0.0, %v521
      %v523 = vpop.f32.mrb[0].mxu0
      %524 = vmatprep.mubr.bf16.mxu0 %v359
      %525 = vmatmul.mubr.bf16.gmra.mrb[0].mxu0 %v358
      %v526 = vpop.f32.mrb[0].mxu0
      %v527 = vadd.f32 0.0, %v526
      %v528 = vpop.f32.mrb[0].mxu0
      %v529 = vpop.f32.mrb[0].mxu0
      %v530 = vadd.f32 0.0, %v529
      %v531 = vpop.f32.mrb[0].mxu0
      %532 = vmatprep.mubr.bf16.mxu0 %v361
      %533 = vmatmul.mubr.bf16.gmra.mrb[0].mxu0 %v360
      %v534 = vpop.f32.mrb[0].mxu0
      %v535 = vadd.f32 0.0, %v534
      %v536 = vpop.f32.mrb[0].mxu0
      %v537 = vpop.f32.mrb[0].mxu0
      %v538 = vadd.f32 0.0, %v537
      %v539 = vpop.f32.mrb[0].mxu0
      %540 = vmatprep.mubr.bf16.mxu0 %v363
      %541 = vmatmul.mubr.bf16.gmra.mrb[0].mxu0 %v362
      %v542 = vpop.f32.mrb[0].mxu0
      %v543 = vadd.f32 0.0, %v542
      %v544 = vpop.f32.mrb[0].mxu0
      %v545 = vpop.f32.mrb[0].mxu0
      %v546 = vadd.f32 0.0, %v545
      %v547 = vpop.f32.mrb[0].mxu0
      %548 = vmatprep.mubr.bf16.mxu0 %v365
      %549 = vmatmul.mubr.bf16.gmra.mrb[0].mxu0 %v364
      %v550 = vpop.f32.mrb[0].mxu0
      %v551 = vadd.f32 0.0, %v550
      %v552 = vpop.f32.mrb[0].mxu0
      %v553 = vpop.f32.mrb[0].mxu0
      %v554 = vadd.f32 0.0, %v553
      %v555 = vpop.f32.mrb[0].mxu0
      %556 = vmatprep.mubr.bf16.mxu0 %v367
      %557 = vmatmul.mubr.bf16.gmra.mrb[0].mxu0 %v366
      %v558 = vpop.f32.mrb[0].mxu0
      %v559 = vadd.f32 0.0, %v558
      %v560 = vpop.f32.mrb[0].mxu0
      %v561 = vpop.f32.mrb[0].mxu0
      %v562 = vadd.f32 0.0, %v561
      %v563 = vpop.f32.mrb[0].mxu0
      %564 = vmatprep.mubr.bf16.mxu0 %v369
      %565 = vmatmul.mubr.bf16.gmra.mrb[0].mxu0 %v368
      %v566 = vpop.f32.mrb[0].mxu0
      %v567 = vadd.f32 0.0, %v566
      %v568 = vpop.f32.mrb[0].mxu0
      %v569 = vpop.f32.mrb[0].mxu0
      %v570 = vadd.f32 0.0, %v569
      %v571 = vpop.f32.mrb[0].mxu0
      %572 = vmatprep.mubr.bf16.mxu0 %v371
      %573 = vmatmul.mubr.bf16.gmra.mrb[0].mxu0 %v370
      %v574 = vpop.f32.mrb[0].mxu0
      %v575 = vadd.f32 0.0, %v574
      %v576 = vpop.f32.mrb[0].mxu0
      %v577 = vpop.f32.mrb[0].mxu0
      %v578 = vadd.f32 0.0, %v577
      %v579 = vpop.f32.mrb[0].mxu0
      %580 = vdwg.mxu0
      %v581 = vadd.f32 %v244, %v519
      %v582 = vadd.f32 %v245, %v522
      %v583 = vadd.f32 %v246, %v527
      %v584 = vadd.f32 %v247, %v530
      %v585 = vadd.f32 %v248, %v535
      %v586 = vadd.f32 %v249, %v538
      %v587 = vadd.f32 %v250, %v543
      %v588 = vadd.f32 %v251, %v546
      %v589 = vadd.f32 %v252, %v551
      %v590 = vadd.f32 %v253, %v554
      %v591 = vadd.f32 %v254, %v559
      %v592 = vadd.f32 %v255, %v562
      %v593 = vadd.f32 %v256, %v567
      %v594 = vadd.f32 %v257, %v570
      %v595 = vadd.f32 %v258, %v575
      %v596 = vadd.f32 %v259, %v578
      %597 = vst [vmem:[#allocation2] sm:$0xff] %v581
      %598 = vst [vmem:[#allocation2 + $0x8] sm:$0xff] %v582
      %599 = vst [vmem:[#allocation2 + $0x10] sm:$0xff] %v583
      %600 = vst [vmem:[#allocation2 + $0x18] sm:$0xff] %v584
      %601 = vst [vmem:[#allocation2 + $0x20] sm:$0xff] %v585
      %602 = vst [vmem:[#allocation2 + $0x28] sm:$0xff] %v586
      %603 = vst [vmem:[#allocation2 + $0x30] sm:$0xff] %v587
      %604 = vst [vmem:[#allocation2 + $0x38] sm:$0xff] %v588
      %605 = vst [vmem:[#allocation2 + $0x40] sm:$0xff] %v589
      %606 = vst [vmem:[#allocation2 + $0x48] sm:$0xff] %v590
      %607 = vst [vmem:[#allocation2 + $0x50] sm:$0xff] %v591
      %608 = vst [vmem:[#allocation2 + $0x58] sm:$0xff] %v592
      %609 = vst [vmem:[#allocation2 + $0x60] sm:$0xff] %v593
      %610 = vst [vmem:[#allocation2 + $0x68] sm:$0xff] %v594
      %611 = vst [vmem:[#allocation2 + $0x70] sm:$0xff] %v595
      %612 = vst [vmem:[#allocation2 + $0x78] sm:$0xff] %v596
      %p613 = scmp.eq.s32.totalorder %s19, 8
      // Predicated region
      $region37: #{fcn_generator_forward.9} parent=31 // pred_check
        %p614 = pneg %p613
      $region38: #{fcn_generator_forward.9} parent=31 // pred_check_branch
        %616 = sbr.rel (%p614) target = $region40
      $region39: #{fcn_generator_forward.9} parent=31 // pred_region
        %v617 = vld [vmem:[#allocation2] sm:$0xff]
        %v618 = vld [vmem:[#allocation2 + $0x8] sm:$0xff]
        %v619 = vld [vmem:[#allocation2 + $0x10] sm:$0xff]
        %v620 = vld [vmem:[#allocation2 + $0x18] sm:$0xff]
        %v621 = vld [vmem:[#allocation2 + $0x20] sm:$0xff]
        %v622 = vld [vmem:[#allocation2 + $0x28] sm:$0xff]
        %v623 = vld [vmem:[#allocation2 + $0x30] sm:$0xff]
        %v624 = vld [vmem:[#allocation2 + $0x38] sm:$0xff]
        %v625 = vld [vmem:[#allocation2 + $0x40] sm:$0xff]
        %v626 = vld [vmem:[#allocation2 + $0x48] sm:$0xff]
        %v627 = vld [vmem:[#allocation2 + $0x50] sm:$0xff]
        %v628 = vld [vmem:[#allocation2 + $0x58] sm:$0xff]
        %v629 = vld [vmem:[#allocation2 + $0x60] sm:$0xff]
        %v630 = vld [vmem:[#allocation2 + $0x68] sm:$0xff]
        %v631 = vld [vmem:[#allocation2 + $0x70] sm:$0xff]
        %v632 = vld [vmem:[#allocation2 + $0x78] sm:$0xff]
        %v633 = vld [vmem:[%s2] sm:$0x1]
        %v635 = vlaneseq
        %v636 = vshrl.u32 %v635, 7
        %v637 = vsub.s32 0, %v636
        %v638 = vrot.slane %v633, %v637
        %v640 = vadd.f32 %v617, %v638
        %v641 = vadd.f32 %v618, %v638
        %v642 = vadd.f32 %v619, %v638
        %v643 = vadd.f32 %v620, %v638
        %v644 = vadd.f32 %v621, %v638
        %v645 = vadd.f32 %v622, %v638
        %v646 = vadd.f32 %v623, %v638
        %v647 = vadd.f32 %v624, %v638
        %v648 = vadd.f32 %v625, %v638
        %v649 = vadd.f32 %v626, %v638
        %v650 = vadd.f32 %v627, %v638
        %v651 = vadd.f32 %v628, %v638
        %v652 = vadd.f32 %v629, %v638
        %v653 = vadd.f32 %v630, %v638
        %v654 = vadd.f32 %v631, %v638
        %v655 = vadd.f32 %v632, %v638
        %v656 = vmax.f32 %v640, 0.0
        %v657 = vmax.f32 %v641, 0.0
        %v658 = vmax.f32 %v642, 0.0
        %v659 = vmax.f32 %v643, 0.0
        %v660 = vmax.f32 %v644, 0.0
        %v661 = vmax.f32 %v645, 0.0
        %v662 = vmax.f32 %v646, 0.0
        %v663 = vmax.f32 %v647, 0.0
        %v664 = vmax.f32 %v648, 0.0
        %v665 = vmax.f32 %v649, 0.0
        %v666 = vmax.f32 %v650, 0.0
        %v667 = vmax.f32 %v651, 0.0
        %v668 = vmax.f32 %v652, 0.0
        %v669 = vmax.f32 %v653, 0.0
        %v670 = vmax.f32 %v654, 0.0
        %v671 = vmax.f32 %v655, 0.0
        %v672 = vpack.c.bf16 %v657, %v656
        %v673 = vpack.c.bf16 %v659, %v658
        %v674 = vpack.c.bf16 %v661, %v660
        %v675 = vpack.c.bf16 %v663, %v662
        %v676 = vpack.c.bf16 %v665, %v664
        %v677 = vpack.c.bf16 %v667, %v666
        %v678 = vpack.c.bf16 %v669, %v668
        %v679 = vpack.c.bf16 %v671, %v670
        %v688 = vunpack.c.l.b16 %v672
        %v689 = vunpack.c.h.b16 %v672
        %v690 = vunpack.c.l.b16 %v673
        %v691 = vunpack.c.h.b16 %v673
        %v692 = vunpack.c.l.b16 %v674
        %v693 = vunpack.c.h.b16 %v674
        %v694 = vunpack.c.l.b16 %v675
        %v695 = vunpack.c.h.b16 %v675
        %v696 = vunpack.c.l.b16 %v676
        %v697 = vunpack.c.h.b16 %v676
        %v698 = vunpack.c.l.b16 %v677
        %v699 = vunpack.c.h.b16 %v677
        %v700 = vunpack.c.l.b16 %v678
        %v701 = vunpack.c.h.b16 %v678
        %v702 = vunpack.c.l.b16 %v679
        %v703 = vunpack.c.h.b16 %v679
        %v704 = vpack.c.b16 %v688, %v688
        %v705 = vpack.c.b16 %v689, %v689
        %v706 = vpack.c.b16 %v690, %v690
        %v707 = vpack.c.b16 %v691, %v691
        %v708 = vpack.c.b16 %v692, %v692
        %v709 = vpack.c.b16 %v693, %v693
        %v710 = vpack.c.b16 %v694, %v694
        %v711 = vpack.c.b16 %v695, %v695
        %v712 = vpack.c.b16 %v696, %v696
        %v713 = vpack.c.b16 %v697, %v697
        %v714 = vpack.c.b16 %v698, %v698
        %v715 = vpack.c.b16 %v699, %v699
        %v716 = vpack.c.b16 %v700, %v700
        %v717 = vpack.c.b16 %v701, %v701
        %v718 = vpack.c.b16 %v702, %v702
        %v719 = vpack.c.b16 %v703, %v703
        %736 = vst [vmem:[%s221] sm:$0xf] %v704
        %737 = vst [vmem:[%s221 + $0x4] sm:$0xf] %v705
        %738 = vst [vmem:[%s221 + $0x8] sm:$0xf] %v706
        %739 = vst [vmem:[%s221 + $0xc] sm:$0xf] %v707
        %740 = vst [vmem:[%s221 + $0x10] sm:$0xf] %v708
        %741 = vst [vmem:[%s221 + $0x14] sm:$0xf] %v709
        %742 = vst [vmem:[%s221 + $0x18] sm:$0xf] %v710
        %743 = vst [vmem:[%s221 + $0x1c] sm:$0xf] %v711
        %744 = vst [vmem:[%s221 + $0x20] sm:$0xf] %v712
        %745 = vst [vmem:[%s221 + $0x24] sm:$0xf] %v713
        %746 = vst [vmem:[%s221 + $0x28] sm:$0xf] %v714
        %747 = vst [vmem:[%s221 + $0x2c] sm:$0xf] %v715
        %748 = vst [vmem:[%s221 + $0x30] sm:$0xf] %v716
        %749 = vst [vmem:[%s221 + $0x34] sm:$0xf] %v717
        %750 = vst [vmem:[%s221 + $0x38] sm:$0xf] %v718
        %751 = vst [vmem:[%s221 + $0x3c] sm:$0xf] %v719
      $region40: #{fcn_generator_forward.9} parent=31 // pred_fallthru
        _
      %s752 = smul.u32 16, %s18
      %p753 = scmp.lt.s32.totalorder %s752, 15
      %s754 = scalar_select %p753, %s752, 15
      %s755 = smul.addr %s754, 4
      %s756 = scalar_lea.vmem %s3, %s755
      // Predicated region
      $region41: #{fcn_generator_forward.9} parent=31 // pred_check
        %p757 = pneg %p119
      $region42: #{fcn_generator_forward.9} parent=31 // pred_check_branch
        %759 = sbr.rel (%p757) target = $region44
      $region43: #{fcn_generator_forward.9} parent=31 // pred_region
        %s760 = smul.u32 16, %s18
      $region44: #{fcn_generator_forward.9} parent=31 // pred_fallthru
        _
      // Predicated region
      $region45: #{fcn_generator_forward.9} parent=31 // pred_check
        %p761 = pneg %p119
      $region46: #{fcn_generator_forward.9} parent=31 // pred_check_branch
        %763 = sbr.rel (%p761) target = $region48
      $region47: #{fcn_generator_forward.9} parent=31 // pred_region
        %s764 = smul.u32 16, %s18
        %p765 = scmp.lt.s32.totalorder %s764, 15
        %s766 = scalar_select %p765, %s764, 15
        %s767 = smul.addr %s766, 4
        %s768 = scalar_lea.vmem %s3, %s767
      $region48: #{fcn_generator_forward.9} parent=31 // pred_fallthru
        _
    $region32: #{fcn_generator_forward.9} parent=5 // pred_fallthru
      _
    %p769 = scmp.le.s32.totalorder 2, %s9
    // Predicated region
    $region49: #{fcn_generator_forward.9} parent=5 // pred_check
      %p770 = pneg %p769
    $region50: #{fcn_generator_forward.9} parent=5 // pred_check_branch
      %772 = sbr.rel (%p770) target = $region52
    $region51: #{fcn_generator_forward.9} parent=5 // pred_region
      %s773 = ssub.s32 %s9, 2
    $region52: #{fcn_generator_forward.9} parent=5 // pred_fallthru
      _
  $region6: #{fcn_generator_forward.9} parent=0 // loop_footer
    %s13 = sadd.s32 1, %s9
  $region7: #{fcn_generator_forward.9} parent=0 // loop_footer_branch
    %8 = sbr.rel target = $region3
  $region8: #{fcn_generator_forward.9} parent=0 // loop_exit
    _

// kernel: fcn_generator_forward.10
$region0: #{fcn_generator_forward.10}
  #allocation0 [shape = 'u32[]', space=smem, size = 0x4, offset = 0x4, fixed_abs, tag = 'smem constant byte address 0x4 - core index']
  #allocation1 [shape = 'u32[144,128]{1,0:T(1,128)}', space=vmem, size = 0x12000, scoped, tag = 'internal scratch']
  #allocation2 [shape = 'f32[256,64]{1,0:T(8,128)}', space=vmem, size = 0x20000, scoped, tag = 'scratch operand']
  %s0 = inlined_call_operand.vmem [shape: bf16[9,512,128], index: 0, kind: input, shape index: {}]
  %s1 = inlined_call_operand.vmem [shape: bf16[9,128,64], index: 1, kind: input, shape index: {}]
  %s2 = inlined_call_operand.vmem [shape: f32[1,64], index: 2, kind: input, shape index: {}]
  %s3 = inlined_call_operand.vmem [shape: bf16[512,64], index: 3, kind: output, shape index: {}]
  %s4 = sld [smem:[#allocation0]]
  $region53: #{fcn_generator_forward.10} parent=0
    _
  %s6 = ssub.s32 1, %s4
  %s7 = scalar_select 0, %s6, %s4
  loop: start=0, step=1, limit=20
  $region2: #{fcn_generator_forward.10} parent=0 // loop_pre_header
    _
  $region3: #{fcn_generator_forward.10} parent=0 // loop_header
    %s9 = sphi 0, %s13
    %p10 = scmp.ge.s32.totalorder %s9, 20
    %s16 = sphi 0, %s28
    %s17 = sphi 0, %s24
    %s18 = sphi 0, %s16
    %s19 = sphi 0, %s17
    %s20 = sphi 0, %s18
    %s21 = sphi 0, %s19
    %s33 = sphi 0, %s35
    %s36 = sphi 0, %s33
    %s37 = sphi 0, %s36
    %s53 = sphi 0, %s37
    %s59 = sphi 0, %s61
    %s62 = sphi 0, %s59
    %s63 = sphi 0, %s62
    %s79 = sphi 0, %s63
    %s83 = sphi 0, %s83
    %s85 = sphi 0, %s83
    %s86 = sphi 0, %s85
    %s100 = sphi 0, %s86
    %s106 = sphi 0, %s108
    %s109 = sphi 0, %s106
    %s110 = sphi 0, %s109
    %s126 = sphi 0, %s110
  $region4: #{fcn_generator_forward.10} parent=0 // loop_header_branch
    %12 = sbr.rel (%p10) target = $region8
  $region5: #{fcn_generator_forward.10} parent=0 // loop_body
    %s14 = ssub.s32 %s9, 1
    %s15 = ssub.s32 %s9, 2
    %s22 = sadd.s32 1, %s17
    %p23 = scmp.ge.s32.totalorder %s22, 9
    %s24 = scalar_select %p23, 0, %s22
    %s25 = sadd.s32 1, %s16
    %s26 = scalar_select %p23, %s25, %s16
    %p27 = scmp.ge.s32.totalorder %s26, 2
    %s28 = scalar_select %p27, 0, %s26
    %s29 = ssub.s32 %s17, %s24
    %s30 = ssub.s32 %s16, %s28
    %s31 = sor.u32 %s29, %s30
    %p32 = scmp.eq.s32.totalorder %s31, 0
    %s34 = sadd.s32 %s33, 1
    %s35 = scalar_select %p32, %s33, %s34
    %p38 = pneg %p32
    %p39 = scmp.eq.s32.totalorder %s9, 17
    %p40 = por %p38, %p39
    %p41 = scmp.ne.s32.totalorder %s33, %s36
    %p42 = scmp.eq.s32.totalorder %s9, 0
    %p43 = por %p41, %p42
    %p44 = scmp.ne.s32.totalorder %s33, %s36
    %p45 = scmp.eq.s32.totalorder %s14, 17
    %p46 = por %p44, %p45
    %p47 = scmp.ne.s32.totalorder %s36, %s37
    %p48 = scmp.eq.s32.totalorder %s14, 0
    %p49 = por %p47, %p48
    %p50 = scmp.ne.s32.totalorder %s36, %s37
    %p51 = scmp.eq.s32.totalorder %s15, 17
    %p52 = por %p50, %p51
    %p54 = scmp.ne.s32.totalorder %s37, %s53
    %p55 = scmp.eq.s32.totalorder %s15, 0
    %p56 = por %p54, %p55
    %s57 = ssub.s32 %s17, %s24
    %p58 = scmp.eq.s32.totalorder %s57, 0
    %s60 = sadd.s32 %s59, 1
    %s61 = scalar_select %p58, %s59, %s60
    %p64 = pneg %p58
    %p65 = scmp.eq.s32.totalorder %s9, 17
    %p66 = por %p64, %p65
    %p67 = scmp.ne.s32.totalorder %s59, %s62
    %p68 = scmp.eq.s32.totalorder %s9, 0
    %p69 = por %p67, %p68
    %p70 = scmp.ne.s32.totalorder %s59, %s62
    %p71 = scmp.eq.s32.totalorder %s14, 17
    %p72 = por %p70, %p71
    %p73 = scmp.ne.s32.totalorder %s62, %s63
    %p74 = scmp.eq.s32.totalorder %s14, 0
    %p75 = por %p73, %p74
    %p76 = scmp.ne.s32.totalorder %s62, %s63
    %p77 = scmp.eq.s32.totalorder %s15, 17
    %p78 = por %p76, %p77
    %p80 = scmp.ne.s32.totalorder %s63, %s79
    %p81 = scmp.eq.s32.totalorder %s15, 0
    %p82 = por %p80, %p81
    %s84 = sadd.s32 %s83, 1
    %p87 = scmp.eq.s32.totalorder %s9, 17
    %p88 = scmp.ne.s32.totalorder %s83, %s85
    %p89 = scmp.eq.s32.totalorder %s9, 0
    %p90 = por %p88, %p89
    %p91 = scmp.ne.s32.totalorder %s83, %s85
    %p92 = scmp.eq.s32.totalorder %s14, 17
    %p93 = por %p91, %p92
    %p94 = scmp.ne.s32.totalorder %s85, %s86
    %p95 = scmp.eq.s32.totalorder %s14, 0
    %p96 = por %p94, %p95
    %p97 = scmp.ne.s32.totalorder %s85, %s86
    %p98 = scmp.eq.s32.totalorder %s15, 17
    %p99 = por %p97, %p98
    %p101 = scmp.ne.s32.totalorder %s86, %s100
    %p102 = scmp.eq.s32.totalorder %s15, 0
    %p103 = por %p101, %p102
    %s104 = ssub.s32 %s16, %s28
    %p105 = scmp.eq.s32.totalorder %s104, 0
    %s107 = sadd.s32 %s106, 1
    %s108 = scalar_select %p105, %s106, %s107
    %p111 = pneg %p105
    %p112 = scmp.eq.s32.totalorder %s9, 17
    %p113 = por %p111, %p112
    %p114 = scmp.ne.s32.totalorder %s106, %s109
    %p115 = scmp.eq.s32.totalorder %s9, 0
    %p116 = por %p114, %p115
    %p117 = scmp.ne.s32.totalorder %s106, %s109
    %p118 = scmp.eq.s32.totalorder %s14, 17
    %p119 = por %p117, %p118
    %p120 = scmp.ne.s32.totalorder %s109, %s110
    %p121 = scmp.eq.s32.totalorder %s14, 0
    %p122 = por %p120, %p121
    %p123 = scmp.ne.s32.totalorder %s109, %s110
    %p124 = scmp.eq.s32.totalorder %s15, 17
    %p125 = por %p123, %p124
    %p127 = scmp.ne.s32.totalorder %s110, %s126
    %p128 = scmp.eq.s32.totalorder %s15, 0
    %p129 = por %p127, %p128
    %p130 = scmp.le.s32.totalorder 1, %s9
    %p131 = scmp.lt.s32.totalorder %s9, 19
    %p132 = pnand %p130, %p131
    %p133 = pneg %p132
    // Predicated region
    $region9: #{fcn_generator_forward.10} parent=5 // pred_check
      _
    $region10: #{fcn_generator_forward.10} parent=5 // pred_check_branch
      %135 = sbr.rel (%p132) target = $region12
    $region11: #{fcn_generator_forward.10} parent=5 // pred_region
      %s136 = ssub.s32 %s9, 1
      // Predicated region
      $region13: #{fcn_generator_forward.10} parent=11 // pred_check
        %p137 = pneg %p96
      $region14: #{fcn_generator_forward.10} parent=11 // pred_check_branch
        %139 = sbr.rel (%p137) target = $region16
      $region15: #{fcn_generator_forward.10} parent=11 // pred_region
        _
      $region16: #{fcn_generator_forward.10} parent=11 // pred_fallthru
        _
    $region12: #{fcn_generator_forward.10} parent=5 // pred_fallthru
      _
    %p140 = scmp.lt.s32.totalorder %s9, 18
    // Predicated region
    $region17: #{fcn_generator_forward.10} parent=5 // pred_check
      %p141 = pneg %p140
    $region18: #{fcn_generator_forward.10} parent=5 // pred_check_branch
      %143 = sbr.rel (%p141) target = $region20
    $region19: #{fcn_generator_forward.10} parent=5 // pred_region
      // Predicated region
      $region21: #{fcn_generator_forward.10} parent=19 // pred_check
        %p144 = pneg %p43
      $region22: #{fcn_generator_forward.10} parent=19 // pred_check_branch
        %146 = sbr.rel (%p144) target = $region24
      $region23: #{fcn_generator_forward.10} parent=19 // pred_region
        %s147 = smul.u32 32, %s16
        %p148 = scmp.lt.s32.totalorder %s17, 8
        %s149 = scalar_select %p148, %s17, 8
        %p150 = scmp.lt.s32.totalorder %s147, 63
        %s151 = scalar_select %p150, %s147, 63
        %s152 = smul.addr %s149, 64
        %s153 = sadd.s32 %s151, %s152
        %s154 = smul.addr %s153, 4
        %s155 = scalar_lea.vmem %s0, %s154
        %s156 = smul.u32 32, %s16
      $region24: #{fcn_generator_forward.10} parent=19 // pred_fallthru
        _
      // Predicated region
      $region25: #{fcn_generator_forward.10} parent=19 // pred_check
        %p157 = pneg %p69
      $region26: #{fcn_generator_forward.10} parent=19 // pred_check_branch
        %159 = sbr.rel (%p157) target = $region28
      $region27: #{fcn_generator_forward.10} parent=19 // pred_region
        %p160 = scmp.lt.s32.totalorder %s17, 8
        %s161 = scalar_select %p160, %s17, 8
        %s162 = smul.addr %s161, 16
        %s163 = smul.addr %s162, 4
        %s164 = scalar_lea.vmem %s1, %s163
      $region28: #{fcn_generator_forward.10} parent=19 // pred_fallthru
        _
    $region20: #{fcn_generator_forward.10} parent=5 // pred_fallthru
      _
    %p165 = scmp.le.s32.totalorder 1, %s9
    %p166 = scmp.lt.s32.totalorder %s9, 19
    %p167 = pnand %p165, %p166
    %p168 = pneg %p167
    // Predicated region
    $region29: #{fcn_generator_forward.10} parent=5 // pred_check
      _
    $region30: #{fcn_generator_forward.10} parent=5 // pred_check_branch
      %170 = sbr.rel (%p167) target = $region32
    $region31: #{fcn_generator_forward.10} parent=5 // pred_region
      %s171 = ssub.s32 %s9, 1
      %s172 = smul.u32 32, %s18
      %p173 = scmp.lt.s32.totalorder %s19, 8
      %s174 = scalar_select %p173, %s19, 8
      %p175 = scmp.lt.s32.totalorder %s172, 63
      %s176 = scalar_select %p175, %s172, 63
      %s177 = smul.addr %s174, 64
      %s178 = sadd.s32 %s176, %s177
      %s179 = smul.addr %s178, 4
      %s180 = scalar_lea.vmem %s0, %s179
      %p181 = pneg %p49
      %p182 = pneg %p46
      %p183 = scmp.lt.s32.totalorder %s19, 8
      %s184 = scalar_select %p183, %s19, 8
      %s185 = smul.addr %s184, 16
      %s186 = smul.addr %s185, 4
      %s187 = scalar_lea.vmem %s1, %s186
      %p188 = pneg %p75
      %p189 = pneg %p72
      %p190 = pneg %p96
      %p191 = pneg %p93
      %p192 = pneg %p122
      %p193 = pneg %p119
      %s194 = smul.u32 32, %s18
      %p195 = scmp.lt.s32.totalorder %s194, 63
      %s196 = scalar_select %p195, %s194, 63
      %s197 = smul.addr %s196, 4
      %s198 = scalar_lea.vmem %s3, %s197
      %s199 = smul.u32 32, %s18
      %p200 = scmp.lt.s32.totalorder %s19, 8
      %s201 = scalar_select %p200, %s19, 8
      %p202 = scmp.lt.s32.totalorder %s199, 63
      %s203 = scalar_select %p202, %s199, 63
      %s204 = smul.addr %s201, 64
      %s205 = sadd.s32 %s203, %s204
      %s206 = smul.addr %s205, 4
      %s207 = scalar_lea.vmem %s0, %s206
      %s208 = smul.u32 32, %s18
      %p209 = scmp.lt.s32.totalorder %s19, 8
      %s210 = scalar_select %p209, %s19, 8
      %s211 = smul.addr %s210, 16
      %s212 = smul.addr %s211, 4
      %s213 = scalar_lea.vmem %s1, %s212
      %s214 = smul.u32 32, %s18
      %p215 = scmp.lt.s32.totalorder %s214, 63
      %s216 = scalar_select %p215, %s214, 63
      %s217 = smul.addr %s216, 4
      %s218 = scalar_lea.vmem %s3, %s217
      %s219 = smul.u32 32, %s18
      %p221 = scmp.eq.s32.totalorder %s19, 0
      // Predicated region
      $region33: #{fcn_generator_forward.10} parent=31 // pred_check
        %p222 = pneg %p221
      $region34: #{fcn_generator_forward.10} parent=31 // pred_check_branch
        %224 = sbr.rel (%p222) target = $region36
      $region35: #{fcn_generator_forward.10} parent=31 // pred_region
        %vm225 = vcmask 523264
        %226 = vst.msk [vmem:[#allocation2] sm:$0xff] %vm225, 0.0
        %227 = vst.msk [vmem:[#allocation2 + $0x8] sm:$0xff] %vm225, 0.0
        %228 = vst.msk [vmem:[#allocation2 + $0x10] sm:$0xff] %vm225, 0.0
        %229 = vst.msk [vmem:[#allocation2 + $0x18] sm:$0xff] %vm225, 0.0
        %230 = vst.msk [vmem:[#allocation2 + $0x20] sm:$0xff] %vm225, 0.0
        %231 = vst.msk [vmem:[#allocation2 + $0x28] sm:$0xff] %vm225, 0.0
        %232 = vst.msk [vmem:[#allocation2 + $0x30] sm:$0xff] %vm225, 0.0
        %233 = vst.msk [vmem:[#allocation2 + $0x38] sm:$0xff] %vm225, 0.0
        %234 = vst.msk [vmem:[#allocation2 + $0x40] sm:$0xff] %vm225, 0.0
        %235 = vst.msk [vmem:[#allocation2 + $0x48] sm:$0xff] %vm225, 0.0
        %236 = vst.msk [vmem:[#allocation2 + $0x50] sm:$0xff] %vm225, 0.0
        %237 = vst.msk [vmem:[#allocation2 + $0x58] sm:$0xff] %vm225, 0.0
        %238 = vst.msk [vmem:[#allocation2 + $0x60] sm:$0xff] %vm225, 0.0
        %239 = vst.msk [vmem:[#allocation2 + $0x68] sm:$0xff] %vm225, 0.0
        %240 = vst.msk [vmem:[#allocation2 + $0x70] sm:$0xff] %vm225, 0.0
        %241 = vst.msk [vmem:[#allocation2 + $0x78] sm:$0xff] %vm225, 0.0
        %242 = vst.msk [vmem:[#allocation2 + $0x80] sm:$0xff] %vm225, 0.0
        %243 = vst.msk [vmem:[#allocation2 + $0x88] sm:$0xff] %vm225, 0.0
        %244 = vst.msk [vmem:[#allocation2 + $0x90] sm:$0xff] %vm225, 0.0
        %245 = vst.msk [vmem:[#allocation2 + $0x98] sm:$0xff] %vm225, 0.0
        %246 = vst.msk [vmem:[#allocation2 + $0xa0] sm:$0xff] %vm225, 0.0
        %247 = vst.msk [vmem:[#allocation2 + $0xa8] sm:$0xff] %vm225, 0.0
        %248 = vst.msk [vmem:[#allocation2 + $0xb0] sm:$0xff] %vm225, 0.0
        %249 = vst.msk [vmem:[#allocation2 + $0xb8] sm:$0xff] %vm225, 0.0
        %250 = vst.msk [vmem:[#allocation2 + $0xc0] sm:$0xff] %vm225, 0.0
        %251 = vst.msk [vmem:[#allocation2 + $0xc8] sm:$0xff] %vm225, 0.0
        %252 = vst.msk [vmem:[#allocation2 + $0xd0] sm:$0xff] %vm225, 0.0
        %253 = vst.msk [vmem:[#allocation2 + $0xd8] sm:$0xff] %vm225, 0.0
        %254 = vst.msk [vmem:[#allocation2 + $0xe0] sm:$0xff] %vm225, 0.0
        %255 = vst.msk [vmem:[#allocation2 + $0xe8] sm:$0xff] %vm225, 0.0
        %256 = vst.msk [vmem:[#allocation2 + $0xf0] sm:$0xff] %vm225, 0.0
        %257 = vst.msk [vmem:[#allocation2 + $0xf8] sm:$0xff] %vm225, 0.0
      $region36: #{fcn_generator_forward.10} parent=31 // pred_fallthru
        _
      %v258 = vld [vmem:[#allocation2] sm:$0xff]
      %v259 = vld [vmem:[#allocation2 + $0x8] sm:$0xff]
      %v260 = vld [vmem:[#allocation2 + $0x10] sm:$0xff]
      %v261 = vld [vmem:[#allocation2 + $0x18] sm:$0xff]
      %v262 = vld [vmem:[#allocation2 + $0x20] sm:$0xff]
      %v263 = vld [vmem:[#allocation2 + $0x28] sm:$0xff]
      %v264 = vld [vmem:[#allocation2 + $0x30] sm:$0xff]
      %v265 = vld [vmem:[#allocation2 + $0x38] sm:$0xff]
      %v266 = vld [vmem:[#allocation2 + $0x40] sm:$0xff]
      %v267 = vld [vmem:[#allocation2 + $0x48] sm:$0xff]
      %v268 = vld [vmem:[#allocation2 + $0x50] sm:$0xff]
      %v269 = vld [vmem:[#allocation2 + $0x58] sm:$0xff]
      %v270 = vld [vmem:[#allocation2 + $0x60] sm:$0xff]
      %v271 = vld [vmem:[#allocation2 + $0x68] sm:$0xff]
      %v272 = vld [vmem:[#allocation2 + $0x70] sm:$0xff]
      %v273 = vld [vmem:[#allocation2 + $0x78] sm:$0xff]
      %v274 = vld [vmem:[#allocation2 + $0x80] sm:$0xff]
      %v275 = vld [vmem:[#allocation2 + $0x88] sm:$0xff]
      %v276 = vld [vmem:[#allocation2 + $0x90] sm:$0xff]
      %v277 = vld [vmem:[#allocation2 + $0x98] sm:$0xff]
      %v278 = vld [vmem:[#allocation2 + $0xa0] sm:$0xff]
      %v279 = vld [vmem:[#allocation2 + $0xa8] sm:$0xff]
      %v280 = vld [vmem:[#allocation2 + $0xb0] sm:$0xff]
      %v281 = vld [vmem:[#allocation2 + $0xb8] sm:$0xff]
      %v282 = vld [vmem:[#allocation2 + $0xc0] sm:$0xff]
      %v283 = vld [vmem:[#allocation2 + $0xc8] sm:$0xff]
      %v284 = vld [vmem:[#allocation2 + $0xd0] sm:$0xff]
      %v285 = vld [vmem:[#allocation2 + $0xd8] sm:$0xff]
      %v286 = vld [vmem:[#allocation2 + $0xe0] sm:$0xff]
      %v287 = vld [vmem:[#allocation2 + $0xe8] sm:$0xff]
      %v288 = vld [vmem:[#allocation2 + $0xf0] sm:$0xff]
      %v289 = vld [vmem:[#allocation2 + $0xf8] sm:$0xff]
      %v290 = vld [vmem:[%s207] sm:$0xf]
      %v291 = vld [vmem:[%s207 + $0x4] sm:$0xf]
      %v292 = vld [vmem:[%s207 + $0x8] sm:$0xf]
      %v293 = vld [vmem:[%s207 + $0xc] sm:$0xf]
      %v294 = vld [vmem:[%s207 + $0x10] sm:$0xf]
      %v295 = vld [vmem:[%s207 + $0x14] sm:$0xf]
      %v296 = vld [vmem:[%s207 + $0x18] sm:$0xf]
      %v297 = vld [vmem:[%s207 + $0x1c] sm:$0xf]
      %v298 = vld [vmem:[%s207 + $0x20] sm:$0xf]
      %v299 = vld [vmem:[%s207 + $0x24] sm:$0xf]
      %v300 = vld [vmem:[%s207 + $0x28] sm:$0xf]
      %v301 = vld [vmem:[%s207 + $0x2c] sm:$0xf]
      %v302 = vld [vmem:[%s207 + $0x30] sm:$0xf]
      %v303 = vld [vmem:[%s207 + $0x34] sm:$0xf]
      %v304 = vld [vmem:[%s207 + $0x38] sm:$0xf]
      %v305 = vld [vmem:[%s207 + $0x3c] sm:$0xf]
      %v306 = vld [vmem:[%s207 + $0x40] sm:$0xf]
      %v307 = vld [vmem:[%s207 + $0x44] sm:$0xf]
      %v308 = vld [vmem:[%s207 + $0x48] sm:$0xf]
      %v309 = vld [vmem:[%s207 + $0x4c] sm:$0xf]
      %v310 = vld [vmem:[%s207 + $0x50] sm:$0xf]
      %v311 = vld [vmem:[%s207 + $0x54] sm:$0xf]
      %v312 = vld [vmem:[%s207 + $0x58] sm:$0xf]
      %v313 = vld [vmem:[%s207 + $0x5c] sm:$0xf]
      %v314 = vld [vmem:[%s207 + $0x60] sm:$0xf]
      %v315 = vld [vmem:[%s207 + $0x64] sm:$0xf]
      %v316 = vld [vmem:[%s207 + $0x68] sm:$0xf]
      %v317 = vld [vmem:[%s207 + $0x6c] sm:$0xf]
      %v318 = vld [vmem:[%s207 + $0x70] sm:$0xf]
      %v319 = vld [vmem:[%s207 + $0x74] sm:$0xf]
      %v320 = vld [vmem:[%s207 + $0x78] sm:$0xf]
      %v321 = vld [vmem:[%s207 + $0x7c] sm:$0xf]
      %v322 = vld [vmem:[%s213] sm:$0xf]
      %v323 = vld [vmem:[%s213 + $0x4] sm:$0xf]
      %v324 = vld [vmem:[%s213 + $0x8] sm:$0xf]
      %v325 = vld [vmem:[%s213 + $0xc] sm:$0xf]
      %v326 = vld [vmem:[%s213 + $0x10] sm:$0xf]
      %v327 = vld [vmem:[%s213 + $0x14] sm:$0xf]
      %v328 = vld [vmem:[%s213 + $0x18] sm:$0xf]
      %v329 = vld [vmem:[%s213 + $0x1c] sm:$0xf]
      %v330 = vld [vmem:[%s213 + $0x20] sm:$0xf]
      %v331 = vld [vmem:[%s213 + $0x24] sm:$0xf]
      %v332 = vld [vmem:[%s213 + $0x28] sm:$0xf]
      %v333 = vld [vmem:[%s213 + $0x2c] sm:$0xf]
      %v334 = vld [vmem:[%s213 + $0x30] sm:$0xf]
      %v335 = vld [vmem:[%s213 + $0x34] sm:$0xf]
      %v336 = vld [vmem:[%s213 + $0x38] sm:$0xf]
      %v337 = vld [vmem:[%s213 + $0x3c] sm:$0xf]
      %v370 = vunpack.c.l.b16 %v290
      %v371 = vunpack.c.l.b16 %v291
      %v372 = vunpack.c.l.b16 %v292
      %v373 = vunpack.c.l.b16 %v293
      %v374 = vunpack.c.l.b16 %v294
      %v375 = vunpack.c.l.b16 %v295
      %v376 = vunpack.c.l.b16 %v296
      %v377 = vunpack.c.l.b16 %v297
      %v378 = vunpack.c.l.b16 %v298
      %v379 = vunpack.c.l.b16 %v299
      %v380 = vunpack.c.l.b16 %v300
      %v381 = vunpack.c.l.b16 %v301
      %v382 = vunpack.c.l.b16 %v302
      %v383 = vunpack.c.l.b16 %v303
      %v384 = vunpack.c.l.b16 %v304
      %v385 = vunpack.c.l.b16 %v305
      %v386 = vunpack.c.l.b16 %v306
      %v387 = vunpack.c.l.b16 %v307
      %v388 = vunpack.c.l.b16 %v308
      %v389 = vunpack.c.l.b16 %v309
      %v390 = vunpack.c.l.b16 %v310
      %v391 = vunpack.c.l.b16 %v311
      %v392 = vunpack.c.l.b16 %v312
      %v393 = vunpack.c.l.b16 %v313
      %v394 = vunpack.c.l.b16 %v314
      %v395 = vunpack.c.l.b16 %v315
      %v396 = vunpack.c.l.b16 %v316
      %v397 = vunpack.c.l.b16 %v317
      %v398 = vunpack.c.l.b16 %v318
      %v399 = vunpack.c.l.b16 %v319
      %v400 = vunpack.c.l.b16 %v320
      %v401 = vunpack.c.l.b16 %v321
      %v402 = vpack.c.b16 %v371, %v370
      %v403 = vpack.c.b16 %v373, %v372
      %v404 = vpack.c.b16 %v375, %v374
      %v405 = vpack.c.b16 %v377, %v376
      %v406 = vpack.c.b16 %v379, %v378
      %v407 = vpack.c.b16 %v381, %v380
      %v408 = vpack.c.b16 %v383, %v382
      %v409 = vpack.c.b16 %v385, %v384
      %v410 = vpack.c.b16 %v387, %v386
      %v411 = vpack.c.b16 %v389, %v388
      %v412 = vpack.c.b16 %v391, %v390
      %v413 = vpack.c.b16 %v393, %v392
      %v414 = vpack.c.b16 %v395, %v394
      %v415 = vpack.c.b16 %v397, %v396
      %v416 = vpack.c.b16 %v399, %v398
      %v417 = vpack.c.b16 %v401, %v400
      %v450 = vunpack.c.l.b16 %v322
      %v451 = vunpack.c.l.b16 %v323
      %v452 = vunpack.c.l.b16 %v324
      %v453 = vunpack.c.l.b16 %v325
      %v454 = vunpack.c.l.b16 %v326
      %v455 = vunpack.c.l.b16 %v327
      %v456 = vunpack.c.l.b16 %v328
      %v457 = vunpack.c.l.b16 %v329
      %v458 = vunpack.c.l.b16 %v330
      %v459 = vunpack.c.l.b16 %v331
      %v460 = vunpack.c.l.b16 %v332
      %v461 = vunpack.c.l.b16 %v333
      %v462 = vunpack.c.l.b16 %v334
      %v463 = vunpack.c.l.b16 %v335
      %v464 = vunpack.c.l.b16 %v336
      %v465 = vunpack.c.l.b16 %v337
      %v466 = vpack.c.b16 %v451, %v450
      %v467 = vpack.c.b16 %v453, %v452
      %v468 = vpack.c.b16 %v455, %v454
      %v469 = vpack.c.b16 %v457, %v456
      %v470 = vpack.c.b16 %v459, %v458
      %v471 = vpack.c.b16 %v461, %v460
      %v472 = vpack.c.b16 %v463, %v462
      %v473 = vpack.c.b16 %v465, %v464
      %482 = vmatprep.subr.bf16.mxu0 0
      %483 = vmatpush1.bf16.msra.mxu0 %v466
      %484 = vmatprep.subr.bf16.mxu0 0
      %485 = vmatpush1.bf16.msra.mxu0 %v467
      %486 = vmatprep.subr.bf16.mxu0 0
      %487 = vmatpush1.bf16.msra.mxu0 %v468
      %488 = vmatprep.subr.bf16.mxu0 0
      %489 = vmatpush1.bf16.msra.mxu0 %v469
      %490 = vmatprep.subr.bf16.mxu0 0
      %491 = vmatpush1.bf16.msra.mxu0 %v470
      %492 = vmatprep.subr.bf16.mxu0 0
      %493 = vmatpush1.bf16.msra.mxu0 %v471
      %494 = vmatprep.subr.bf16.mxu0 0
      %495 = vmatpush1.bf16.msra.mxu0 %v472
      %496 = vmatprep.subr.bf16.mxu0 0
      %497 = vmatpush1.bf16.msra.mxu0 %v473
      %498 = vmatprep.subr.bf16.mxu0 0
      %499 = vmatpush1.bf16.msra.mxu0 0
      %500 = vmatprep.subr.bf16.mxu0 0
      %501 = vmatpush1.bf16.msra.mxu0 0
      %502 = vmatprep.subr.bf16.mxu0 0
      %503 = vmatpush1.bf16.msra.mxu0 0
      %504 = vmatprep.subr.bf16.mxu0 0
      %505 = vmatpush1.bf16.msra.mxu0 0
      %506 = vmatprep.subr.bf16.mxu0 0
      %507 = vmatpush1.bf16.msra.mxu0 0
      %508 = vmatprep.subr.bf16.mxu0 0
      %509 = vmatpush1.bf16.msra.mxu0 0
      %510 = vmatprep.subr.bf16.mxu0 0
      %511 = vmatpush1.bf16.msra.mxu0 0
      %512 = vmatprep.subr.bf16.mxu0 0
      %513 = vmatpush1.bf16.msra.mxu0 0
      %514 = vmatprep.mubr.bf16.mxu0 0
      %515 = vmatmul.mubr.bf16.gmra.mrb[0].mxu0 %v402
      %v516 = vpop.f32.mrb[0].mxu0
      %v517 = vadd.f32 0.0, %v516
      %v518 = vpop.f32.mrb[0].mxu0
      %v519 = vpop.f32.mrb[0].mxu0
      %v520 = vadd.f32 0.0, %v519
      %v521 = vpop.f32.mrb[0].mxu0
      %522 = vmatprep.mubr.bf16.mxu0 0
      %523 = vmatmul.mubr.bf16.gmra.mrb[0].mxu0 %v403
      %v524 = vpop.f32.mrb[0].mxu0
      %v525 = vadd.f32 0.0, %v524
      %v526 = vpop.f32.mrb[0].mxu0
      %v527 = vpop.f32.mrb[0].mxu0
      %v528 = vadd.f32 0.0, %v527
      %v529 = vpop.f32.mrb[0].mxu0
      %530 = vmatprep.mubr.bf16.mxu0 0
      %531 = vmatmul.mubr.bf16.gmra.mrb[0].mxu0 %v404
      %v532 = vpop.f32.mrb[0].mxu0
      %v533 = vadd.f32 0.0, %v532
      %v534 = vpop.f32.mrb[0].mxu0
      %v535 = vpop.f32.mrb[0].mxu0
      %v536 = vadd.f32 0.0, %v535
      %v537 = vpop.f32.mrb[0].mxu0
      %538 = vmatprep.mubr.bf16.mxu0 0
      %539 = vmatmul.mubr.bf16.gmra.mrb[0].mxu0 %v405
      %v540 = vpop.f32.mrb[0].mxu0
      %v541 = vadd.f32 0.0, %v540
      %v542 = vpop.f32.mrb[0].mxu0
      %v543 = vpop.f32.mrb[0].mxu0
      %v544 = vadd.f32 0.0, %v543
      %v545 = vpop.f32.mrb[0].mxu0
      %546 = vmatprep.mubr.bf16.mxu0 0
      %547 = vmatmul.mubr.bf16.gmra.mrb[0].mxu0 %v406
      %v548 = vpop.f32.mrb[0].mxu0
      %v549 = vadd.f32 0.0, %v548
      %v550 = vpop.f32.mrb[0].mxu0
      %v551 = vpop.f32.mrb[0].mxu0
      %v552 = vadd.f32 0.0, %v551
      %v553 = vpop.f32.mrb[0].mxu0
      %554 = vmatprep.mubr.bf16.mxu0 0
      %555 = vmatmul.mubr.bf16.gmra.mrb[0].mxu0 %v407
      %v556 = vpop.f32.mrb[0].mxu0
      %v557 = vadd.f32 0.0, %v556
      %v558 = vpop.f32.mrb[0].mxu0
      %v559 = vpop.f32.mrb[0].mxu0
      %v560 = vadd.f32 0.0, %v559
      %v561 = vpop.f32.mrb[0].mxu0
      %562 = vmatprep.mubr.bf16.mxu0 0
      %563 = vmatmul.mubr.bf16.gmra.mrb[0].mxu0 %v408
      %v564 = vpop.f32.mrb[0].mxu0
      %v565 = vadd.f32 0.0, %v564
      %v566 = vpop.f32.mrb[0].mxu0
      %v567 = vpop.f32.mrb[0].mxu0
      %v568 = vadd.f32 0.0, %v567
      %v569 = vpop.f32.mrb[0].mxu0
      %570 = vmatprep.mubr.bf16.mxu0 0
      %571 = vmatmul.mubr.bf16.gmra.mrb[0].mxu0 %v409
      %v572 = vpop.f32.mrb[0].mxu0
      %v573 = vadd.f32 0.0, %v572
      %v574 = vpop.f32.mrb[0].mxu0
      %v575 = vpop.f32.mrb[0].mxu0
      %v576 = vadd.f32 0.0, %v575
      %v577 = vpop.f32.mrb[0].mxu0
      %578 = vmatprep.mubr.bf16.mxu0 0
      %579 = vmatmul.mubr.bf16.gmra.mrb[0].mxu0 %v410
      %v580 = vpop.f32.mrb[0].mxu0
      %v581 = vadd.f32 0.0, %v580
      %v582 = vpop.f32.mrb[0].mxu0
      %v583 = vpop.f32.mrb[0].mxu0
      %v584 = vadd.f32 0.0, %v583
      %v585 = vpop.f32.mrb[0].mxu0
      %586 = vmatprep.mubr.bf16.mxu0 0
      %587 = vmatmul.mubr.bf16.gmra.mrb[0].mxu0 %v411
      %v588 = vpop.f32.mrb[0].mxu0
      %v589 = vadd.f32 0.0, %v588
      %v590 = vpop.f32.mrb[0].mxu0
      %v591 = vpop.f32.mrb[0].mxu0
      %v592 = vadd.f32 0.0, %v591
      %v593 = vpop.f32.mrb[0].mxu0
      %594 = vmatprep.mubr.bf16.mxu0 0
      %595 = vmatmul.mubr.bf16.gmra.mrb[0].mxu0 %v412
      %v596 = vpop.f32.mrb[0].mxu0
      %v597 = vadd.f32 0.0, %v596
      %v598 = vpop.f32.mrb[0].mxu0
      %v599 = vpop.f32.mrb[0].mxu0
      %v600 = vadd.f32 0.0, %v599
      %v601 = vpop.f32.mrb[0].mxu0
      %602 = vmatprep.mubr.bf16.mxu0 0
      %603 = vmatmul.mubr.bf16.gmra.mrb[0].mxu0 %v413
      %v604 = vpop.f32.mrb[0].mxu0
      %v605 = vadd.f32 0.0, %v604
      %v606 = vpop.f32.mrb[0].mxu0
      %v607 = vpop.f32.mrb[0].mxu0
      %v608 = vadd.f32 0.0, %v607
      %v609 = vpop.f32.mrb[0].mxu0
      %610 = vmatprep.mubr.bf16.mxu0 0
      %611 = vmatmul.mubr.bf16.gmra.mrb[0].mxu0 %v414
      %v612 = vpop.f32.mrb[0].mxu0
      %v613 = vadd.f32 0.0, %v612
      %v614 = vpop.f32.mrb[0].mxu0
      %v615 = vpop.f32.mrb[0].mxu0
      %v616 = vadd.f32 0.0, %v615
      %v617 = vpop.f32.mrb[0].mxu0
      %618 = vmatprep.mubr.bf16.mxu0 0
      %619 = vmatmul.mubr.bf16.gmra.mrb[0].mxu0 %v415
      %v620 = vpop.f32.mrb[0].mxu0
      %v621 = vadd.f32 0.0, %v620
      %v622 = vpop.f32.mrb[0].mxu0
      %v623 = vpop.f32.mrb[0].mxu0
      %v624 = vadd.f32 0.0, %v623
      %v625 = vpop.f32.mrb[0].mxu0
      %626 = vmatprep.mubr.bf16.mxu0 0
      %627 = vmatmul.mubr.bf16.gmra.mrb[0].mxu0 %v416
      %v628 = vpop.f32.mrb[0].mxu0
      %v629 = vadd.f32 0.0, %v628
      %v630 = vpop.f32.mrb[0].mxu0
      %v631 = vpop.f32.mrb[0].mxu0
      %v632 = vadd.f32 0.0, %v631
      %v633 = vpop.f32.mrb[0].mxu0
      %634 = vmatprep.mubr.bf16.mxu0 0
      %635 = vmatmul.mubr.bf16.gmra.mrb[0].mxu0 %v417
      %v636 = vpop.f32.mrb[0].mxu0
      %v637 = vadd.f32 0.0, %v636
      %v638 = vpop.f32.mrb[0].mxu0
      %v639 = vpop.f32.mrb[0].mxu0
      %v640 = vadd.f32 0.0, %v639
      %v641 = vpop.f32.mrb[0].mxu0
      %642 = vdwg.mxu0
      %v643 = vadd.f32 %v258, %v517
      %v644 = vadd.f32 %v259, %v520
      %v645 = vadd.f32 %v260, %v525
      %v646 = vadd.f32 %v261, %v528
      %v647 = vadd.f32 %v262, %v533
      %v648 = vadd.f32 %v263, %v536
      %v649 = vadd.f32 %v264, %v541
      %v650 = vadd.f32 %v265, %v544
      %v651 = vadd.f32 %v266, %v549
      %v652 = vadd.f32 %v267, %v552
      %v653 = vadd.f32 %v268, %v557
      %v654 = vadd.f32 %v269, %v560
      %v655 = vadd.f32 %v270, %v565
      %v656 = vadd.f32 %v271, %v568
      %v657 = vadd.f32 %v272, %v573
      %v658 = vadd.f32 %v273, %v576
      %v659 = vadd.f32 %v274, %v581
      %v660 = vadd.f32 %v275, %v584
      %v661 = vadd.f32 %v276, %v589
      %v662 = vadd.f32 %v277, %v592
      %v663 = vadd.f32 %v278, %v597
      %v664 = vadd.f32 %v279, %v600
      %v665 = vadd.f32 %v280, %v605
      %v666 = vadd.f32 %v281, %v608
      %v667 = vadd.f32 %v282, %v613
      %v668 = vadd.f32 %v283, %v616
      %v669 = vadd.f32 %v284, %v621
      %v670 = vadd.f32 %v285, %v624
      %v671 = vadd.f32 %v286, %v629
      %v672 = vadd.f32 %v287, %v632
      %v673 = vadd.f32 %v288, %v637
      %v674 = vadd.f32 %v289, %v640
      %vm675 = vcmask 523264
      %676 = vst.msk [vmem:[#allocation2] sm:$0xff] %vm675, %v643
      %677 = vst.msk [vmem:[#allocation2 + $0x8] sm:$0xff] %vm675, %v644
      %678 = vst.msk [vmem:[#allocation2 + $0x10] sm:$0xff] %vm675, %v645
      %679 = vst.msk [vmem:[#allocation2 + $0x18] sm:$0xff] %vm675, %v646
      %680 = vst.msk [vmem:[#allocation2 + $0x20] sm:$0xff] %vm675, %v647
      %681 = vst.msk [vmem:[#allocation2 + $0x28] sm:$0xff] %vm675, %v648
      %682 = vst.msk [vmem:[#allocation2 + $0x30] sm:$0xff] %vm675, %v649
      %683 = vst.msk [vmem:[#allocation2 + $0x38] sm:$0xff] %vm675, %v650
      %684 = vst.msk [vmem:[#allocation2 + $0x40] sm:$0xff] %vm675, %v651
      %685 = vst.msk [vmem:[#allocation2 + $0x48] sm:$0xff] %vm675, %v652
      %686 = vst.msk [vmem:[#allocation2 + $0x50] sm:$0xff] %vm675, %v653
      %687 = vst.msk [vmem:[#allocation2 + $0x58] sm:$0xff] %vm675, %v654
      %688 = vst.msk [vmem:[#allocation2 + $0x60] sm:$0xff] %vm675, %v655
      %689 = vst.msk [vmem:[#allocation2 + $0x68] sm:$0xff] %vm675, %v656
      %690 = vst.msk [vmem:[#allocation2 + $0x70] sm:$0xff] %vm675, %v657
      %691 = vst.msk [vmem:[#allocation2 + $0x78] sm:$0xff] %vm675, %v658
      %692 = vst.msk [vmem:[#allocation2 + $0x80] sm:$0xff] %vm675, %v659
      %693 = vst.msk [vmem:[#allocation2 + $0x88] sm:$0xff] %vm675, %v660
      %694 = vst.msk [vmem:[#allocation2 + $0x90] sm:$0xff] %vm675, %v661
      %695 = vst.msk [vmem:[#allocation2 + $0x98] sm:$0xff] %vm675, %v662
      %696 = vst.msk [vmem:[#allocation2 + $0xa0] sm:$0xff] %vm675, %v663
      %697 = vst.msk [vmem:[#allocation2 + $0xa8] sm:$0xff] %vm675, %v664
      %698 = vst.msk [vmem:[#allocation2 + $0xb0] sm:$0xff] %vm675, %v665
      %699 = vst.msk [vmem:[#allocation2 + $0xb8] sm:$0xff] %vm675, %v666
      %700 = vst.msk [vmem:[#allocation2 + $0xc0] sm:$0xff] %vm675, %v667
      %701 = vst.msk [vmem:[#allocation2 + $0xc8] sm:$0xff] %vm675, %v668
      %702 = vst.msk [vmem:[#allocation2 + $0xd0] sm:$0xff] %vm675, %v669
      %703 = vst.msk [vmem:[#allocation2 + $0xd8] sm:$0xff] %vm675, %v670
      %704 = vst.msk [vmem:[#allocation2 + $0xe0] sm:$0xff] %vm675, %v671
      %705 = vst.msk [vmem:[#allocation2 + $0xe8] sm:$0xff] %vm675, %v672
      %706 = vst.msk [vmem:[#allocation2 + $0xf0] sm:$0xff] %vm675, %v673
      %707 = vst.msk [vmem:[#allocation2 + $0xf8] sm:$0xff] %vm675, %v674
      %p708 = scmp.eq.s32.totalorder %s19, 8
      // Predicated region
      $region37: #{fcn_generator_forward.10} parent=31 // pred_check
        %p709 = pneg %p708
      $region38: #{fcn_generator_forward.10} parent=31 // pred_check_branch
        %711 = sbr.rel (%p709) target = $region40
      $region39: #{fcn_generator_forward.10} parent=31 // pred_region
        %v712 = vld [vmem:[#allocation2] sm:$0xff]
        %v713 = vld [vmem:[#allocation2 + $0x8] sm:$0xff]
        %v714 = vld [vmem:[#allocation2 + $0x10] sm:$0xff]
        %v715 = vld [vmem:[#allocation2 + $0x18] sm:$0xff]
        %v716 = vld [vmem:[#allocation2 + $0x20] sm:$0xff]
        %v717 = vld [vmem:[#allocation2 + $0x28] sm:$0xff]
        %v718 = vld [vmem:[#allocation2 + $0x30] sm:$0xff]
        %v719 = vld [vmem:[#allocation2 + $0x38] sm:$0xff]
        %v720 = vld [vmem:[#allocation2 + $0x40] sm:$0xff]
        %v721 = vld [vmem:[#allocation2 + $0x48] sm:$0xff]
        %v722 = vld [vmem:[#allocation2 + $0x50] sm:$0xff]
        %v723 = vld [vmem:[#allocation2 + $0x58] sm:$0xff]
        %v724 = vld [vmem:[#allocation2 + $0x60] sm:$0xff]
        %v725 = vld [vmem:[#allocation2 + $0x68] sm:$0xff]
        %v726 = vld [vmem:[#allocation2 + $0x70] sm:$0xff]
        %v727 = vld [vmem:[#allocation2 + $0x78] sm:$0xff]
        %v728 = vld [vmem:[#allocation2 + $0x80] sm:$0xff]
        %v729 = vld [vmem:[#allocation2 + $0x88] sm:$0xff]
        %v730 = vld [vmem:[#allocation2 + $0x90] sm:$0xff]
        %v731 = vld [vmem:[#allocation2 + $0x98] sm:$0xff]
        %v732 = vld [vmem:[#allocation2 + $0xa0] sm:$0xff]
        %v733 = vld [vmem:[#allocation2 + $0xa8] sm:$0xff]
        %v734 = vld [vmem:[#allocation2 + $0xb0] sm:$0xff]
        %v735 = vld [vmem:[#allocation2 + $0xb8] sm:$0xff]
        %v736 = vld [vmem:[#allocation2 + $0xc0] sm:$0xff]
        %v737 = vld [vmem:[#allocation2 + $0xc8] sm:$0xff]
        %v738 = vld [vmem:[#allocation2 + $0xd0] sm:$0xff]
        %v739 = vld [vmem:[#allocation2 + $0xd8] sm:$0xff]
        %v740 = vld [vmem:[#allocation2 + $0xe0] sm:$0xff]
        %v741 = vld [vmem:[#allocation2 + $0xe8] sm:$0xff]
        %v742 = vld [vmem:[#allocation2 + $0xf0] sm:$0xff]
        %v743 = vld [vmem:[#allocation2 + $0xf8] sm:$0xff]
        %v744 = vld [vmem:[%s2] sm:$0x1]
        %v746 = vlaneseq
        %v747 = vshrl.u32 %v746, 7
        %v748 = vsub.s32 0, %v747
        %v749 = vrot.slane %v744, %v748
        %v751 = vadd.f32 %v712, %v749
        %v752 = vadd.f32 %v713, %v749
        %v753 = vadd.f32 %v714, %v749
        %v754 = vadd.f32 %v715, %v749
        %v755 = vadd.f32 %v716, %v749
        %v756 = vadd.f32 %v717, %v749
        %v757 = vadd.f32 %v718, %v749
        %v758 = vadd.f32 %v719, %v749
        %v759 = vadd.f32 %v720, %v749
        %v760 = vadd.f32 %v721, %v749
        %v761 = vadd.f32 %v722, %v749
        %v762 = vadd.f32 %v723, %v749
        %v763 = vadd.f32 %v724, %v749
        %v764 = vadd.f32 %v725, %v749
        %v765 = vadd.f32 %v726, %v749
        %v766 = vadd.f32 %v727, %v749
        %v767 = vadd.f32 %v728, %v749
        %v768 = vadd.f32 %v729, %v749
        %v769 = vadd.f32 %v730, %v749
        %v770 = vadd.f32 %v731, %v749
        %v771 = vadd.f32 %v732, %v749
        %v772 = vadd.f32 %v733, %v749
        %v773 = vadd.f32 %v734, %v749
        %v774 = vadd.f32 %v735, %v749
        %v775 = vadd.f32 %v736, %v749
        %v776 = vadd.f32 %v737, %v749
        %v777 = vadd.f32 %v738, %v749
        %v778 = vadd.f32 %v739, %v749
        %v779 = vadd.f32 %v740, %v749
        %v780 = vadd.f32 %v741, %v749
        %v781 = vadd.f32 %v742, %v749
        %v782 = vadd.f32 %v743, %v749
        %v783 = vmax.f32 %v751, 0.0
        %v784 = vmax.f32 %v752, 0.0
        %v785 = vmax.f32 %v753, 0.0
        %v786 = vmax.f32 %v754, 0.0
        %v787 = vmax.f32 %v755, 0.0
        %v788 = vmax.f32 %v756, 0.0
        %v789 = vmax.f32 %v757, 0.0
        %v790 = vmax.f32 %v758, 0.0
        %v791 = vmax.f32 %v759, 0.0
        %v792 = vmax.f32 %v760, 0.0
        %v793 = vmax.f32 %v761, 0.0
        %v794 = vmax.f32 %v762, 0.0
        %v795 = vmax.f32 %v763, 0.0
        %v796 = vmax.f32 %v764, 0.0
        %v797 = vmax.f32 %v765, 0.0
        %v798 = vmax.f32 %v766, 0.0
        %v799 = vmax.f32 %v767, 0.0
        %v800 = vmax.f32 %v768, 0.0
        %v801 = vmax.f32 %v769, 0.0
        %v802 = vmax.f32 %v770, 0.0
        %v803 = vmax.f32 %v771, 0.0
        %v804 = vmax.f32 %v772, 0.0
        %v805 = vmax.f32 %v773, 0.0
        %v806 = vmax.f32 %v774, 0.0
        %v807 = vmax.f32 %v775, 0.0
        %v808 = vmax.f32 %v776, 0.0
        %v809 = vmax.f32 %v777, 0.0
        %v810 = vmax.f32 %v778, 0.0
        %v811 = vmax.f32 %v779, 0.0
        %v812 = vmax.f32 %v780, 0.0
        %v813 = vmax.f32 %v781, 0.0
        %v814 = vmax.f32 %v782, 0.0
        %v815 = vpack.c.bf16 %v784, %v783
        %v816 = vpack.c.bf16 %v786, %v785
        %v817 = vpack.c.bf16 %v788, %v787
        %v818 = vpack.c.bf16 %v790, %v789
        %v819 = vpack.c.bf16 %v792, %v791
        %v820 = vpack.c.bf16 %v794, %v793
        %v821 = vpack.c.bf16 %v796, %v795
        %v822 = vpack.c.bf16 %v798, %v797
        %v823 = vpack.c.bf16 %v800, %v799
        %v824 = vpack.c.bf16 %v802, %v801
        %v825 = vpack.c.bf16 %v804, %v803
        %v826 = vpack.c.bf16 %v806, %v805
        %v827 = vpack.c.bf16 %v808, %v807
        %v828 = vpack.c.bf16 %v810, %v809
        %v829 = vpack.c.bf16 %v812, %v811
        %v830 = vpack.c.bf16 %v814, %v813
        %v847 = vunpack.c.l.b16 %v815
        %v848 = vunpack.c.h.b16 %v815
        %v849 = vunpack.c.l.b16 %v816
        %v850 = vunpack.c.h.b16 %v816
        %v851 = vunpack.c.l.b16 %v817
        %v852 = vunpack.c.h.b16 %v817
        %v853 = vunpack.c.l.b16 %v818
        %v854 = vunpack.c.h.b16 %v818
        %v855 = vunpack.c.l.b16 %v819
        %v856 = vunpack.c.h.b16 %v819
        %v857 = vunpack.c.l.b16 %v820
        %v858 = vunpack.c.h.b16 %v820
        %v859 = vunpack.c.l.b16 %v821
        %v860 = vunpack.c.h.b16 %v821
        %v861 = vunpack.c.l.b16 %v822
        %v862 = vunpack.c.h.b16 %v822
        %v863 = vunpack.c.l.b16 %v823
        %v864 = vunpack.c.h.b16 %v823
        %v865 = vunpack.c.l.b16 %v824
        %v866 = vunpack.c.h.b16 %v824
        %v867 = vunpack.c.l.b16 %v825
        %v868 = vunpack.c.h.b16 %v825
        %v869 = vunpack.c.l.b16 %v826
        %v870 = vunpack.c.h.b16 %v826
        %v871 = vunpack.c.l.b16 %v827
        %v872 = vunpack.c.h.b16 %v827
        %v873 = vunpack.c.l.b16 %v828
        %v874 = vunpack.c.h.b16 %v828
        %v875 = vunpack.c.l.b16 %v829
        %v876 = vunpack.c.h.b16 %v829
        %v877 = vunpack.c.l.b16 %v830
        %v878 = vunpack.c.h.b16 %v830
        %v879 = vpack.c.b16 %v847, %v847
        %v880 = vpack.c.b16 %v848, %v848
        %v881 = vpack.c.b16 %v849, %v849
        %v882 = vpack.c.b16 %v850, %v850
        %v883 = vpack.c.b16 %v851, %v851
        %v884 = vpack.c.b16 %v852, %v852
        %v885 = vpack.c.b16 %v853, %v853
        %v886 = vpack.c.b16 %v854, %v854
        %v887 = vpack.c.b16 %v855, %v855
        %v888 = vpack.c.b16 %v856, %v856
        %v889 = vpack.c.b16 %v857, %v857
        %v890 = vpack.c.b16 %v858, %v858
        %v891 = vpack.c.b16 %v859, %v859
        %v892 = vpack.c.b16 %v860, %v860
        %v893 = vpack.c.b16 %v861, %v861
        %v894 = vpack.c.b16 %v862, %v862
        %v895 = vpack.c.b16 %v863, %v863
        %v896 = vpack.c.b16 %v864, %v864
        %v897 = vpack.c.b16 %v865, %v865
        %v898 = vpack.c.b16 %v866, %v866
        %v899 = vpack.c.b16 %v867, %v867
        %v900 = vpack.c.b16 %v868, %v868
        %v901 = vpack.c.b16 %v869, %v869
        %v902 = vpack.c.b16 %v870, %v870
        %v903 = vpack.c.b16 %v871, %v871
        %v904 = vpack.c.b16 %v872, %v872
        %v905 = vpack.c.b16 %v873, %v873
        %v906 = vpack.c.b16 %v874, %v874
        %v907 = vpack.c.b16 %v875, %v875
        %v908 = vpack.c.b16 %v876, %v876
        %v909 = vpack.c.b16 %v877, %v877
        %v910 = vpack.c.b16 %v878, %v878
        %vm943 = vcmask 519168
        %944 = vst.msk [vmem:[%s218] sm:$0xf] %vm943, %v879
        %945 = vst.msk [vmem:[%s218 + $0x4] sm:$0xf] %vm943, %v880
        %946 = vst.msk [vmem:[%s218 + $0x8] sm:$0xf] %vm943, %v881
        %947 = vst.msk [vmem:[%s218 + $0xc] sm:$0xf] %vm943, %v882
        %948 = vst.msk [vmem:[%s218 + $0x10] sm:$0xf] %vm943, %v883
        %949 = vst.msk [vmem:[%s218 + $0x14] sm:$0xf] %vm943, %v884
        %950 = vst.msk [vmem:[%s218 + $0x18] sm:$0xf] %vm943, %v885
        %951 = vst.msk [vmem:[%s218 + $0x1c] sm:$0xf] %vm943, %v886
        %952 = vst.msk [vmem:[%s218 + $0x20] sm:$0xf] %vm943, %v887
        %953 = vst.msk [vmem:[%s218 + $0x24] sm:$0xf] %vm943, %v888
        %954 = vst.msk [vmem:[%s218 + $0x28] sm:$0xf] %vm943, %v889
        %955 = vst.msk [vmem:[%s218 + $0x2c] sm:$0xf] %vm943, %v890
        %956 = vst.msk [vmem:[%s218 + $0x30] sm:$0xf] %vm943, %v891
        %957 = vst.msk [vmem:[%s218 + $0x34] sm:$0xf] %vm943, %v892
        %958 = vst.msk [vmem:[%s218 + $0x38] sm:$0xf] %vm943, %v893
        %959 = vst.msk [vmem:[%s218 + $0x3c] sm:$0xf] %vm943, %v894
        %960 = vst.msk [vmem:[%s218 + $0x40] sm:$0xf] %vm943, %v895
        %961 = vst.msk [vmem:[%s218 + $0x44] sm:$0xf] %vm943, %v896
        %962 = vst.msk [vmem:[%s218 + $0x48] sm:$0xf] %vm943, %v897
        %963 = vst.msk [vmem:[%s218 + $0x4c] sm:$0xf] %vm943, %v898
        %964 = vst.msk [vmem:[%s218 + $0x50] sm:$0xf] %vm943, %v899
        %965 = vst.msk [vmem:[%s218 + $0x54] sm:$0xf] %vm943, %v900
        %966 = vst.msk [vmem:[%s218 + $0x58] sm:$0xf] %vm943, %v901
        %967 = vst.msk [vmem:[%s218 + $0x5c] sm:$0xf] %vm943, %v902
        %968 = vst.msk [vmem:[%s218 + $0x60] sm:$0xf] %vm943, %v903
        %969 = vst.msk [vmem:[%s218 + $0x64] sm:$0xf] %vm943, %v904
        %970 = vst.msk [vmem:[%s218 + $0x68] sm:$0xf] %vm943, %v905
        %971 = vst.msk [vmem:[%s218 + $0x6c] sm:$0xf] %vm943, %v906
        %972 = vst.msk [vmem:[%s218 + $0x70] sm:$0xf] %vm943, %v907
        %973 = vst.msk [vmem:[%s218 + $0x74] sm:$0xf] %vm943, %v908
        %974 = vst.msk [vmem:[%s218 + $0x78] sm:$0xf] %vm943, %v909
        %975 = vst.msk [vmem:[%s218 + $0x7c] sm:$0xf] %vm943, %v910
      $region40: #{fcn_generator_forward.10} parent=31 // pred_fallthru
        _
      %s976 = smul.u32 32, %s18
      %p977 = scmp.lt.s32.totalorder %s976, 63
      %s978 = scalar_select %p977, %s976, 63
      %s979 = smul.addr %s978, 4
      %s980 = scalar_lea.vmem %s3, %s979
      // Predicated region
      $region41: #{fcn_generator_forward.10} parent=31 // pred_check
        %p981 = pneg %p119
      $region42: #{fcn_generator_forward.10} parent=31 // pred_check_branch
        %983 = sbr.rel (%p981) target = $region44
      $region43: #{fcn_generator_forward.10} parent=31 // pred_region
        %s984 = smul.u32 32, %s18
      $region44: #{fcn_generator_forward.10} parent=31 // pred_fallthru
        _
    $region32: #{fcn_generator_forward.10} parent=5 // pred_fallthru
      _
    %p985 = scmp.le.s32.totalorder 2, %s9
    // Predicated region
    $region45: #{fcn_generator_forward.10} parent=5 // pred_check
      %p986 = pneg %p985
    $region46: #{fcn_generator_forward.10} parent=5 // pred_check_branch
      %988 = sbr.rel (%p986) target = $region48
    $region47: #{fcn_generator_forward.10} parent=5 // pred_region
      %s989 = ssub.s32 %s9, 2
      // Predicated region
      $region49: #{fcn_generator_forward.10} parent=47 // pred_check
        %p990 = pneg %p125
      $region50: #{fcn_generator_forward.10} parent=47 // pred_check_branch
        %992 = sbr.rel (%p990) target = $region52
      $region51: #{fcn_generator_forward.10} parent=47 // pred_region
        %s993 = smul.u32 32, %s20
        %p994 = scmp.lt.s32.totalorder %s993, 63
        %s995 = scalar_select %p994, %s993, 63
        %s996 = smul.addr %s995, 4
        %s997 = scalar_lea.vmem %s3, %s996
      $region52: #{fcn_generator_forward.10} parent=47 // pred_fallthru
        _
    $region48: #{fcn_generator_forward.10} parent=5 // pred_fallthru
      _
  $region6: #{fcn_generator_forward.10} parent=0 // loop_footer
    %s13 = sadd.s32 1, %s9
  $region7: #{fcn_generator_forward.10} parent=0 // loop_footer_branch
    %8 = sbr.rel target = $region3
  $region8: #{fcn_generator_forward.10} parent=0 // loop_exit
    _

// kernel: fcn_generator_forward.11
$region0: #{fcn_generator_forward.11}
  #allocation0 [shape = 'u32[]', space=smem, size = 0x4, offset = 0x4, fixed_abs, tag = 'smem constant byte address 0x4 - core index']
  #allocation1 [shape = 'u32[144,128]{1,0:T(1,128)}', space=vmem, size = 0x12000, scoped, tag = 'internal scratch']
  #allocation2 [shape = 'f32[256,3]{1,0:T(8,128)}', space=vmem, size = 0x20000, scoped, tag = 'scratch operand']
  %s0 = inlined_call_operand.vmem [shape: bf16[9,512,64], index: 0, kind: input, shape index: {}]
  %s1 = inlined_call_operand.vmem [shape: bf16[9,64,3], index: 1, kind: input, shape index: {}]
  %s2 = inlined_call_operand.vmem [shape: f32[1,3], index: 2, kind: input, shape index: {}]
  %s3 = inlined_call_operand.vmem [shape: f32[512,3], index: 3, kind: output, shape index: {}]
  %s4 = sld [smem:[#allocation0]]
  $region53: #{fcn_generator_forward.11} parent=0
    _
  %s6 = ssub.s32 1, %s4
  %s7 = scalar_select 0, %s6, %s4
  loop: start=0, step=1, limit=20
  $region2: #{fcn_generator_forward.11} parent=0 // loop_pre_header
    _
  $region3: #{fcn_generator_forward.11} parent=0 // loop_header
    %s9 = sphi 0, %s13
    %p10 = scmp.ge.s32.totalorder %s9, 20
    %s16 = sphi 0, %s28
    %s17 = sphi 0, %s24
    %s18 = sphi 0, %s16
    %s19 = sphi 0, %s17
    %s20 = sphi 0, %s18
    %s21 = sphi 0, %s19
    %s33 = sphi 0, %s35
    %s36 = sphi 0, %s33
    %s37 = sphi 0, %s36
    %s53 = sphi 0, %s37
    %s59 = sphi 0, %s61
    %s62 = sphi 0, %s59
    %s63 = sphi 0, %s62
    %s79 = sphi 0, %s63
    %s83 = sphi 0, %s83
    %s85 = sphi 0, %s83
    %s86 = sphi 0, %s85
    %s100 = sphi 0, %s86
    %s106 = sphi 0, %s108
    %s109 = sphi 0, %s106
    %s110 = sphi 0, %s109
    %s126 = sphi 0, %s110
  $region4: #{fcn_generator_forward.11} parent=0 // loop_header_branch
    %12 = sbr.rel (%p10) target = $region8
  $region5: #{fcn_generator_forward.11} parent=0 // loop_body
    %s14 = ssub.s32 %s9, 1
    %s15 = ssub.s32 %s9, 2
    %s22 = sadd.s32 1, %s17
    %p23 = scmp.ge.s32.totalorder %s22, 9
    %s24 = scalar_select %p23, 0, %s22
    %s25 = sadd.s32 1, %s16
    %s26 = scalar_select %p23, %s25, %s16
    %p27 = scmp.ge.s32.totalorder %s26, 2
    %s28 = scalar_select %p27, 0, %s26
    %s29 = ssub.s32 %s17, %s24
    %s30 = ssub.s32 %s16, %s28
    %s31 = sor.u32 %s29, %s30
    %p32 = scmp.eq.s32.totalorder %s31, 0
    %s34 = sadd.s32 %s33, 1
    %s35 = scalar_select %p32, %s33, %s34
    %p38 = pneg %p32
    %p39 = scmp.eq.s32.totalorder %s9, 17
    %p40 = por %p38, %p39
    %p41 = scmp.ne.s32.totalorder %s33, %s36
    %p42 = scmp.eq.s32.totalorder %s9, 0
    %p43 = por %p41, %p42
    %p44 = scmp.ne.s32.totalorder %s33, %s36
    %p45 = scmp.eq.s32.totalorder %s14, 17
    %p46 = por %p44, %p45
    %p47 = scmp.ne.s32.totalorder %s36, %s37
    %p48 = scmp.eq.s32.totalorder %s14, 0
    %p49 = por %p47, %p48
    %p50 = scmp.ne.s32.totalorder %s36, %s37
    %p51 = scmp.eq.s32.totalorder %s15, 17
    %p52 = por %p50, %p51
    %p54 = scmp.ne.s32.totalorder %s37, %s53
    %p55 = scmp.eq.s32.totalorder %s15, 0
    %p56 = por %p54, %p55
    %s57 = ssub.s32 %s17, %s24
    %p58 = scmp.eq.s32.totalorder %s57, 0
    %s60 = sadd.s32 %s59, 1
    %s61 = scalar_select %p58, %s59, %s60
    %p64 = pneg %p58
    %p65 = scmp.eq.s32.totalorder %s9, 17
    %p66 = por %p64, %p65
    %p67 = scmp.ne.s32.totalorder %s59, %s62
    %p68 = scmp.eq.s32.totalorder %s9, 0
    %p69 = por %p67, %p68
    %p70 = scmp.ne.s32.totalorder %s59, %s62
    %p71 = scmp.eq.s32.totalorder %s14, 17
    %p72 = por %p70, %p71
    %p73 = scmp.ne.s32.totalorder %s62, %s63
    %p74 = scmp.eq.s32.totalorder %s14, 0
    %p75 = por %p73, %p74
    %p76 = scmp.ne.s32.totalorder %s62, %s63
    %p77 = scmp.eq.s32.totalorder %s15, 17
    %p78 = por %p76, %p77
    %p80 = scmp.ne.s32.totalorder %s63, %s79
    %p81 = scmp.eq.s32.totalorder %s15, 0
    %p82 = por %p80, %p81
    %s84 = sadd.s32 %s83, 1
    %p87 = scmp.eq.s32.totalorder %s9, 17
    %p88 = scmp.ne.s32.totalorder %s83, %s85
    %p89 = scmp.eq.s32.totalorder %s9, 0
    %p90 = por %p88, %p89
    %p91 = scmp.ne.s32.totalorder %s83, %s85
    %p92 = scmp.eq.s32.totalorder %s14, 17
    %p93 = por %p91, %p92
    %p94 = scmp.ne.s32.totalorder %s85, %s86
    %p95 = scmp.eq.s32.totalorder %s14, 0
    %p96 = por %p94, %p95
    %p97 = scmp.ne.s32.totalorder %s85, %s86
    %p98 = scmp.eq.s32.totalorder %s15, 17
    %p99 = por %p97, %p98
    %p101 = scmp.ne.s32.totalorder %s86, %s100
    %p102 = scmp.eq.s32.totalorder %s15, 0
    %p103 = por %p101, %p102
    %s104 = ssub.s32 %s16, %s28
    %p105 = scmp.eq.s32.totalorder %s104, 0
    %s107 = sadd.s32 %s106, 1
    %s108 = scalar_select %p105, %s106, %s107
    %p111 = pneg %p105
    %p112 = scmp.eq.s32.totalorder %s9, 17
    %p113 = por %p111, %p112
    %p114 = scmp.ne.s32.totalorder %s106, %s109
    %p115 = scmp.eq.s32.totalorder %s9, 0
    %p116 = por %p114, %p115
    %p117 = scmp.ne.s32.totalorder %s106, %s109
    %p118 = scmp.eq.s32.totalorder %s14, 17
    %p119 = por %p117, %p118
    %p120 = scmp.ne.s32.totalorder %s109, %s110
    %p121 = scmp.eq.s32.totalorder %s14, 0
    %p122 = por %p120, %p121
    %p123 = scmp.ne.s32.totalorder %s109, %s110
    %p124 = scmp.eq.s32.totalorder %s15, 17
    %p125 = por %p123, %p124
    %p127 = scmp.ne.s32.totalorder %s110, %s126
    %p128 = scmp.eq.s32.totalorder %s15, 0
    %p129 = por %p127, %p128
    %p130 = scmp.le.s32.totalorder 1, %s9
    %p131 = scmp.lt.s32.totalorder %s9, 19
    %p132 = pnand %p130, %p131
    %p133 = pneg %p132
    // Predicated region
    $region9: #{fcn_generator_forward.11} parent=5 // pred_check
      _
    $region10: #{fcn_generator_forward.11} parent=5 // pred_check_branch
      %135 = sbr.rel (%p132) target = $region12
    $region11: #{fcn_generator_forward.11} parent=5 // pred_region
      %s136 = ssub.s32 %s9, 1
      // Predicated region
      $region13: #{fcn_generator_forward.11} parent=11 // pred_check
        %p137 = pneg %p96
      $region14: #{fcn_generator_forward.11} parent=11 // pred_check_branch
        %139 = sbr.rel (%p137) target = $region16
      $region15: #{fcn_generator_forward.11} parent=11 // pred_region
        _
      $region16: #{fcn_generator_forward.11} parent=11 // pred_fallthru
        _
    $region12: #{fcn_generator_forward.11} parent=5 // pred_fallthru
      _
    %p140 = scmp.lt.s32.totalorder %s9, 18
    // Predicated region
    $region17: #{fcn_generator_forward.11} parent=5 // pred_check
      %p141 = pneg %p140
    $region18: #{fcn_generator_forward.11} parent=5 // pred_check_branch
      %143 = sbr.rel (%p141) target = $region20
    $region19: #{fcn_generator_forward.11} parent=5 // pred_region
      // Predicated region
      $region21: #{fcn_generator_forward.11} parent=19 // pred_check
        %p144 = pneg %p43
      $region22: #{fcn_generator_forward.11} parent=19 // pred_check_branch
        %146 = sbr.rel (%p144) target = $region24
      $region23: #{fcn_generator_forward.11} parent=19 // pred_region
        %s147 = smul.u32 32, %s16
        %p148 = scmp.lt.s32.totalorder %s17, 8
        %s149 = scalar_select %p148, %s17, 8
        %p150 = scmp.lt.s32.totalorder %s147, 63
        %s151 = scalar_select %p150, %s147, 63
        %s152 = smul.addr %s149, 64
        %s153 = sadd.s32 %s151, %s152
        %s154 = smul.addr %s153, 4
        %s155 = scalar_lea.vmem %s0, %s154
        %s156 = smul.u32 32, %s16
      $region24: #{fcn_generator_forward.11} parent=19 // pred_fallthru
        _
      // Predicated region
      $region25: #{fcn_generator_forward.11} parent=19 // pred_check
        %p157 = pneg %p69
      $region26: #{fcn_generator_forward.11} parent=19 // pred_check_branch
        %159 = sbr.rel (%p157) target = $region28
      $region27: #{fcn_generator_forward.11} parent=19 // pred_region
        %p160 = scmp.lt.s32.totalorder %s17, 8
        %s161 = scalar_select %p160, %s17, 8
        %s162 = smul.addr %s161, 8
        %s163 = smul.addr %s162, 4
        %s164 = scalar_lea.vmem %s1, %s163
      $region28: #{fcn_generator_forward.11} parent=19 // pred_fallthru
        _
    $region20: #{fcn_generator_forward.11} parent=5 // pred_fallthru
      _
    %p165 = scmp.le.s32.totalorder 1, %s9
    %p166 = scmp.lt.s32.totalorder %s9, 19
    %p167 = pnand %p165, %p166
    %p168 = pneg %p167
    // Predicated region
    $region29: #{fcn_generator_forward.11} parent=5 // pred_check
      _
    $region30: #{fcn_generator_forward.11} parent=5 // pred_check_branch
      %170 = sbr.rel (%p167) target = $region32
    $region31: #{fcn_generator_forward.11} parent=5 // pred_region
      %s171 = ssub.s32 %s9, 1
      %s172 = smul.u32 32, %s18
      %p173 = scmp.lt.s32.totalorder %s19, 8
      %s174 = scalar_select %p173, %s19, 8
      %p175 = scmp.lt.s32.totalorder %s172, 63
      %s176 = scalar_select %p175, %s172, 63
      %s177 = smul.addr %s174, 64
      %s178 = sadd.s32 %s176, %s177
      %s179 = smul.addr %s178, 4
      %s180 = scalar_lea.vmem %s0, %s179
      %p181 = pneg %p49
      %p182 = pneg %p46
      %p183 = scmp.lt.s32.totalorder %s19, 8
      %s184 = scalar_select %p183, %s19, 8
      %s185 = smul.addr %s184, 8
      %s186 = smul.addr %s185, 4
      %s187 = scalar_lea.vmem %s1, %s186
      %p188 = pneg %p75
      %p189 = pneg %p72
      %p190 = pneg %p96
      %p191 = pneg %p93
      %p192 = pneg %p122
      %p193 = pneg %p119
      %s194 = smul.u32 32, %s18
      %p195 = scmp.lt.s32.totalorder %s194, 63
      %s196 = scalar_select %p195, %s194, 63
      %s197 = smul.addr %s196, 8
      %s198 = scalar_lea.vmem %s3, %s197
      %s199 = smul.u32 32, %s18
      %p200 = scmp.lt.s32.totalorder %s19, 8
      %s201 = scalar_select %p200, %s19, 8
      %p202 = scmp.lt.s32.totalorder %s199, 63
      %s203 = scalar_select %p202, %s199, 63
      %s204 = smul.addr %s201, 64
      %s205 = sadd.s32 %s203, %s204
      %s206 = smul.addr %s205, 4
      %s207 = scalar_lea.vmem %s0, %s206
      %s208 = smul.u32 32, %s18
      %p209 = scmp.lt.s32.totalorder %s19, 8
      %s210 = scalar_select %p209, %s19, 8
      %s211 = smul.addr %s210, 8
      %s212 = smul.addr %s211, 4
      %s213 = scalar_lea.vmem %s1, %s212
      %s214 = smul.u32 32, %s18
      %p215 = scmp.lt.s32.totalorder %s214, 63
      %s216 = scalar_select %p215, %s214, 63
      %s217 = smul.addr %s216, 8
      %s218 = scalar_lea.vmem %s3, %s217
      %s219 = smul.u32 32, %s18
      %p221 = scmp.eq.s32.totalorder %s19, 0
      // Predicated region
      $region33: #{fcn_generator_forward.11} parent=31 // pred_check
        %p222 = pneg %p221
      $region34: #{fcn_generator_forward.11} parent=31 // pred_check_branch
        %224 = sbr.rel (%p222) target = $region36
      $region35: #{fcn_generator_forward.11} parent=31 // pred_region
        %vm225 = vcmask 23552
        %226 = vst.msk [vmem:[#allocation2] sm:$0xff] %vm225, 0.0
        %227 = vst.msk [vmem:[#allocation2 + $0x8] sm:$0xff] %vm225, 0.0
        %228 = vst.msk [vmem:[#allocation2 + $0x10] sm:$0xff] %vm225, 0.0
        %229 = vst.msk [vmem:[#allocation2 + $0x18] sm:$0xff] %vm225, 0.0
        %230 = vst.msk [vmem:[#allocation2 + $0x20] sm:$0xff] %vm225, 0.0
        %231 = vst.msk [vmem:[#allocation2 + $0x28] sm:$0xff] %vm225, 0.0
        %232 = vst.msk [vmem:[#allocation2 + $0x30] sm:$0xff] %vm225, 0.0
        %233 = vst.msk [vmem:[#allocation2 + $0x38] sm:$0xff] %vm225, 0.0
        %234 = vst.msk [vmem:[#allocation2 + $0x40] sm:$0xff] %vm225, 0.0
        %235 = vst.msk [vmem:[#allocation2 + $0x48] sm:$0xff] %vm225, 0.0
        %236 = vst.msk [vmem:[#allocation2 + $0x50] sm:$0xff] %vm225, 0.0
        %237 = vst.msk [vmem:[#allocation2 + $0x58] sm:$0xff] %vm225, 0.0
        %238 = vst.msk [vmem:[#allocation2 + $0x60] sm:$0xff] %vm225, 0.0
        %239 = vst.msk [vmem:[#allocation2 + $0x68] sm:$0xff] %vm225, 0.0
        %240 = vst.msk [vmem:[#allocation2 + $0x70] sm:$0xff] %vm225, 0.0
        %241 = vst.msk [vmem:[#allocation2 + $0x78] sm:$0xff] %vm225, 0.0
        %242 = vst.msk [vmem:[#allocation2 + $0x80] sm:$0xff] %vm225, 0.0
        %243 = vst.msk [vmem:[#allocation2 + $0x88] sm:$0xff] %vm225, 0.0
        %244 = vst.msk [vmem:[#allocation2 + $0x90] sm:$0xff] %vm225, 0.0
        %245 = vst.msk [vmem:[#allocation2 + $0x98] sm:$0xff] %vm225, 0.0
        %246 = vst.msk [vmem:[#allocation2 + $0xa0] sm:$0xff] %vm225, 0.0
        %247 = vst.msk [vmem:[#allocation2 + $0xa8] sm:$0xff] %vm225, 0.0
        %248 = vst.msk [vmem:[#allocation2 + $0xb0] sm:$0xff] %vm225, 0.0
        %249 = vst.msk [vmem:[#allocation2 + $0xb8] sm:$0xff] %vm225, 0.0
        %250 = vst.msk [vmem:[#allocation2 + $0xc0] sm:$0xff] %vm225, 0.0
        %251 = vst.msk [vmem:[#allocation2 + $0xc8] sm:$0xff] %vm225, 0.0
        %252 = vst.msk [vmem:[#allocation2 + $0xd0] sm:$0xff] %vm225, 0.0
        %253 = vst.msk [vmem:[#allocation2 + $0xd8] sm:$0xff] %vm225, 0.0
        %254 = vst.msk [vmem:[#allocation2 + $0xe0] sm:$0xff] %vm225, 0.0
        %255 = vst.msk [vmem:[#allocation2 + $0xe8] sm:$0xff] %vm225, 0.0
        %256 = vst.msk [vmem:[#allocation2 + $0xf0] sm:$0xff] %vm225, 0.0
        %257 = vst.msk [vmem:[#allocation2 + $0xf8] sm:$0xff] %vm225, 0.0
      $region36: #{fcn_generator_forward.11} parent=31 // pred_fallthru
        _
      %v258 = vld [vmem:[#allocation2] sm:$0xff]
      %v259 = vld [vmem:[#allocation2 + $0x8] sm:$0xff]
      %v260 = vld [vmem:[#allocation2 + $0x10] sm:$0xff]
      %v261 = vld [vmem:[#allocation2 + $0x18] sm:$0xff]
      %v262 = vld [vmem:[#allocation2 + $0x20] sm:$0xff]
      %v263 = vld [vmem:[#allocation2 + $0x28] sm:$0xff]
      %v264 = vld [vmem:[#allocation2 + $0x30] sm:$0xff]
      %v265 = vld [vmem:[#allocation2 + $0x38] sm:$0xff]
      %v266 = vld [vmem:[#allocation2 + $0x40] sm:$0xff]
      %v267 = vld [vmem:[#allocation2 + $0x48] sm:$0xff]
      %v268 = vld [vmem:[#allocation2 + $0x50] sm:$0xff]
      %v269 = vld [vmem:[#allocation2 + $0x58] sm:$0xff]
      %v270 = vld [vmem:[#allocation2 + $0x60] sm:$0xff]
      %v271 = vld [vmem:[#allocation2 + $0x68] sm:$0xff]
      %v272 = vld [vmem:[#allocation2 + $0x70] sm:$0xff]
      %v273 = vld [vmem:[#allocation2 + $0x78] sm:$0xff]
      %v274 = vld [vmem:[#allocation2 + $0x80] sm:$0xff]
      %v275 = vld [vmem:[#allocation2 + $0x88] sm:$0xff]
      %v276 = vld [vmem:[#allocation2 + $0x90] sm:$0xff]
      %v277 = vld [vmem:[#allocation2 + $0x98] sm:$0xff]
      %v278 = vld [vmem:[#allocation2 + $0xa0] sm:$0xff]
      %v279 = vld [vmem:[#allocation2 + $0xa8] sm:$0xff]
      %v280 = vld [vmem:[#allocation2 + $0xb0] sm:$0xff]
      %v281 = vld [vmem:[#allocation2 + $0xb8] sm:$0xff]
      %v282 = vld [vmem:[#allocation2 + $0xc0] sm:$0xff]
      %v283 = vld [vmem:[#allocation2 + $0xc8] sm:$0xff]
      %v284 = vld [vmem:[#allocation2 + $0xd0] sm:$0xff]
      %v285 = vld [vmem:[#allocation2 + $0xd8] sm:$0xff]
      %v286 = vld [vmem:[#allocation2 + $0xe0] sm:$0xff]
      %v287 = vld [vmem:[#allocation2 + $0xe8] sm:$0xff]
      %v288 = vld [vmem:[#allocation2 + $0xf0] sm:$0xff]
      %v289 = vld [vmem:[#allocation2 + $0xf8] sm:$0xff]
      %v290 = vld [vmem:[%s207] sm:$0xf]
      %v291 = vld [vmem:[%s207 + $0x4] sm:$0xf]
      %v292 = vld [vmem:[%s207 + $0x8] sm:$0xf]
      %v293 = vld [vmem:[%s207 + $0xc] sm:$0xf]
      %v294 = vld [vmem:[%s207 + $0x10] sm:$0xf]
      %v295 = vld [vmem:[%s207 + $0x14] sm:$0xf]
      %v296 = vld [vmem:[%s207 + $0x18] sm:$0xf]
      %v297 = vld [vmem:[%s207 + $0x1c] sm:$0xf]
      %v298 = vld [vmem:[%s207 + $0x20] sm:$0xf]
      %v299 = vld [vmem:[%s207 + $0x24] sm:$0xf]
      %v300 = vld [vmem:[%s207 + $0x28] sm:$0xf]
      %v301 = vld [vmem:[%s207 + $0x2c] sm:$0xf]
      %v302 = vld [vmem:[%s207 + $0x30] sm:$0xf]
      %v303 = vld [vmem:[%s207 + $0x34] sm:$0xf]
      %v304 = vld [vmem:[%s207 + $0x38] sm:$0xf]
      %v305 = vld [vmem:[%s207 + $0x3c] sm:$0xf]
      %v306 = vld [vmem:[%s207 + $0x40] sm:$0xf]
      %v307 = vld [vmem:[%s207 + $0x44] sm:$0xf]
      %v308 = vld [vmem:[%s207 + $0x48] sm:$0xf]
      %v309 = vld [vmem:[%s207 + $0x4c] sm:$0xf]
      %v310 = vld [vmem:[%s207 + $0x50] sm:$0xf]
      %v311 = vld [vmem:[%s207 + $0x54] sm:$0xf]
      %v312 = vld [vmem:[%s207 + $0x58] sm:$0xf]
      %v313 = vld [vmem:[%s207 + $0x5c] sm:$0xf]
      %v314 = vld [vmem:[%s207 + $0x60] sm:$0xf]
      %v315 = vld [vmem:[%s207 + $0x64] sm:$0xf]
      %v316 = vld [vmem:[%s207 + $0x68] sm:$0xf]
      %v317 = vld [vmem:[%s207 + $0x6c] sm:$0xf]
      %v318 = vld [vmem:[%s207 + $0x70] sm:$0xf]
      %v319 = vld [vmem:[%s207 + $0x74] sm:$0xf]
      %v320 = vld [vmem:[%s207 + $0x78] sm:$0xf]
      %v321 = vld [vmem:[%s207 + $0x7c] sm:$0xf]
      %v322 = vld [vmem:[%s213] sm:$0xf]
      %v323 = vld [vmem:[%s213 + $0x4] sm:$0xf]
      %v324 = vld [vmem:[%s213 + $0x8] sm:$0xf]
      %v325 = vld [vmem:[%s213 + $0xc] sm:$0xf]
      %v326 = vld [vmem:[%s213 + $0x10] sm:$0xf]
      %v327 = vld [vmem:[%s213 + $0x14] sm:$0xf]
      %v328 = vld [vmem:[%s213 + $0x18] sm:$0xf]
      %v329 = vld [vmem:[%s213 + $0x1c] sm:$0xf]
      %v362 = vunpack.c.l.b16 %v290
      %v363 = vunpack.c.l.b16 %v291
      %v364 = vunpack.c.l.b16 %v292
      %v365 = vunpack.c.l.b16 %v293
      %v366 = vunpack.c.l.b16 %v294
      %v367 = vunpack.c.l.b16 %v295
      %v368 = vunpack.c.l.b16 %v296
      %v369 = vunpack.c.l.b16 %v297
      %v370 = vunpack.c.l.b16 %v298
      %v371 = vunpack.c.l.b16 %v299
      %v372 = vunpack.c.l.b16 %v300
      %v373 = vunpack.c.l.b16 %v301
      %v374 = vunpack.c.l.b16 %v302
      %v375 = vunpack.c.l.b16 %v303
      %v376 = vunpack.c.l.b16 %v304
      %v377 = vunpack.c.l.b16 %v305
      %v378 = vunpack.c.l.b16 %v306
      %v379 = vunpack.c.l.b16 %v307
      %v380 = vunpack.c.l.b16 %v308
      %v381 = vunpack.c.l.b16 %v309
      %v382 = vunpack.c.l.b16 %v310
      %v383 = vunpack.c.l.b16 %v311
      %v384 = vunpack.c.l.b16 %v312
      %v385 = vunpack.c.l.b16 %v313
      %v386 = vunpack.c.l.b16 %v314
      %v387 = vunpack.c.l.b16 %v315
      %v388 = vunpack.c.l.b16 %v316
      %v389 = vunpack.c.l.b16 %v317
      %v390 = vunpack.c.l.b16 %v318
      %v391 = vunpack.c.l.b16 %v319
      %v392 = vunpack.c.l.b16 %v320
      %v393 = vunpack.c.l.b16 %v321
      %v394 = vpack.c.b16 %v363, %v362
      %v395 = vpack.c.b16 %v365, %v364
      %v396 = vpack.c.b16 %v367, %v366
      %v397 = vpack.c.b16 %v369, %v368
      %v398 = vpack.c.b16 %v371, %v370
      %v399 = vpack.c.b16 %v373, %v372
      %v400 = vpack.c.b16 %v375, %v374
      %v401 = vpack.c.b16 %v377, %v376
      %v402 = vpack.c.b16 %v379, %v378
      %v403 = vpack.c.b16 %v381, %v380
      %v404 = vpack.c.b16 %v383, %v382
      %v405 = vpack.c.b16 %v385, %v384
      %v406 = vpack.c.b16 %v387, %v386
      %v407 = vpack.c.b16 %v389, %v388
      %v408 = vpack.c.b16 %v391, %v390
      %v409 = vpack.c.b16 %v393, %v392
      %v418 = vunpack.c.l.b16 %v322
      %v419 = vunpack.c.l.b16 %v323
      %v420 = vunpack.c.l.b16 %v324
      %v421 = vunpack.c.l.b16 %v325
      %v422 = vunpack.c.l.b16 %v326
      %v423 = vunpack.c.l.b16 %v327
      %v424 = vunpack.c.l.b16 %v328
      %v425 = vunpack.c.l.b16 %v329
      %v426 = vpack.c.b16 %v419, %v418
      %v427 = vpack.c.b16 %v421, %v420
      %v428 = vpack.c.b16 %v423, %v422
      %v429 = vpack.c.b16 %v425, %v424
      %vm434 = vcmask 523264
      %v436 = vsel %vm434, %v394, 0
      %v439 = vsel %vm434, %v395, 0
      %v442 = vsel %vm434, %v396, 0
      %v445 = vsel %vm434, %v397, 0
      %v448 = vsel %vm434, %v398, 0
      %v451 = vsel %vm434, %v399, 0
      %v454 = vsel %vm434, %v400, 0
      %v457 = vsel %vm434, %v401, 0
      %v460 = vsel %vm434, %v402, 0
      %v463 = vsel %vm434, %v403, 0
      %v466 = vsel %vm434, %v404, 0
      %v469 = vsel %vm434, %v405, 0
      %v472 = vsel %vm434, %v406, 0
      %v475 = vsel %vm434, %v407, 0
      %v478 = vsel %vm434, %v408, 0
      %v481 = vsel %vm434, %v409, 0
      %483 = vmatprep.subr.bf16.mxu0 0
      %484 = vmatpush1.bf16.msra.mxu0 %v426
      %485 = vmatprep.subr.bf16.mxu0 0
      %486 = vmatpush1.bf16.msra.mxu0 %v427
      %487 = vmatprep.subr.bf16.mxu0 0
      %488 = vmatpush1.bf16.msra.mxu0 %v428
      %489 = vmatprep.subr.bf16.mxu0 0
      %490 = vmatpush1.bf16.msra.mxu0 %v429
      %491 = vmatprep.subr.bf16.mxu0 0
      %492 = vmatpush1.bf16.msra.mxu0 0
      %493 = vmatprep.subr.bf16.mxu0 0
      %494 = vmatpush1.bf16.msra.mxu0 0
      %495 = vmatprep.subr.bf16.mxu0 0
      %496 = vmatpush1.bf16.msra.mxu0 0
      %497 = vmatprep.subr.bf16.mxu0 0
      %498 = vmatpush1.bf16.msra.mxu0 0
      %499 = vmatprep.subr.bf16.mxu0 0
      %500 = vmatpush1.bf16.msra.mxu0 0
      %501 = vmatprep.subr.bf16.mxu0 0
      %502 = vmatpush1.bf16.msra.mxu0 0
      %503 = vmatprep.subr.bf16.mxu0 0
      %504 = vmatpush1.bf16.msra.mxu0 0
      %505 = vmatprep.subr.bf16.mxu0 0
      %506 = vmatpush1.bf16.msra.mxu0 0
      %507 = vmatprep.subr.bf16.mxu0 0
      %508 = vmatpush1.bf16.msra.mxu0 0
      %509 = vmatprep.subr.bf16.mxu0 0
      %510 = vmatpush1.bf16.msra.mxu0 0
      %511 = vmatprep.subr.bf16.mxu0 0
      %512 = vmatpush1.bf16.msra.mxu0 0
      %513 = vmatprep.subr.bf16.mxu0 0
      %514 = vmatpush1.bf16.msra.mxu0 0
      %515 = vmatprep.mubr.bf16.mxu0 0
      %516 = vmatmul.mubr.bf16.gmra.mrb[0].mxu0 %v436
      %v517 = vpop.f32.mrb[0].mxu0
      %v518 = vadd.f32 0.0, %v517
      %v519 = vpop.f32.mrb[0].mxu0
      %v520 = vpop.f32.mrb[0].mxu0
      %v521 = vadd.f32 0.0, %v520
      %v522 = vpop.f32.mrb[0].mxu0
      %523 = vmatprep.mubr.bf16.mxu0 0
      %524 = vmatmul.mubr.bf16.gmra.mrb[0].mxu0 %v439
      %v525 = vpop.f32.mrb[0].mxu0
      %v526 = vadd.f32 0.0, %v525
      %v527 = vpop.f32.mrb[0].mxu0
      %v528 = vpop.f32.mrb[0].mxu0
      %v529 = vadd.f32 0.0, %v528
      %v530 = vpop.f32.mrb[0].mxu0
      %531 = vmatprep.mubr.bf16.mxu0 0
      %532 = vmatmul.mubr.bf16.gmra.mrb[0].mxu0 %v442
      %v533 = vpop.f32.mrb[0].mxu0
      %v534 = vadd.f32 0.0, %v533
      %v535 = vpop.f32.mrb[0].mxu0
      %v536 = vpop.f32.mrb[0].mxu0
      %v537 = vadd.f32 0.0, %v536
      %v538 = vpop.f32.mrb[0].mxu0
      %539 = vmatprep.mubr.bf16.mxu0 0
      %540 = vmatmul.mubr.bf16.gmra.mrb[0].mxu0 %v445
      %v541 = vpop.f32.mrb[0].mxu0
      %v542 = vadd.f32 0.0, %v541
      %v543 = vpop.f32.mrb[0].mxu0
      %v544 = vpop.f32.mrb[0].mxu0
      %v545 = vadd.f32 0.0, %v544
      %v546 = vpop.f32.mrb[0].mxu0
      %547 = vmatprep.mubr.bf16.mxu0 0
      %548 = vmatmul.mubr.bf16.gmra.mrb[0].mxu0 %v448
      %v549 = vpop.f32.mrb[0].mxu0
      %v550 = vadd.f32 0.0, %v549
      %v551 = vpop.f32.mrb[0].mxu0
      %v552 = vpop.f32.mrb[0].mxu0
      %v553 = vadd.f32 0.0, %v552
      %v554 = vpop.f32.mrb[0].mxu0
      %555 = vmatprep.mubr.bf16.mxu0 0
      %556 = vmatmul.mubr.bf16.gmra.mrb[0].mxu0 %v451
      %v557 = vpop.f32.mrb[0].mxu0
      %v558 = vadd.f32 0.0, %v557
      %v559 = vpop.f32.mrb[0].mxu0
      %v560 = vpop.f32.mrb[0].mxu0
      %v561 = vadd.f32 0.0, %v560
      %v562 = vpop.f32.mrb[0].mxu0
      %563 = vmatprep.mubr.bf16.mxu0 0
      %564 = vmatmul.mubr.bf16.gmra.mrb[0].mxu0 %v454
      %v565 = vpop.f32.mrb[0].mxu0
      %v566 = vadd.f32 0.0, %v565
      %v567 = vpop.f32.mrb[0].mxu0
      %v568 = vpop.f32.mrb[0].mxu0
      %v569 = vadd.f32 0.0, %v568
      %v570 = vpop.f32.mrb[0].mxu0
      %571 = vmatprep.mubr.bf16.mxu0 0
      %572 = vmatmul.mubr.bf16.gmra.mrb[0].mxu0 %v457
      %v573 = vpop.f32.mrb[0].mxu0
      %v574 = vadd.f32 0.0, %v573
      %v575 = vpop.f32.mrb[0].mxu0
      %v576 = vpop.f32.mrb[0].mxu0
      %v577 = vadd.f32 0.0, %v576
      %v578 = vpop.f32.mrb[0].mxu0
      %579 = vmatprep.mubr.bf16.mxu0 0
      %580 = vmatmul.mubr.bf16.gmra.mrb[0].mxu0 %v460
      %v581 = vpop.f32.mrb[0].mxu0
      %v582 = vadd.f32 0.0, %v581
      %v583 = vpop.f32.mrb[0].mxu0
      %v584 = vpop.f32.mrb[0].mxu0
      %v585 = vadd.f32 0.0, %v584
      %v586 = vpop.f32.mrb[0].mxu0
      %587 = vmatprep.mubr.bf16.mxu0 0
      %588 = vmatmul.mubr.bf16.gmra.mrb[0].mxu0 %v463
      %v589 = vpop.f32.mrb[0].mxu0
      %v590 = vadd.f32 0.0, %v589
      %v591 = vpop.f32.mrb[0].mxu0
      %v592 = vpop.f32.mrb[0].mxu0
      %v593 = vadd.f32 0.0, %v592
      %v594 = vpop.f32.mrb[0].mxu0
      %595 = vmatprep.mubr.bf16.mxu0 0
      %596 = vmatmul.mubr.bf16.gmra.mrb[0].mxu0 %v466
      %v597 = vpop.f32.mrb[0].mxu0
      %v598 = vadd.f32 0.0, %v597
      %v599 = vpop.f32.mrb[0].mxu0
      %v600 = vpop.f32.mrb[0].mxu0
      %v601 = vadd.f32 0.0, %v600
      %v602 = vpop.f32.mrb[0].mxu0
      %603 = vmatprep.mubr.bf16.mxu0 0
      %604 = vmatmul.mubr.bf16.gmra.mrb[0].mxu0 %v469
      %v605 = vpop.f32.mrb[0].mxu0
      %v606 = vadd.f32 0.0, %v605
      %v607 = vpop.f32.mrb[0].mxu0
      %v608 = vpop.f32.mrb[0].mxu0
      %v609 = vadd.f32 0.0, %v608
      %v610 = vpop.f32.mrb[0].mxu0
      %611 = vmatprep.mubr.bf16.mxu0 0
      %612 = vmatmul.mubr.bf16.gmra.mrb[0].mxu0 %v472
      %v613 = vpop.f32.mrb[0].mxu0
      %v614 = vadd.f32 0.0, %v613
      %v615 = vpop.f32.mrb[0].mxu0
      %v616 = vpop.f32.mrb[0].mxu0
      %v617 = vadd.f32 0.0, %v616
      %v618 = vpop.f32.mrb[0].mxu0
      %619 = vmatprep.mubr.bf16.mxu0 0
      %620 = vmatmul.mubr.bf16.gmra.mrb[0].mxu0 %v475
      %v621 = vpop.f32.mrb[0].mxu0
      %v622 = vadd.f32 0.0, %v621
      %v623 = vpop.f32.mrb[0].mxu0
      %v624 = vpop.f32.mrb[0].mxu0
      %v625 = vadd.f32 0.0, %v624
      %v626 = vpop.f32.mrb[0].mxu0
      %627 = vmatprep.mubr.bf16.mxu0 0
      %628 = vmatmul.mubr.bf16.gmra.mrb[0].mxu0 %v478
      %v629 = vpop.f32.mrb[0].mxu0
      %v630 = vadd.f32 0.0, %v629
      %v631 = vpop.f32.mrb[0].mxu0
      %v632 = vpop.f32.mrb[0].mxu0
      %v633 = vadd.f32 0.0, %v632
      %v634 = vpop.f32.mrb[0].mxu0
      %635 = vmatprep.mubr.bf16.mxu0 0
      %636 = vmatmul.mubr.bf16.gmra.mrb[0].mxu0 %v481
      %v637 = vpop.f32.mrb[0].mxu0
      %v638 = vadd.f32 0.0, %v637
      %v639 = vpop.f32.mrb[0].mxu0
      %v640 = vpop.f32.mrb[0].mxu0
      %v641 = vadd.f32 0.0, %v640
      %v642 = vpop.f32.mrb[0].mxu0
      %643 = vdwg.mxu0
      %v644 = vadd.f32 %v258, %v518
      %v645 = vadd.f32 %v259, %v521
      %v646 = vadd.f32 %v260, %v526
      %v647 = vadd.f32 %v261, %v529
      %v648 = vadd.f32 %v262, %v534
      %v649 = vadd.f32 %v263, %v537
      %v650 = vadd.f32 %v264, %v542
      %v651 = vadd.f32 %v265, %v545
      %v652 = vadd.f32 %v266, %v550
      %v653 = vadd.f32 %v267, %v553
      %v654 = vadd.f32 %v268, %v558
      %v655 = vadd.f32 %v269, %v561
      %v656 = vadd.f32 %v270, %v566
      %v657 = vadd.f32 %v271, %v569
      %v658 = vadd.f32 %v272, %v574
      %v659 = vadd.f32 %v273, %v577
      %v660 = vadd.f32 %v274, %v582
      %v661 = vadd.f32 %v275, %v585
      %v662 = vadd.f32 %v276, %v590
      %v663 = vadd.f32 %v277, %v593
      %v664 = vadd.f32 %v278, %v598
      %v665 = vadd.f32 %v279, %v601
      %v666 = vadd.f32 %v280, %v606
      %v667 = vadd.f32 %v281, %v609
      %v668 = vadd.f32 %v282, %v614
      %v669 = vadd.f32 %v283, %v617
      %v670 = vadd.f32 %v284, %v622
      %v671 = vadd.f32 %v285, %v625
      %v672 = vadd.f32 %v286, %v630
      %v673 = vadd.f32 %v287, %v633
      %v674 = vadd.f32 %v288, %v638
      %v675 = vadd.f32 %v289, %v641
      %vm676 = vcmask 23552
      %677 = vst.msk [vmem:[#allocation2] sm:$0xff] %vm676, %v644
      %678 = vst.msk [vmem:[#allocation2 + $0x8] sm:$0xff] %vm676, %v645
      %679 = vst.msk [vmem:[#allocation2 + $0x10] sm:$0xff] %vm676, %v646
      %680 = vst.msk [vmem:[#allocation2 + $0x18] sm:$0xff] %vm676, %v647
      %681 = vst.msk [vmem:[#allocation2 + $0x20] sm:$0xff] %vm676, %v648
      %682 = vst.msk [vmem:[#allocation2 + $0x28] sm:$0xff] %vm676, %v649
      %683 = vst.msk [vmem:[#allocation2 + $0x30] sm:$0xff] %vm676, %v650
      %684 = vst.msk [vmem:[#allocation2 + $0x38] sm:$0xff] %vm676, %v651
      %685 = vst.msk [vmem:[#allocation2 + $0x40] sm:$0xff] %vm676, %v652
      %686 = vst.msk [vmem:[#allocation2 + $0x48] sm:$0xff] %vm676, %v653
      %687 = vst.msk [vmem:[#allocation2 + $0x50] sm:$0xff] %vm676, %v654
      %688 = vst.msk [vmem:[#allocation2 + $0x58] sm:$0xff] %vm676, %v655
      %689 = vst.msk [vmem:[#allocation2 + $0x60] sm:$0xff] %vm676, %v656
      %690 = vst.msk [vmem:[#allocation2 + $0x68] sm:$0xff] %vm676, %v657
      %691 = vst.msk [vmem:[#allocation2 + $0x70] sm:$0xff] %vm676, %v658
      %692 = vst.msk [vmem:[#allocation2 + $0x78] sm:$0xff] %vm676, %v659
      %693 = vst.msk [vmem:[#allocation2 + $0x80] sm:$0xff] %vm676, %v660
      %694 = vst.msk [vmem:[#allocation2 + $0x88] sm:$0xff] %vm676, %v661
      %695 = vst.msk [vmem:[#allocation2 + $0x90] sm:$0xff] %vm676, %v662
      %696 = vst.msk [vmem:[#allocation2 + $0x98] sm:$0xff] %vm676, %v663
      %697 = vst.msk [vmem:[#allocation2 + $0xa0] sm:$0xff] %vm676, %v664
      %698 = vst.msk [vmem:[#allocation2 + $0xa8] sm:$0xff] %vm676, %v665
      %699 = vst.msk [vmem:[#allocation2 + $0xb0] sm:$0xff] %vm676, %v666
      %700 = vst.msk [vmem:[#allocation2 + $0xb8] sm:$0xff] %vm676, %v667
      %701 = vst.msk [vmem:[#allocation2 + $0xc0] sm:$0xff] %vm676, %v668
      %702 = vst.msk [vmem:[#allocation2 + $0xc8] sm:$0xff] %vm676, %v669
      %703 = vst.msk [vmem:[#allocation2 + $0xd0] sm:$0xff] %vm676, %v670
      %704 = vst.msk [vmem:[#allocation2 + $0xd8] sm:$0xff] %vm676, %v671
      %705 = vst.msk [vmem:[#allocation2 + $0xe0] sm:$0xff] %vm676, %v672
      %706 = vst.msk [vmem:[#allocation2 + $0xe8] sm:$0xff] %vm676, %v673
      %707 = vst.msk [vmem:[#allocation2 + $0xf0] sm:$0xff] %vm676, %v674
      %708 = vst.msk [vmem:[#allocation2 + $0xf8] sm:$0xff] %vm676, %v675
      %p709 = scmp.eq.s32.totalorder %s19, 8
      // Predicated region
      $region37: #{fcn_generator_forward.11} parent=31 // pred_check
        %p710 = pneg %p709
      $region38: #{fcn_generator_forward.11} parent=31 // pred_check_branch
        %712 = sbr.rel (%p710) target = $region40
      $region39: #{fcn_generator_forward.11} parent=31 // pred_region
        %v713 = vld [vmem:[#allocation2] sm:$0xff]
        %v714 = vld [vmem:[#allocation2 + $0x8] sm:$0xff]
        %v715 = vld [vmem:[#allocation2 + $0x10] sm:$0xff]
        %v716 = vld [vmem:[#allocation2 + $0x18] sm:$0xff]
        %v717 = vld [vmem:[#allocation2 + $0x20] sm:$0xff]
        %v718 = vld [vmem:[#allocation2 + $0x28] sm:$0xff]
        %v719 = vld [vmem:[#allocation2 + $0x30] sm:$0xff]
        %v720 = vld [vmem:[#allocation2 + $0x38] sm:$0xff]
        %v721 = vld [vmem:[#allocation2 + $0x40] sm:$0xff]
        %v722 = vld [vmem:[#allocation2 + $0x48] sm:$0xff]
        %v723 = vld [vmem:[#allocation2 + $0x50] sm:$0xff]
        %v724 = vld [vmem:[#allocation2 + $0x58] sm:$0xff]
        %v725 = vld [vmem:[#allocation2 + $0x60] sm:$0xff]
        %v726 = vld [vmem:[#allocation2 + $0x68] sm:$0xff]
        %v727 = vld [vmem:[#allocation2 + $0x70] sm:$0xff]
        %v728 = vld [vmem:[#allocation2 + $0x78] sm:$0xff]
        %v729 = vld [vmem:[#allocation2 + $0x80] sm:$0xff]
        %v730 = vld [vmem:[#allocation2 + $0x88] sm:$0xff]
        %v731 = vld [vmem:[#allocation2 + $0x90] sm:$0xff]
        %v732 = vld [vmem:[#allocation2 + $0x98] sm:$0xff]
        %v733 = vld [vmem:[#allocation2 + $0xa0] sm:$0xff]
        %v734 = vld [vmem:[#allocation2 + $0xa8] sm:$0xff]
        %v735 = vld [vmem:[#allocation2 + $0xb0] sm:$0xff]
        %v736 = vld [vmem:[#allocation2 + $0xb8] sm:$0xff]
        %v737 = vld [vmem:[#allocation2 + $0xc0] sm:$0xff]
        %v738 = vld [vmem:[#allocation2 + $0xc8] sm:$0xff]
        %v739 = vld [vmem:[#allocation2 + $0xd0] sm:$0xff]
        %v740 = vld [vmem:[#allocation2 + $0xd8] sm:$0xff]
        %v741 = vld [vmem:[#allocation2 + $0xe0] sm:$0xff]
        %v742 = vld [vmem:[#allocation2 + $0xe8] sm:$0xff]
        %v743 = vld [vmem:[#allocation2 + $0xf0] sm:$0xff]
        %v744 = vld [vmem:[#allocation2 + $0xf8] sm:$0xff]
        %v745 = vld [vmem:[%s2] sm:$0x1]
        %v747 = vlaneseq
        %v748 = vshrl.u32 %v747, 7
        %v749 = vsub.s32 0, %v748
        %v750 = vrot.slane %v745, %v749
        %v752 = vadd.f32 %v713, %v750
        %v753 = vadd.f32 %v714, %v750
        %v754 = vadd.f32 %v715, %v750
        %v755 = vadd.f32 %v716, %v750
        %v756 = vadd.f32 %v717, %v750
        %v757 = vadd.f32 %v718, %v750
        %v758 = vadd.f32 %v719, %v750
        %v759 = vadd.f32 %v720, %v750
        %v760 = vadd.f32 %v721, %v750
        %v761 = vadd.f32 %v722, %v750
        %v762 = vadd.f32 %v723, %v750
        %v763 = vadd.f32 %v724, %v750
        %v764 = vadd.f32 %v725, %v750
        %v765 = vadd.f32 %v726, %v750
        %v766 = vadd.f32 %v727, %v750
        %v767 = vadd.f32 %v728, %v750
        %v768 = vadd.f32 %v729, %v750
        %v769 = vadd.f32 %v730, %v750
        %v770 = vadd.f32 %v731, %v750
        %v771 = vadd.f32 %v732, %v750
        %v772 = vadd.f32 %v733, %v750
        %v773 = vadd.f32 %v734, %v750
        %v774 = vadd.f32 %v735, %v750
        %v775 = vadd.f32 %v736, %v750
        %v776 = vadd.f32 %v737, %v750
        %v777 = vadd.f32 %v738, %v750
        %v778 = vadd.f32 %v739, %v750
        %v779 = vadd.f32 %v740, %v750
        %v780 = vadd.f32 %v741, %v750
        %v781 = vadd.f32 %v742, %v750
        %v782 = vadd.f32 %v743, %v750
        %v783 = vadd.f32 %v744, %v750
        %784 = vst.msk [vmem:[%s218] sm:$0xff] %vm676, %v752
        %785 = vst.msk [vmem:[%s218 + $0x8] sm:$0xff] %vm676, %v753
        %786 = vst.msk [vmem:[%s218 + $0x10] sm:$0xff] %vm676, %v754
        %787 = vst.msk [vmem:[%s218 + $0x18] sm:$0xff] %vm676, %v755
        %788 = vst.msk [vmem:[%s218 + $0x20] sm:$0xff] %vm676, %v756
        %789 = vst.msk [vmem:[%s218 + $0x28] sm:$0xff] %vm676, %v757
        %790 = vst.msk [vmem:[%s218 + $0x30] sm:$0xff] %vm676, %v758
        %791 = vst.msk [vmem:[%s218 + $0x38] sm:$0xff] %vm676, %v759
        %792 = vst.msk [vmem:[%s218 + $0x40] sm:$0xff] %vm676, %v760
        %793 = vst.msk [vmem:[%s218 + $0x48] sm:$0xff] %vm676, %v761
        %794 = vst.msk [vmem:[%s218 + $0x50] sm:$0xff] %vm676, %v762
        %795 = vst.msk [vmem:[%s218 + $0x58] sm:$0xff] %vm676, %v763
        %796 = vst.msk [vmem:[%s218 + $0x60] sm:$0xff] %vm676, %v764
        %797 = vst.msk [vmem:[%s218 + $0x68] sm:$0xff] %vm676, %v765
        %798 = vst.msk [vmem:[%s218 + $0x70] sm:$0xff] %vm676, %v766
        %799 = vst.msk [vmem:[%s218 + $0x78] sm:$0xff] %vm676, %v767
        %800 = vst.msk [vmem:[%s218 + $0x80] sm:$0xff] %vm676, %v768
        %801 = vst.msk [vmem:[%s218 + $0x88] sm:$0xff] %vm676, %v769
        %802 = vst.msk [vmem:[%s218 + $0x90] sm:$0xff] %vm676, %v770
        %803 = vst.msk [vmem:[%s218 + $0x98] sm:$0xff] %vm676, %v771
        %804 = vst.msk [vmem:[%s218 + $0xa0] sm:$0xff] %vm676, %v772
        %805 = vst.msk [vmem:[%s218 + $0xa8] sm:$0xff] %vm676, %v773
        %806 = vst.msk [vmem:[%s218 + $0xb0] sm:$0xff] %vm676, %v774
        %807 = vst.msk [vmem:[%s218 + $0xb8] sm:$0xff] %vm676, %v775
        %808 = vst.msk [vmem:[%s218 + $0xc0] sm:$0xff] %vm676, %v776
        %809 = vst.msk [vmem:[%s218 + $0xc8] sm:$0xff] %vm676, %v777
        %810 = vst.msk [vmem:[%s218 + $0xd0] sm:$0xff] %vm676, %v778
        %811 = vst.msk [vmem:[%s218 + $0xd8] sm:$0xff] %vm676, %v779
        %812 = vst.msk [vmem:[%s218 + $0xe0] sm:$0xff] %vm676, %v780
        %813 = vst.msk [vmem:[%s218 + $0xe8] sm:$0xff] %vm676, %v781
        %814 = vst.msk [vmem:[%s218 + $0xf0] sm:$0xff] %vm676, %v782
        %815 = vst.msk [vmem:[%s218 + $0xf8] sm:$0xff] %vm676, %v783
      $region40: #{fcn_generator_forward.11} parent=31 // pred_fallthru
        _
      %s816 = smul.u32 32, %s18
      %p817 = scmp.lt.s32.totalorder %s816, 63
      %s818 = scalar_select %p817, %s816, 63
      %s819 = smul.addr %s818, 8
      %s820 = scalar_lea.vmem %s3, %s819
      // Predicated region
      $region41: #{fcn_generator_forward.11} parent=31 // pred_check
        %p821 = pneg %p119
      $region42: #{fcn_generator_forward.11} parent=31 // pred_check_branch
        %823 = sbr.rel (%p821) target = $region44
      $region43: #{fcn_generator_forward.11} parent=31 // pred_region
        %s824 = smul.u32 32, %s18
      $region44: #{fcn_generator_forward.11} parent=31 // pred_fallthru
        _
    $region32: #{fcn_generator_forward.11} parent=5 // pred_fallthru
      _
    %p825 = scmp.le.s32.totalorder 2, %s9
    // Predicated region
    $region45: #{fcn_generator_forward.11} parent=5 // pred_check
      %p826 = pneg %p825
    $region46: #{fcn_generator_forward.11} parent=5 // pred_check_branch
      %828 = sbr.rel (%p826) target = $region48
    $region47: #{fcn_generator_forward.11} parent=5 // pred_region
      %s829 = ssub.s32 %s9, 2
      // Predicated region
      $region49: #{fcn_generator_forward.11} parent=47 // pred_check
        %p830 = pneg %p125
      $region50: #{fcn_generator_forward.11} parent=47 // pred_check_branch
        %832 = sbr.rel (%p830) target = $region52
      $region51: #{fcn_generator_forward.11} parent=47 // pred_region
        %s833 = smul.u32 32, %s20
        %p834 = scmp.lt.s32.totalorder %s833, 63
        %s835 = scalar_select %p834, %s833, 63
        %s836 = smul.addr %s835, 8
        %s837 = scalar_lea.vmem %s3, %s836
      $region52: #{fcn_generator_forward.11} parent=47 // pred_fallthru
        _
    $region48: #{fcn_generator_forward.11} parent=5 // pred_fallthru
      _
  $region6: #{fcn_generator_forward.11} parent=0 // loop_footer
    %s13 = sadd.s32 1, %s9
  $region7: #{fcn_generator_forward.11} parent=0 // loop_footer_branch
    %8 = sbr.rel target = $region3
  $region8: #{fcn_generator_forward.11} parent=0 // loop_exit
    _

</llo_original>
